<compile_context>
chip_gen: v7x
topology: tpu7x:2x2x1
jax: 0.10.0
libtpu: 0.0.40
codegen_flags: <defaults>
</compile_context>

<pallas_src>
import jax
import jax.numpy as jnp
from jax.experimental import pallas as pl
from jax.experimental.pallas import tpu as pltpu

PML = 128                      # Protein_Max_Length (lane-dense choice)
K_DIM = 64                     # STNkd(k=64) default
COMPUTE_DTYPE = jnp.bfloat16   # MXU input dtype; accumulation stays f32


def _full(arr):
    """BlockSpec for a whole (grid-invariant) operand."""
    nd = arr.ndim
    return pl.BlockSpec(arr.shape, lambda *_, _nd=nd: (0,) * _nd)


def _pick_tile_n(n, max_tile=512):
    """Largest point-tile <= max_tile that evenly divides N (multiple of 8)."""
    if n <= max_tile:
        return n
    start = max_tile - (max_tile % 8)
    for t in range(start, 7, -8):
        if n % t == 0:
            return t
    return n  # fallback: whole-N block (awkward N)


# ----------------------------------------------------------------------------
# Kernel A: conv1/2/3 (+folded BN, ReLU) + running max over points.
# grid = (B, num_N_tiles); the (1,1,PML) output block is resident across the
# N-tile axis and serves as the running-max accumulator.
# ----------------------------------------------------------------------------
def _conv_pool_kernel(x_ref, w1, t1, w2, t2, w3, t3, pooled_ref):
    @pl.when(pl.program_id(1) == 0)
    def _():
        pooled_ref[...] = jnp.full_like(pooled_ref, -jnp.inf)

    x = x_ref[0]                                             # (TILE_N, k) bf16
    # conv1 + bn1 + relu -> (TILE_N, 64)
    h = jnp.dot(x, w1[...], preferred_element_type=jnp.float32)
    h = jnp.maximum(h + t1[...], 0.0).astype(COMPUTE_DTYPE)
    # conv2 + bn2 + relu -> (TILE_N, 128)
    h = jnp.dot(h, w2[...], preferred_element_type=jnp.float32)
    h = jnp.maximum(h + t2[...], 0.0).astype(COMPUTE_DTYPE)
    # conv3 + bn3 + relu -> (TILE_N, PML), kept f32 for the max reduce
    h = jnp.dot(h, w3[...], preferred_element_type=jnp.float32)
    h = jnp.maximum(h + t3[...], 0.0)

    tile_max = jnp.max(h, axis=0, keepdims=True)             # (1, PML)
    pooled_ref[0] = jnp.maximum(pooled_ref[0], tile_max)


# ----------------------------------------------------------------------------
# Kernel B: batched FC stage.  One call for the whole batch:
#   (B,PML) -> fc1+bn4+relu -> fc2+bn5+relu -> fc3 (+bias with identity folded)
# ----------------------------------------------------------------------------
def _fc_kernel(g_ref, w4, t4, w5, t5, w6, b6, out_ref):
    g = g_ref[...].astype(COMPUTE_DTYPE)                     # (B, PML)
    h = jnp.dot(g, w4[...], preferred_element_type=jnp.float32)
    h = jnp.maximum(h + t4[...], 0.0).astype(COMPUTE_DTYPE)  # (B, 512)
    h = jnp.dot(h, w5[...], preferred_element_type=jnp.float32)
    h = jnp.maximum(h + t5[...], 0.0).astype(COMPUTE_DTYPE)  # (B, 256)
    out_ref[...] = (jnp.dot(h, w6[...], preferred_element_type=jnp.float32)
                    + b6[...])                               # (B, k*k)


def stnkd_forward_bnc(x_bnc, params):
    """x_bnc: (B, N, k) float32 — points on sublanes, channels on lanes."""
    B, N, Cin = x_bnc.shape
    (w1, t1), (w2, t2), (w3, t3), (w4, t4), (w5, t5), (w6, b6) = params
    pml = w3.shape[1]
    kk = w6.shape[1]
    k = int(round(kk ** 0.5))

    # Cast the streamed tensor to bf16 once (MXU input dtype anyway).
    x_bnc = x_bnc.astype(COMPUTE_DTYPE)

    tile_n = _pick_tile_n(N)
    n_tiles = N // tile_n

    # --- Kernel A: conv stack + max pool -> (B, 1, PML) ---
    pooled = pl.pallas_call(
        _conv_pool_kernel,
        out_shape=jax.ShapeDtypeStruct((B, 1, pml), jnp.float32),
        grid=(B, n_tiles),
        in_specs=[
            pl.BlockSpec((1, tile_n, Cin), lambda b, n: (b, n, 0)),
            _full(w1), _full(t1), _full(w2), _full(t2), _full(w3), _full(t3),
        ],
        out_specs=pl.BlockSpec((1, 1, pml), lambda b, n: (b, 0, 0)),
        compiler_params=pltpu.CompilerParams(
            dimension_semantics=("parallel", "arbitrary")),
    )(x_bnc, w1, t1, w2, t2, w3, t3)

    pooled = pooled.reshape(B, pml)

    # --- Kernel B: batched FC stage -> (B, k*k), lane-dense last dim ---
    out = pl.pallas_call(
        _fc_kernel,
        out_shape=jax.ShapeDtypeStruct((B, kk), jnp.float32),
        grid=(1,),
        in_specs=[
            pl.BlockSpec((B, pml), lambda i: (0, 0)),
            _full(w4), _full(t4), _full(w5), _full(t5), _full(w6), _full(b6),
        ],
        out_specs=pl.BlockSpec((B, kk), lambda i: (0, 0)),
        compiler_params=pltpu.CompilerParams(
            dimension_semantics=("arbitrary",)),
    )(pooled, w4, t4, w5, t5, w6, b6)

    return out.reshape(B, k, k)


def stnkd_forward(x_bkn, params):
    """x_bkn: (B, k, N) float32 — PyTorch Conv1d layout. Returns (B, k, k)."""
    # Single relayout to the lane-dense (B, N, k) layout; callers that already
    # hold (B, N, k) should call stnkd_forward_bnc directly and skip it.
    return stnkd_forward_bnc(jnp.transpose(x_bkn, (0, 2, 1)), params)


# ----------------------------------------------------------------------------
# Deterministic synthetic parameters (eval-mode BN folded into weight + shift).
# ----------------------------------------------------------------------------
def init_params(key, k=K_DIM, pml=PML, dtype=COMPUTE_DTYPE):
    keys = iter(jax.random.split(key, 32))
    nxt = lambda: next(keys)
    EPS = 1e-5

    def conv_bn(cin, cout):
        # conv/linear weight stored pre-transposed as (cin, cout)
        w = jax.random.normal(nxt(), (cin, cout), jnp.float32) / jnp.sqrt(cin)
        b = 0.01 * jax.random.normal(nxt(), (cout,), jnp.float32)
        gamma = 1.0 + 0.05 * jax.random.normal(nxt(), (cout,), jnp.float32)
        beta = 0.05 * jax.random.normal(nxt(), (cout,), jnp.float32)
        run_mean = jnp.zeros((cout,), jnp.float32)
        run_var = jnp.ones((cout,), jnp.float32)
        scale = gamma / jnp.sqrt(run_var + EPS)
        # Fold BN scale into the weight columns; only a shift add remains.
        w_folded = (w * scale[None, :]).astype(dtype)
        shift = ((b - run_mean) * scale + beta).reshape(1, -1)
        return w_folded, shift.astype(jnp.float32)

    def fc3(cin, k):
        w = jax.random.normal(nxt(), (cin, k * k), jnp.float32) / jnp.sqrt(cin)
        b = 0.01 * jax.random.normal(nxt(), (k * k,), jnp.float32)
        # Fold the post-fc3 identity add (x + eye(k).flatten()) into the bias.
        b = b + jnp.eye(k, dtype=jnp.float32).reshape(-1)
        return w.astype(dtype), b.reshape(1, -1).astype(jnp.float32)

    return (
        conv_bn(k, 64),      # conv1 + bn1
        conv_bn(64, 128),    # conv2 + bn2
        conv_bn(128, pml),   # conv3 + bn3
        conv_bn(pml, 512),   # fc1   + bn4
        conv_bn(512, 256),   # fc2   + bn5
        fc3(256, k),         # fc3   (+ identity)
    )


if __name__ == "__main__":
    key = jax.random.PRNGKey(0)
    k_param, k_data = jax.random.split(key)

    params = init_params(k_param)

    B, N = 2, 16
    x = jax.random.normal(k_data, (B, K_DIM, N), jnp.float32)  # PyTorch (B,k,N)

    out = jax.jit(stnkd_forward)(x, params)
    out = jax.block_until_ready(out)

    assert out.shape == (B, K_DIM, K_DIM), out.shape
    assert jnp.isfinite(out).all()
    print("KERNEL_OK")
</pallas_src>

<mosaic_0001>
module attributes {stable_mosaic.version = 11 : i64} {
  func.func @_fc_kernel(%arg0: i32, %arg1: memref<2x128xf32, #tpu.memory_space<vmem>>, %arg2: memref<128x512xbf16, #tpu.memory_space<vmem>>, %arg3: memref<1x512xf32, #tpu.memory_space<vmem>>, %arg4: memref<512x256xbf16, #tpu.memory_space<vmem>>, %arg5: memref<1x256xf32, #tpu.memory_space<vmem>>, %arg6: memref<256x4096xbf16, #tpu.memory_space<vmem>>, %arg7: memref<1x4096xf32, #tpu.memory_space<vmem>>, %arg8: memref<2x4096xf32, #tpu.memory_space<vmem>>) attributes {dimension_semantics = [#tpu.dimension_semantics<arbitrary>], iteration_bounds = array<i64: 1>, scalar_prefetch = 0 : i64, scratch_operands = 0 : i64, tpu.core_type = #tpu.core_type<tc>, window_params = [{pipeline_mode = #tpu.pipeline_mode<synchronous>, transform_indices = @transform_0, window_bounds = array<i64: 2, 128>}, {pipeline_mode = #tpu.pipeline_mode<synchronous>, transform_indices = @transform_1, window_bounds = array<i64: 128, 512>}, {pipeline_mode = #tpu.pipeline_mode<synchronous>, transform_indices = @transform_2, window_bounds = array<i64: 1, 512>}, {pipeline_mode = #tpu.pipeline_mode<synchronous>, transform_indices = @transform_3, window_bounds = array<i64: 512, 256>}, {pipeline_mode = #tpu.pipeline_mode<synchronous>, transform_indices = @transform_4, window_bounds = array<i64: 1, 256>}, {pipeline_mode = #tpu.pipeline_mode<synchronous>, transform_indices = @transform_5, window_bounds = array<i64: 256, 4096>}, {pipeline_mode = #tpu.pipeline_mode<synchronous>, transform_indices = @transform_6, window_bounds = array<i64: 1, 4096>}, {pipeline_mode = #tpu.pipeline_mode<synchronous>, transform_indices = @transform_7, window_bounds = array<i64: 2, 4096>}]} {
    %c0 = arith.constant 0 : index
    %c0_0 = arith.constant 0 : index
    %0 = vector.load %arg1[%c0, %c0_0] : memref<2x128xf32, #tpu.memory_space<vmem>>, vector<2x128xf32>
    %1 = arith.truncf %0 : vector<2x128xf32> to vector<2x128xbf16>
    %c0_1 = arith.constant 0 : index
    %c0_2 = arith.constant 0 : index
    %2 = vector.load %arg2[%c0_1, %c0_2] : memref<128x512xbf16, #tpu.memory_space<vmem>>, vector<128x512xbf16>
    %cst = arith.constant dense<0.000000e+00> : vector<2x512xf32>
    %3 = tpu.matmul %1, %2, %cst {dimension_numbers = #tpu.dot_dimension_numbers<[1], [0], [0], [1], [0, 0, 1, 1], [], []>} : vector<2x128xbf16>, vector<128x512xbf16>, vector<2x512xf32> -> vector<2x512xf32>
    %c0_3 = arith.constant 0 : index
    %c0_4 = arith.constant 0 : index
    %4 = vector.load %arg3[%c0_3, %c0_4] : memref<1x512xf32, #tpu.memory_space<vmem>>, vector<1x512xf32>
    %5 = vector.broadcast %4 : vector<1x512xf32> to vector<2x512xf32>
    %6 = arith.addf %3, %5 : vector<2x512xf32>
    %cst_5 = arith.constant 0.000000e+00 : f32
    %7 = vector.broadcast %cst_5 : f32 to vector<2x512xf32>
    %8 = arith.maximumf %6, %7 : vector<2x512xf32>
    %9 = arith.truncf %8 : vector<2x512xf32> to vector<2x512xbf16>
    %c0_6 = arith.constant 0 : index
    %c0_7 = arith.constant 0 : index
    %10 = vector.load %arg4[%c0_6, %c0_7] : memref<512x256xbf16, #tpu.memory_space<vmem>>, vector<512x256xbf16>
    %cst_8 = arith.constant dense<0.000000e+00> : vector<2x256xf32>
    %11 = tpu.matmul %9, %10, %cst_8 {dimension_numbers = #tpu.dot_dimension_numbers<[1], [0], [0], [1], [0, 0, 1, 1], [], []>} : vector<2x512xbf16>, vector<512x256xbf16>, vector<2x256xf32> -> vector<2x256xf32>
    %c0_9 = arith.constant 0 : index
    %c0_10 = arith.constant 0 : index
    %12 = vector.load %arg5[%c0_9, %c0_10] : memref<1x256xf32, #tpu.memory_space<vmem>>, vector<1x256xf32>
    %13 = vector.broadcast %12 : vector<1x256xf32> to vector<2x256xf32>
    %14 = arith.addf %11, %13 : vector<2x256xf32>
    %cst_11 = arith.constant 0.000000e+00 : f32
    %15 = vector.broadcast %cst_11 : f32 to vector<2x256xf32>
    %16 = arith.maximumf %14, %15 : vector<2x256xf32>
    %17 = arith.truncf %16 : vector<2x256xf32> to vector<2x256xbf16>
    %c0_12 = arith.constant 0 : index
    %c0_13 = arith.constant 0 : index
    %18 = vector.load %arg6[%c0_12, %c0_13] : memref<256x4096xbf16, #tpu.memory_space<vmem>>, vector<256x4096xbf16>
    %cst_14 = arith.constant dense<0.000000e+00> : vector<2x4096xf32>
    %19 = tpu.matmul %17, %18, %cst_14 {dimension_numbers = #tpu.dot_dimension_numbers<[1], [0], [0], [1], [0, 0, 1, 1], [], []>} : vector<2x256xbf16>, vector<256x4096xbf16>, vector<2x4096xf32> -> vector<2x4096xf32>
    %c0_15 = arith.constant 0 : index
    %c0_16 = arith.constant 0 : index
    %20 = vector.load %arg7[%c0_15, %c0_16] : memref<1x4096xf32, #tpu.memory_space<vmem>>, vector<1x4096xf32>
    %21 = vector.broadcast %20 : vector<1x4096xf32> to vector<2x4096xf32>
    %22 = arith.addf %19, %21 : vector<2x4096xf32>
    %c0_17 = arith.constant 0 : index
    %c0_18 = arith.constant 0 : index
    %23 = vector.load %arg8[%c0_17, %c0_18] : memref<2x4096xf32, #tpu.memory_space<vmem>>, vector<2x4096xf32>
    tpu.vector_store %arg8[%c0_17, %c0_18], %22 {strides = array<i32>} : memref<2x4096xf32, #tpu.memory_space<vmem>>, vector<2x4096xf32>,
    return
  }
  func.func @transform_0(%arg0: i32) -> (i32, i32) {
    %c0_i32 = arith.constant 0 : i32
    %c0_i32_0 = arith.constant 0 : i32
    %c0_i32_1 = arith.constant 0 : i32
    return %c0_i32, %c0_i32_0 : i32, i32
  }
  func.func @transform_1(%arg0: i32) -> (i32, i32) {
    %c0_i32 = arith.constant 0 : i32
    %c0_i32_0 = arith.constant 0 : i32
    %c0_i32_1 = arith.constant 0 : i32
    return %c0_i32, %c0_i32_0 : i32, i32
  }
  func.func @transform_2(%arg0: i32) -> (i32, i32) {
    %c0_i32 = arith.constant 0 : i32
    %c0_i32_0 = arith.constant 0 : i32
    %c0_i32_1 = arith.constant 0 : i32
    return %c0_i32, %c0_i32_0 : i32, i32
  }
  func.func @transform_3(%arg0: i32) -> (i32, i32) {
    %c0_i32 = arith.constant 0 : i32
    %c0_i32_0 = arith.constant 0 : i32
    %c0_i32_1 = arith.constant 0 : i32
    return %c0_i32, %c0_i32_0 : i32, i32
  }
  func.func @transform_4(%arg0: i32) -> (i32, i32) {
    %c0_i32 = arith.constant 0 : i32
    %c0_i32_0 = arith.constant 0 : i32
    %c0_i32_1 = arith.constant 0 : i32
    return %c0_i32, %c0_i32_0 : i32, i32
  }
  func.func @transform_5(%arg0: i32) -> (i32, i32) {
    %c0_i32 = arith.constant 0 : i32
    %c0_i32_0 = arith.constant 0 : i32
    %c0_i32_1 = arith.constant 0 : i32
    return %c0_i32, %c0_i32_0 : i32, i32
  }
  func.func @transform_6(%arg0: i32) -> (i32, i32) {
    %c0_i32 = arith.constant 0 : i32
    %c0_i32_0 = arith.constant 0 : i32
    %c0_i32_1 = arith.constant 0 : i32
    return %c0_i32, %c0_i32_0 : i32, i32
  }
  func.func @transform_7(%arg0: i32) -> (i32, i32) {
    %c0_i32 = arith.constant 0 : i32
    %c0_i32_0 = arith.constant 0 : i32
    %c0_i32_1 = arith.constant 0 : i32
    return %c0_i32, %c0_i32_0 : i32, i32
  }
}

module attributes {stable_mosaic.version = 11 : i64} {
  func.func @_conv_pool_kernel(%arg0: i32, %arg1: i32, %arg2: memref<1x16x64xbf16, #tpu.memory_space<vmem>>, %arg3: memref<64x64xbf16, #tpu.memory_space<vmem>>, %arg4: memref<1x64xf32, #tpu.memory_space<vmem>>, %arg5: memref<64x128xbf16, #tpu.memory_space<vmem>>, %arg6: memref<1x128xf32, #tpu.memory_space<vmem>>, %arg7: memref<128x128xbf16, #tpu.memory_space<vmem>>, %arg8: memref<1x128xf32, #tpu.memory_space<vmem>>, %arg9: memref<1x1x128xf32, #tpu.memory_space<vmem>>) attributes {dimension_semantics = [#tpu.dimension_semantics<parallel>, #tpu.dimension_semantics<arbitrary>], iteration_bounds = array<i64: 2, 1>, scalar_prefetch = 0 : i64, scratch_operands = 0 : i64, tpu.core_type = #tpu.core_type<tc>, window_params = [{transform_indices = @transform_0, window_bounds = array<i64: 1, 16, 64>}, {pipeline_mode = #tpu.pipeline_mode<synchronous>, transform_indices = @transform_1, window_bounds = array<i64: 64, 64>}, {pipeline_mode = #tpu.pipeline_mode<synchronous>, transform_indices = @transform_2, window_bounds = array<i64: 1, 64>}, {pipeline_mode = #tpu.pipeline_mode<synchronous>, transform_indices = @transform_3, window_bounds = array<i64: 64, 128>}, {pipeline_mode = #tpu.pipeline_mode<synchronous>, transform_indices = @transform_4, window_bounds = array<i64: 1, 128>}, {pipeline_mode = #tpu.pipeline_mode<synchronous>, transform_indices = @transform_5, window_bounds = array<i64: 128, 128>}, {pipeline_mode = #tpu.pipeline_mode<synchronous>, transform_indices = @transform_6, window_bounds = array<i64: 1, 128>}, {transform_indices = @transform_7, window_bounds = array<i64: 1, 1, 128>}]} {
    %c0_i32 = arith.constant 0 : i32
    %0 = arith.cmpi eq, %arg1, %c0_i32 : i32
    %1 = arith.extui %0 : i1 to i32
    %c0_i32_0 = arith.constant 0 : i32
    %2 = arith.cmpi ne, %1, %c0_i32_0 : i32
    scf.if %2 {
      %cst_27 = arith.constant 0xFF800000 : f32
      %36 = vector.broadcast %cst_27 : f32 to vector<1x1x128xf32>
      %c0_28 = arith.constant 0 : index
      %c0_29 = arith.constant 0 : index
      %c0_30 = arith.constant 0 : index
      %37 = vector.load %arg9[%c0_28, %c0_29, %c0_30] : memref<1x1x128xf32, #tpu.memory_space<vmem>>, vector<1x1x128xf32>
      tpu.vector_store %arg9[%c0_28, %c0_29, %c0_30], %36 {strides = array<i32>} : memref<1x1x128xf32, #tpu.memory_space<vmem>>, vector<1x1x128xf32>,
    } else {
    }
    %c0 = arith.constant 0 : index
    %c0_1 = arith.constant 0 : index
    %c0_2 = arith.constant 0 : index
    %3 = vector.load %arg2[%c0, %c0_1, %c0_2] : memref<1x16x64xbf16, #tpu.memory_space<vmem>>, vector<1x16x64xbf16>
    %4 = vector.shape_cast %3 : vector<1x16x64xbf16> to vector<16x64xbf16>
    %c0_3 = arith.constant 0 : index
    %c0_4 = arith.constant 0 : index
    %5 = vector.load %arg3[%c0_3, %c0_4] : memref<64x64xbf16, #tpu.memory_space<vmem>>, vector<64x64xbf16>
    %cst = arith.constant dense<0.000000e+00> : vector<16x64xf32>
    %6 = tpu.matmul %4, %5, %cst {dimension_numbers = #tpu.dot_dimension_numbers<[1], [0], [0], [1], [0, 0, 1, 1], [], []>} : vector<16x64xbf16>, vector<64x64xbf16>, vector<16x64xf32> -> vector<16x64xf32>
    %c0_5 = arith.constant 0 : index
    %c0_6 = arith.constant 0 : index
    %7 = vector.load %arg4[%c0_5, %c0_6] : memref<1x64xf32, #tpu.memory_space<vmem>>, vector<1x64xf32>
    %8 = vector.broadcast %7 : vector<1x64xf32> to vector<16x64xf32>
    %9 = arith.addf %6, %8 : vector<16x64xf32>
    %cst_7 = arith.constant 0.000000e+00 : f32
    %10 = vector.broadcast %cst_7 : f32 to vector<16x64xf32>
    %11 = arith.maximumf %9, %10 : vector<16x64xf32>
    %12 = arith.truncf %11 : vector<16x64xf32> to vector<16x64xbf16>
    %c0_8 = arith.constant 0 : index
    %c0_9 = arith.constant 0 : index
    %13 = vector.load %arg5[%c0_8, %c0_9] : memref<64x128xbf16, #tpu.memory_space<vmem>>, vector<64x128xbf16>
    %cst_10 = arith.constant dense<0.000000e+00> : vector<16x128xf32>
    %14 = tpu.matmul %12, %13, %cst_10 {dimension_numbers = #tpu.dot_dimension_numbers<[1], [0], [0], [1], [0, 0, 1, 1], [], []>} : vector<16x64xbf16>, vector<64x128xbf16>, vector<16x128xf32> -> vector<16x128xf32>
    %c0_11 = arith.constant 0 : index
    %c0_12 = arith.constant 0 : index
    %15 = vector.load %arg6[%c0_11, %c0_12] : memref<1x128xf32, #tpu.memory_space<vmem>>, vector<1x128xf32>
    %16 = vector.broadcast %15 : vector<1x128xf32> to vector<16x128xf32>
    %17 = arith.addf %14, %16 : vector<16x128xf32>
    %cst_13 = arith.constant 0.000000e+00 : f32
    %18 = vector.broadcast %cst_13 : f32 to vector<16x128xf32>
    %19 = arith.maximumf %17, %18 : vector<16x128xf32>
    %20 = arith.truncf %19 : vector<16x128xf32> to vector<16x128xbf16>
    %c0_14 = arith.constant 0 : index
    %c0_15 = arith.constant 0 : index
    %21 = vector.load %arg7[%c0_14, %c0_15] : memref<128x128xbf16, #tpu.memory_space<vmem>>, vector<128x128xbf16>
    %cst_16 = arith.constant dense<0.000000e+00> : vector<16x128xf32>
    %22 = tpu.matmul %20, %21, %cst_16 {dimension_numbers = #tpu.dot_dimension_numbers<[1], [0], [0], [1], [0, 0, 1, 1], [], []>} : vector<16x128xbf16>, vector<128x128xbf16>, vector<16x128xf32> -> vector<16x128xf32>
    %c0_17 = arith.constant 0 : index
    %c0_18 = arith.constant 0 : index
    %23 = vector.load %arg8[%c0_17, %c0_18] : memref<1x128xf32, #tpu.memory_space<vmem>>, vector<1x128xf32>
    %24 = vector.broadcast %23 : vector<1x128xf32> to vector<16x128xf32>
    %25 = arith.addf %22, %24 : vector<16x128xf32>
    %cst_19 = arith.constant 0.000000e+00 : f32
    %26 = vector.broadcast %cst_19 : f32 to vector<16x128xf32>
    %27 = arith.maximumf %25, %26 : vector<16x128xf32>
    %cst_20 = arith.constant dense<0xFF800000> : vector<128xf32>
    %28 = vector.multi_reduction <maximumf>, %27, %cst_20 [0] : vector<16x128xf32> to vector<128xf32>
    %29 = vector.shape_cast %28 : vector<128xf32> to vector<1x128xf32>
    %c0_21 = arith.constant 0 : index
    %c0_22 = arith.constant 0 : index
    %c0_23 = arith.constant 0 : index
    %30 = vector.load %arg9[%c0_21, %c0_22, %c0_23] : memref<1x1x128xf32, #tpu.memory_space<vmem>>, vector<1x1x128xf32>
    %31 = vector.shape_cast %30 : vector<1x1x128xf32> to vector<1x128xf32>
    %32 = arith.maximumf %31, %29 : vector<1x128xf32>
    %c0_24 = arith.constant 0 : index
    %c0_25 = arith.constant 0 : index
    %c0_26 = arith.constant 0 : index
    %33 = vector.load %arg9[%c0_24, %c0_25, %c0_26] : memref<1x1x128xf32, #tpu.memory_space<vmem>>, vector<1x1x128xf32>
    %34 = vector.shape_cast %33 : vector<1x1x128xf32> to vector<1x128xf32>
    %35 = vector.shape_cast %32 : vector<1x128xf32> to vector<1x1x128xf32>
    tpu.vector_store %arg9[%c0_24, %c0_25, %c0_26], %35 {strides = array<i32>} : memref<1x1x128xf32, #tpu.memory_space<vmem>>, vector<1x1x128xf32>,
    return
  }
  func.func @transform_0(%arg0: i32, %arg1: i32) -> (i32, i32, i32) {
    %c0_i32 = arith.constant 0 : i32
    %c0_i32_0 = arith.constant 0 : i32
    return %arg0, %arg1, %c0_i32 : i32, i32, i32
  }
  func.func @transform_1(%arg0: i32, %arg1: i32) -> (i32, i32) {
    %c0_i32 = arith.constant 0 : i32
    %c0_i32_0 = arith.constant 0 : i32
    %c0_i32_1 = arith.constant 0 : i32
    return %c0_i32, %c0_i32_0 : i32, i32
  }
  func.func @transform_2(%arg0: i32, %arg1: i32) -> (i32, i32) {
    %c0_i32 = arith.constant 0 : i32
    %c0_i32_0 = arith.constant 0 : i32
    %c0_i32_1 = arith.constant 0 : i32
    return %c0_i32, %c0_i32_0 : i32, i32
  }
  func.func @transform_3(%arg0: i32, %arg1: i32) -> (i32, i32) {
    %c0_i32 = arith.constant 0 : i32
    %c0_i32_0 = arith.constant 0 : i32
    %c0_i32_1 = arith.constant 0 : i32
    return %c0_i32, %c0_i32_0 : i32, i32
  }
  func.func @transform_4(%arg0: i32, %arg1: i32) -> (i32, i32) {
    %c0_i32 = arith.constant 0 : i32
    %c0_i32_0 = arith.constant 0 : i32
    %c0_i32_1 = arith.constant 0 : i32
    return %c0_i32, %c0_i32_0 : i32, i32
  }
  func.func @transform_5(%arg0: i32, %arg1: i32) -> (i32, i32) {
    %c0_i32 = arith.constant 0 : i32
    %c0_i32_0 = arith.constant 0 : i32
    %c0_i32_1 = arith.constant 0 : i32
    return %c0_i32, %c0_i32_0 : i32, i32
  }
  func.func @transform_6(%arg0: i32, %arg1: i32) -> (i32, i32) {
    %c0_i32 = arith.constant 0 : i32
    %c0_i32_0 = arith.constant 0 : i32
    %c0_i32_1 = arith.constant 0 : i32
    return %c0_i32, %c0_i32_0 : i32, i32
  }
  func.func @transform_7(%arg0: i32, %arg1: i32) -> (i32, i32, i32) {
    %c0_i32 = arith.constant 0 : i32
    %c0_i32_0 = arith.constant 0 : i32
    %c0_i32_1 = arith.constant 0 : i32
    return %arg0, %c0_i32, %c0_i32_0 : i32, i32, i32
  }
}

</mosaic_0001>

<llo_original>
// kernel: stnkd_forward.2
$region0: #{stnkd_forward.2}
  #allocation0 [shape = 'u32[]', space=smem, size = 0x4, offset = 0x4, fixed_abs, tag = 'smem constant byte address 0x4 - core index']
  #allocation1 [shape = 'u32[144,128]{1,0:T(1,128)}', space=vmem, size = 0x12000, scoped, tag = 'internal scratch']
  %s0 = inlined_call_operand.vmem [shape: bf16[2,16,64], index: 0, kind: input, shape index: {}]
  %s1 = inlined_call_operand.hbm [shape: bf16[64,64], index: 1, kind: input, shape index: {}]
  %s2 = inlined_call_operand.hbm [shape: f32[1,64], index: 2, kind: input, shape index: {}]
  %s3 = inlined_call_operand.hbm [shape: bf16[64,128], index: 3, kind: input, shape index: {}]
  %s4 = inlined_call_operand.hbm [shape: f32[1,128], index: 4, kind: input, shape index: {}]
  %s5 = inlined_call_operand.hbm [shape: bf16[128,128], index: 5, kind: input, shape index: {}]
  %s6 = inlined_call_operand.hbm [shape: f32[1,128], index: 6, kind: input, shape index: {}]
  %s7 = inlined_call_operand.vmem [shape: f32[2,1,128], index: 7, kind: output, shape index: {}]
  %s8 = sld [smem:[#allocation0]]
  $region89: #{stnkd_forward.2} parent=0
    _
  %s10 = ssub.s32 1, %s8
  %s11 = scalar_select 0, %s10, %s8
  $region1: #{stnkd_forward.2} parent=0
    #allocation2 [shape = 'u8[16384]{0}', space=vmem, size = 0x4000, scoped, tag = 'input window, operand 1, single buffered']
    #allocation3 [shape = 's32[2]{0}', space=sflag, size = 0x8, scoped, tag = 'scoped memory for stnkd_forward.2']
    #allocation4 [shape = 'u8[512]{0}', space=vmem, size = 0x400, scoped, tag = 'input window, operand 2, single buffered']
    #allocation5 [shape = 's32[1]{0}', space=sflag, size = 0x4, scoped, tag = 'scoped memory for stnkd_forward.2']
    #allocation6 [shape = 'u8[16384]{0}', space=vmem, size = 0x4000, scoped, tag = 'input window, operand 3, single buffered']
    #allocation7 [shape = 'u8[512]{0}', space=vmem, size = 0x400, scoped, tag = 'input window, operand 4, single buffered']
    #allocation8 [shape = 's32[1]{0}', space=sflag, size = 0x4, scoped, tag = 'scoped memory for stnkd_forward.2']
    #allocation9 [shape = 'u8[32768]{0}', space=vmem, size = 0x8000, scoped, tag = 'input window, operand 5, single buffered']
    #allocation10 [shape = 'u8[512]{0}', space=vmem, size = 0x400, scoped, tag = 'input window, operand 6, single buffered']
    #allocation11 [shape = 's32[1]{0}', space=sflag, size = 0x4, scoped, tag = 'scoped memory for stnkd_forward.2']
    %12 = vsyncpa [#allocation3], 0
    %13 = vsyncpa [#allocation5], 0
    %14 = vsyncpa [#allocation8], 0
    %15 = vsyncpa [#allocation11], 0
    loop: start=0, step=1, limit=4
    $region2: #{stnkd_forward.2} parent=1 // loop_pre_header
      _
    $region3: #{stnkd_forward.2} parent=1 // loop_header
      %s17 = sphi 0, %s21
      %p18 = scmp.ge.s32.totalorder %s17, 4
      %s24 = sphi 0, %s36
      %s25 = sphi 0, %s32
      %s26 = sphi 0, %s24
      %s27 = sphi 0, %s25
      %s28 = sphi 0, %s26
      %s29 = sphi 0, %s27
      %s41 = sphi 0, %s43
      %s44 = sphi 0, %s41
      %s45 = sphi 0, %s44
      %s61 = sphi 0, %s45
      %s65 = sphi 0, %s65
      %s67 = sphi 0, %s65
      %s68 = sphi 0, %s67
      %s82 = sphi 0, %s68
      %s86 = sphi 0, %s86
      %s88 = sphi 0, %s86
      %s89 = sphi 0, %s88
      %s103 = sphi 0, %s89
      %s107 = sphi 0, %s107
      %s109 = sphi 0, %s107
      %s110 = sphi 0, %s109
      %s124 = sphi 0, %s110
      %s128 = sphi 0, %s128
      %s130 = sphi 0, %s128
      %s131 = sphi 0, %s130
      %s145 = sphi 0, %s131
      %s149 = sphi 0, %s149
      %s151 = sphi 0, %s149
      %s152 = sphi 0, %s151
      %s166 = sphi 0, %s152
      %s170 = sphi 0, %s170
      %s172 = sphi 0, %s170
      %s173 = sphi 0, %s172
      %s187 = sphi 0, %s173
      %s193 = sphi 0, %s195
      %s196 = sphi 0, %s193
      %s197 = sphi 0, %s196
      %s213 = sphi 0, %s197
    $region4: #{stnkd_forward.2} parent=1 // loop_header_branch
      %20 = sbr.rel (%p18) target = $region8
    $region5: #{stnkd_forward.2} parent=1 // loop_body
      %s22 = ssub.s32 %s17, 1
      %s23 = ssub.s32 %s17, 2
      %s30 = sadd.s32 1, %s25
      %p31 = scmp.ge.s32.totalorder %s30, 1
      %s32 = scalar_select %p31, 0, %s30
      %s33 = sadd.s32 1, %s24
      %s34 = scalar_select %p31, %s33, %s24
      %p35 = scmp.ge.s32.totalorder %s34, 2
      %s36 = scalar_select %p35, 0, %s34
      %s37 = ssub.s32 %s24, %s36
      %s38 = ssub.s32 %s25, %s32
      %s39 = sor.u32 %s37, %s38
      %p40 = scmp.eq.s32.totalorder %s39, 0
      %s42 = sadd.s32 %s41, 1
      %s43 = scalar_select %p40, %s41, %s42
      %p46 = pneg %p40
      %p47 = scmp.eq.s32.totalorder %s17, 1
      %p48 = por %p46, %p47
      %p49 = scmp.ne.s32.totalorder %s41, %s44
      %p50 = scmp.eq.s32.totalorder %s17, 0
      %p51 = por %p49, %p50
      %p52 = scmp.ne.s32.totalorder %s41, %s44
      %p53 = scmp.eq.s32.totalorder %s22, 1
      %p54 = por %p52, %p53
      %p55 = scmp.ne.s32.totalorder %s44, %s45
      %p56 = scmp.eq.s32.totalorder %s22, 0
      %p57 = por %p55, %p56
      %p58 = scmp.ne.s32.totalorder %s44, %s45
      %p59 = scmp.eq.s32.totalorder %s23, 1
      %p60 = por %p58, %p59
      %p62 = scmp.ne.s32.totalorder %s45, %s61
      %p63 = scmp.eq.s32.totalorder %s23, 0
      %p64 = por %p62, %p63
      %s66 = sadd.s32 %s65, 1
      %p69 = scmp.eq.s32.totalorder %s17, 1
      %p70 = scmp.ne.s32.totalorder %s65, %s67
      %p71 = scmp.eq.s32.totalorder %s17, 0
      %p72 = por %p70, %p71
      %p73 = scmp.ne.s32.totalorder %s65, %s67
      %p74 = scmp.eq.s32.totalorder %s22, 1
      %p75 = por %p73, %p74
      %p76 = scmp.ne.s32.totalorder %s67, %s68
      %p77 = scmp.eq.s32.totalorder %s22, 0
      %p78 = por %p76, %p77
      %p79 = scmp.ne.s32.totalorder %s67, %s68
      %p80 = scmp.eq.s32.totalorder %s23, 1
      %p81 = por %p79, %p80
      %p83 = scmp.ne.s32.totalorder %s68, %s82
      %p84 = scmp.eq.s32.totalorder %s23, 0
      %p85 = por %p83, %p84
      %s87 = sadd.s32 %s86, 1
      %p90 = scmp.eq.s32.totalorder %s17, 1
      %p91 = scmp.ne.s32.totalorder %s86, %s88
      %p92 = scmp.eq.s32.totalorder %s17, 0
      %p93 = por %p91, %p92
      %p94 = scmp.ne.s32.totalorder %s86, %s88
      %p95 = scmp.eq.s32.totalorder %s22, 1
      %p96 = por %p94, %p95
      %p97 = scmp.ne.s32.totalorder %s88, %s89
      %p98 = scmp.eq.s32.totalorder %s22, 0
      %p99 = por %p97, %p98
      %p100 = scmp.ne.s32.totalorder %s88, %s89
      %p101 = scmp.eq.s32.totalorder %s23, 1
      %p102 = por %p100, %p101
      %p104 = scmp.ne.s32.totalorder %s89, %s103
      %p105 = scmp.eq.s32.totalorder %s23, 0
      %p106 = por %p104, %p105
      %s108 = sadd.s32 %s107, 1
      %p111 = scmp.eq.s32.totalorder %s17, 1
      %p112 = scmp.ne.s32.totalorder %s107, %s109
      %p113 = scmp.eq.s32.totalorder %s17, 0
      %p114 = por %p112, %p113
      %p115 = scmp.ne.s32.totalorder %s107, %s109
      %p116 = scmp.eq.s32.totalorder %s22, 1
      %p117 = por %p115, %p116
      %p118 = scmp.ne.s32.totalorder %s109, %s110
      %p119 = scmp.eq.s32.totalorder %s22, 0
      %p120 = por %p118, %p119
      %p121 = scmp.ne.s32.totalorder %s109, %s110
      %p122 = scmp.eq.s32.totalorder %s23, 1
      %p123 = por %p121, %p122
      %p125 = scmp.ne.s32.totalorder %s110, %s124
      %p126 = scmp.eq.s32.totalorder %s23, 0
      %p127 = por %p125, %p126
      %s129 = sadd.s32 %s128, 1
      %p132 = scmp.eq.s32.totalorder %s17, 1
      %p133 = scmp.ne.s32.totalorder %s128, %s130
      %p134 = scmp.eq.s32.totalorder %s17, 0
      %p135 = por %p133, %p134
      %p136 = scmp.ne.s32.totalorder %s128, %s130
      %p137 = scmp.eq.s32.totalorder %s22, 1
      %p138 = por %p136, %p137
      %p139 = scmp.ne.s32.totalorder %s130, %s131
      %p140 = scmp.eq.s32.totalorder %s22, 0
      %p141 = por %p139, %p140
      %p142 = scmp.ne.s32.totalorder %s130, %s131
      %p143 = scmp.eq.s32.totalorder %s23, 1
      %p144 = por %p142, %p143
      %p146 = scmp.ne.s32.totalorder %s131, %s145
      %p147 = scmp.eq.s32.totalorder %s23, 0
      %p148 = por %p146, %p147
      %s150 = sadd.s32 %s149, 1
      %p153 = scmp.eq.s32.totalorder %s17, 1
      %p154 = scmp.ne.s32.totalorder %s149, %s151
      %p155 = scmp.eq.s32.totalorder %s17, 0
      %p156 = por %p154, %p155
      %p157 = scmp.ne.s32.totalorder %s149, %s151
      %p158 = scmp.eq.s32.totalorder %s22, 1
      %p159 = por %p157, %p158
      %p160 = scmp.ne.s32.totalorder %s151, %s152
      %p161 = scmp.eq.s32.totalorder %s22, 0
      %p162 = por %p160, %p161
      %p163 = scmp.ne.s32.totalorder %s151, %s152
      %p164 = scmp.eq.s32.totalorder %s23, 1
      %p165 = por %p163, %p164
      %p167 = scmp.ne.s32.totalorder %s152, %s166
      %p168 = scmp.eq.s32.totalorder %s23, 0
      %p169 = por %p167, %p168
      %s171 = sadd.s32 %s170, 1
      %p174 = scmp.eq.s32.totalorder %s17, 1
      %p175 = scmp.ne.s32.totalorder %s170, %s172
      %p176 = scmp.eq.s32.totalorder %s17, 0
      %p177 = por %p175, %p176
      %p178 = scmp.ne.s32.totalorder %s170, %s172
      %p179 = scmp.eq.s32.totalorder %s22, 1
      %p180 = por %p178, %p179
      %p181 = scmp.ne.s32.totalorder %s172, %s173
      %p182 = scmp.eq.s32.totalorder %s22, 0
      %p183 = por %p181, %p182
      %p184 = scmp.ne.s32.totalorder %s172, %s173
      %p185 = scmp.eq.s32.totalorder %s23, 1
      %p186 = por %p184, %p185
      %p188 = scmp.ne.s32.totalorder %s173, %s187
      %p189 = scmp.eq.s32.totalorder %s23, 0
      %p190 = por %p188, %p189
      %s191 = ssub.s32 %s24, %s36
      %p192 = scmp.eq.s32.totalorder %s191, 0
      %s194 = sadd.s32 %s193, 1
      %s195 = scalar_select %p192, %s193, %s194
      %p198 = pneg %p192
      %p199 = scmp.eq.s32.totalorder %s17, 1
      %p200 = por %p198, %p199
      %p201 = scmp.ne.s32.totalorder %s193, %s196
      %p202 = scmp.eq.s32.totalorder %s17, 0
      %p203 = por %p201, %p202
      %p204 = scmp.ne.s32.totalorder %s193, %s196
      %p205 = scmp.eq.s32.totalorder %s22, 1
      %p206 = por %p204, %p205
      %p207 = scmp.ne.s32.totalorder %s196, %s197
      %p208 = scmp.eq.s32.totalorder %s22, 0
      %p209 = por %p207, %p208
      %p210 = scmp.ne.s32.totalorder %s196, %s197
      %p211 = scmp.eq.s32.totalorder %s23, 1
      %p212 = por %p210, %p211
      %p214 = scmp.ne.s32.totalorder %s197, %s213
      %p215 = scmp.eq.s32.totalorder %s23, 0
      %p216 = por %p214, %p215
      %p217 = scmp.le.s32.totalorder 1, %s17
      %p218 = scmp.lt.s32.totalorder %s17, 3
      %p219 = pnand %p217, %p218
      %p220 = pneg %p219
      // Predicated region
      $region9: #{stnkd_forward.2} parent=5 // pred_check
        _
      $region10: #{stnkd_forward.2} parent=5 // pred_check_branch
        %222 = sbr.rel (%p219) target = $region12
      $region11: #{stnkd_forward.2} parent=5 // pred_region
        %s223 = ssub.s32 %s17, 1
        // Predicated region
        $region13: #{stnkd_forward.2} parent=11 // pred_check
          %p224 = pneg %p78
        $region14: #{stnkd_forward.2} parent=11 // pred_check_branch
          %226 = sbr.rel (%p224) target = $region16
        $region15: #{stnkd_forward.2} parent=11 // pred_region
          %s228 = ssub.s32 512, 512
          %229 = vsyncadd [#allocation3], %s228
          %s230 = sshll.u32 [#allocation2], 4
          %s231 = int_to_ptr.vmem [resolvable:$true] %s230
          %236 = dma.hbm_to_vmem [thread:$0]  %s1, 512, %s231, [#allocation3], 64, 64, 4
        $region16: #{stnkd_forward.2} parent=11 // pred_fallthru
          _
        // Predicated region
        $region17: #{stnkd_forward.2} parent=11 // pred_check
          %p237 = pneg %p99
        $region18: #{stnkd_forward.2} parent=11 // pred_check_branch
          %239 = sbr.rel (%p237) target = $region20
        $region19: #{stnkd_forward.2} parent=11 // pred_region
          %s241 = ssub.s32 16, 16
          %242 = vsyncadd [#allocation5], %s241
          %s244 = sshll.u32 [#allocation4], 4
          %s245 = int_to_ptr.vmem [resolvable:$true] %s244
          %247 = dma.hbm_to_vmem [thread:$0]  %s2, 16, %s245, [#allocation5]
        $region20: #{stnkd_forward.2} parent=11 // pred_fallthru
          _
        // Predicated region
        $region21: #{stnkd_forward.2} parent=11 // pred_check
          %p248 = pneg %p120
        $region22: #{stnkd_forward.2} parent=11 // pred_check_branch
          %250 = sbr.rel (%p248) target = $region24
        $region23: #{stnkd_forward.2} parent=11 // pred_region
          %s252 = ssub.s32 512, 512
          %253 = vsyncadd [#allocation5], %s252
          %s254 = sshll.u32 [#allocation6], 4
          %s255 = int_to_ptr.vmem [resolvable:$true] %s254
          %260 = dma.hbm_to_vmem [thread:$0]  %s3, 512, %s255, [#allocation5], 64, 64, 4
        $region24: #{stnkd_forward.2} parent=11 // pred_fallthru
          _
        // Predicated region
        $region25: #{stnkd_forward.2} parent=11 // pred_check
          %p261 = pneg %p141
        $region26: #{stnkd_forward.2} parent=11 // pred_check_branch
          %263 = sbr.rel (%p261) target = $region28
        $region27: #{stnkd_forward.2} parent=11 // pred_region
          %s265 = ssub.s32 16, 16
          %266 = vsyncadd [#allocation8], %s265
          %s268 = sshll.u32 [#allocation7], 4
          %s269 = int_to_ptr.vmem [resolvable:$true] %s268
          %271 = dma.hbm_to_vmem [thread:$0]  %s4, 16, %s269, [#allocation8]
        $region28: #{stnkd_forward.2} parent=11 // pred_fallthru
          _
        // Predicated region
        $region29: #{stnkd_forward.2} parent=11 // pred_check
          %p272 = pneg %p162
        $region30: #{stnkd_forward.2} parent=11 // pred_check_branch
          %274 = sbr.rel (%p272) target = $region32
        $region31: #{stnkd_forward.2} parent=11 // pred_region
          %s276 = ssub.s32 1024, 1024
          %277 = vsyncadd [#allocation8], %s276
          %s278 = sshll.u32 [#allocation9], 4
          %s279 = int_to_ptr.vmem [resolvable:$true] %s278
          %284 = dma.hbm_to_vmem [thread:$0]  %s5, 1024, %s279, [#allocation8], 64, 64, 4
        $region32: #{stnkd_forward.2} parent=11 // pred_fallthru
          _
        // Predicated region
        $region33: #{stnkd_forward.2} parent=11 // pred_check
          %p285 = pneg %p183
        $region34: #{stnkd_forward.2} parent=11 // pred_check_branch
          %287 = sbr.rel (%p285) target = $region36
        $region35: #{stnkd_forward.2} parent=11 // pred_region
          %s289 = ssub.s32 16, 16
          %290 = vsyncadd [#allocation11], %s289
          %s292 = sshll.u32 [#allocation10], 4
          %s293 = int_to_ptr.vmem [resolvable:$true] %s292
          %295 = dma.hbm_to_vmem [thread:$0]  %s6, 16, %s293, [#allocation11]
        $region36: #{stnkd_forward.2} parent=11 // pred_fallthru
          _
      $region12: #{stnkd_forward.2} parent=5 // pred_fallthru
        _
      %p296 = scmp.lt.s32.totalorder %s17, 2
      // Predicated region
      $region37: #{stnkd_forward.2} parent=5 // pred_check
        %p297 = pneg %p296
      $region38: #{stnkd_forward.2} parent=5 // pred_check_branch
        %299 = sbr.rel (%p297) target = $region40
      $region39: #{stnkd_forward.2} parent=5 // pred_region
        // Predicated region
        $region41: #{stnkd_forward.2} parent=39 // pred_check
          %p300 = pneg %p51
        $region42: #{stnkd_forward.2} parent=39 // pred_check_branch
          %302 = sbr.rel (%p300) target = $region44
        $region43: #{stnkd_forward.2} parent=39 // pred_region
          %s303 = smul.u32 2, %s25
          %p304 = scmp.lt.s32.totalorder %s24, 1
          %s305 = scalar_select %p304, %s24, 1
          %p306 = scmp.lt.s32.totalorder %s303, 1
          %s307 = scalar_select %p306, %s303, 1
          %s308 = smul.addr %s305, 2
          %s309 = sadd.s32 %s307, %s308
          %s310 = smul.addr %s309, 4
          %s311 = scalar_lea.vmem %s0, %s310
          %s312 = smul.u32 2, %s25
        $region44: #{stnkd_forward.2} parent=39 // pred_fallthru
          _
      $region40: #{stnkd_forward.2} parent=5 // pred_fallthru
        _
      %p313 = scmp.le.s32.totalorder 1, %s17
      %p314 = scmp.lt.s32.totalorder %s17, 3
      %p315 = pnand %p313, %p314
      %p316 = pneg %p315
      // Predicated region
      $region45: #{stnkd_forward.2} parent=5 // pred_check
        _
      $region46: #{stnkd_forward.2} parent=5 // pred_check_branch
        %318 = sbr.rel (%p315) target = $region48
      $region47: #{stnkd_forward.2} parent=5 // pred_region
        %s319 = ssub.s32 %s17, 1
        // Predicated region
        $region49: #{stnkd_forward.2} parent=47 // pred_check
          %p320 = pneg %p78
        $region50: #{stnkd_forward.2} parent=47 // pred_check_branch
          %322 = sbr.rel (%p320) target = $region52
        $region51: #{stnkd_forward.2} parent=47 // pred_region
          %323 = dma.done [#allocation3], 512
        $region52: #{stnkd_forward.2} parent=47 // pred_fallthru
          _
        // Predicated region
        $region53: #{stnkd_forward.2} parent=47 // pred_check
          %p324 = pneg %p99
        $region54: #{stnkd_forward.2} parent=47 // pred_check_branch
          %326 = sbr.rel (%p324) target = $region56
        $region55: #{stnkd_forward.2} parent=47 // pred_region
          %327 = dma.done [#allocation5], 16
        $region56: #{stnkd_forward.2} parent=47 // pred_fallthru
          _
        // Predicated region
        $region57: #{stnkd_forward.2} parent=47 // pred_check
          %p328 = pneg %p120
        $region58: #{stnkd_forward.2} parent=47 // pred_check_branch
          %330 = sbr.rel (%p328) target = $region60
        $region59: #{stnkd_forward.2} parent=47 // pred_region
          %331 = dma.done [#allocation5], 512
        $region60: #{stnkd_forward.2} parent=47 // pred_fallthru
          _
        // Predicated region
        $region61: #{stnkd_forward.2} parent=47 // pred_check
          %p332 = pneg %p141
        $region62: #{stnkd_forward.2} parent=47 // pred_check_branch
          %334 = sbr.rel (%p332) target = $region64
        $region63: #{stnkd_forward.2} parent=47 // pred_region
          %335 = dma.done [#allocation8], 16
        $region64: #{stnkd_forward.2} parent=47 // pred_fallthru
          _
        // Predicated region
        $region65: #{stnkd_forward.2} parent=47 // pred_check
          %p336 = pneg %p162
        $region66: #{stnkd_forward.2} parent=47 // pred_check_branch
          %338 = sbr.rel (%p336) target = $region68
        $region67: #{stnkd_forward.2} parent=47 // pred_region
          %339 = dma.done [#allocation8], 1024
        $region68: #{stnkd_forward.2} parent=47 // pred_fallthru
          _
        // Predicated region
        $region69: #{stnkd_forward.2} parent=47 // pred_check
          %p340 = pneg %p183
        $region70: #{stnkd_forward.2} parent=47 // pred_check_branch
          %342 = sbr.rel (%p340) target = $region72
        $region71: #{stnkd_forward.2} parent=47 // pred_region
          %343 = dma.done [#allocation11], 16
        $region72: #{stnkd_forward.2} parent=47 // pred_fallthru
          _
        %s344 = smul.u32 2, %s27
        %p345 = scmp.lt.s32.totalorder %s26, 1
        %s346 = scalar_select %p345, %s26, 1
        %p347 = scmp.lt.s32.totalorder %s344, 1
        %s348 = scalar_select %p347, %s344, 1
        %s349 = smul.addr %s346, 2
        %s350 = sadd.s32 %s348, %s349
        %s351 = smul.addr %s350, 4
        %s352 = scalar_lea.vmem %s0, %s351
        %p353 = pneg %p57
        %p354 = pneg %p54
        %p355 = pneg %p78
        %p356 = pneg %p75
        %p357 = pneg %p99
        %p358 = pneg %p96
        %p359 = pneg %p120
        %p360 = pneg %p117
        %p361 = pneg %p141
        %p362 = pneg %p138
        %p363 = pneg %p162
        %p364 = pneg %p159
        %p365 = pneg %p183
        %p366 = pneg %p180
        %p367 = pneg %p209
        %p368 = pneg %p206
        %p369 = scmp.lt.s32.totalorder %s26, 1
        %s370 = scalar_select %p369, %s26, 1
        %s371 = scalar_lea.vmem %s7, %s370
        %s372 = smul.u32 2, %s27
        %p373 = scmp.lt.s32.totalorder %s26, 1
        %s374 = scalar_select %p373, %s26, 1
        %p375 = scmp.lt.s32.totalorder %s372, 1
        %s376 = scalar_select %p375, %s372, 1
        %s377 = smul.addr %s374, 2
        %s378 = sadd.s32 %s376, %s377
        %s379 = smul.addr %s378, 4
        %s380 = scalar_lea.vmem %s0, %s379
        %s381 = smul.u32 2, %s27
        %p382 = scmp.lt.s32.totalorder %s26, 1
        %s383 = scalar_select %p382, %s26, 1
        %s384 = scalar_lea.vmem %s7, %s383
        %p386 = scmp.eq.s32.totalorder %s27, 0
        // Predicated region
        $region73: #{stnkd_forward.2} parent=47 // pred_check
          %p387 = pneg %p386
        $region74: #{stnkd_forward.2} parent=47 // pred_check_branch
          %389 = sbr.rel (%p387) target = $region76
        $region75: #{stnkd_forward.2} parent=47 // pred_region
          %390 = vst [vmem:[%s384] sm:$0x1] -inf
        $region76: #{stnkd_forward.2} parent=47 // pred_fallthru
          _
        %v391 = vld [vmem:[%s380] sm:$0xf]
        %v392 = vld [vmem:[%s380 + $0x4] sm:$0xf]
        %v393 = vld [vmem:[#allocation2] sm:$0xf]
        %v394 = vld [vmem:[#allocation2 + $0x4] sm:$0xf]
        %v395 = vld [vmem:[#allocation2 + $0x8] sm:$0xf]
        %v396 = vld [vmem:[#allocation2 + $0xc] sm:$0xf]
        %v397 = vld [vmem:[#allocation2 + $0x10] sm:$0xf]
        %v398 = vld [vmem:[#allocation2 + $0x14] sm:$0xf]
        %v399 = vld [vmem:[#allocation2 + $0x18] sm:$0xf]
        %v400 = vld [vmem:[#allocation2 + $0x1c] sm:$0xf]
        %v401 = vld [vmem:[#allocation4] sm:$0x1]
        %v403 = vlaneseq
        %v404 = vshrl.u32 %v403, 7
        %v405 = vsub.s32 0, %v404
        %v406 = vrot.slane %v401, %v405
        %v410 = vunpack.c.l.b16 %v391
        %v411 = vunpack.c.l.b16 %v392
        %v412 = vpack.c.b16 %v411, %v410
        %v421 = vunpack.c.l.b16 %v393
        %v422 = vunpack.c.l.b16 %v394
        %v423 = vunpack.c.l.b16 %v395
        %v424 = vunpack.c.l.b16 %v396
        %v425 = vunpack.c.l.b16 %v397
        %v426 = vunpack.c.l.b16 %v398
        %v427 = vunpack.c.l.b16 %v399
        %v428 = vunpack.c.l.b16 %v400
        %v429 = vpack.c.b16 %v422, %v421
        %v430 = vpack.c.b16 %v424, %v423
        %v431 = vpack.c.b16 %v426, %v425
        %v432 = vpack.c.b16 %v428, %v427
        %vm437 = vcmask 523264
        %v439 = vsel %vm437, %v412, 0
        %441 = vmatprep.subr.bf16.mxu0 0
        %442 = vmatpush1.bf16.msra.mxu0 %v429
        %443 = vmatprep.subr.bf16.mxu0 0
        %444 = vmatpush1.bf16.msra.mxu0 %v430
        %445 = vmatprep.subr.bf16.mxu0 0
        %446 = vmatpush1.bf16.msra.mxu0 %v431
        %447 = vmatprep.subr.bf16.mxu0 0
        %448 = vmatpush1.bf16.msra.mxu0 %v432
        %449 = vmatprep.subr.bf16.mxu0 0
        %450 = vmatpush1.bf16.msra.mxu0 0
        %451 = vmatprep.subr.bf16.mxu0 0
        %452 = vmatpush1.bf16.msra.mxu0 0
        %453 = vmatprep.subr.bf16.mxu0 0
        %454 = vmatpush1.bf16.msra.mxu0 0
        %455 = vmatprep.subr.bf16.mxu0 0
        %456 = vmatpush1.bf16.msra.mxu0 0
        %457 = vmatprep.subr.bf16.mxu0 0
        %458 = vmatpush1.bf16.msra.mxu0 0
        %459 = vmatprep.subr.bf16.mxu0 0
        %460 = vmatpush1.bf16.msra.mxu0 0
        %461 = vmatprep.subr.bf16.mxu0 0
        %462 = vmatpush1.bf16.msra.mxu0 0
        %463 = vmatprep.subr.bf16.mxu0 0
        %464 = vmatpush1.bf16.msra.mxu0 0
        %465 = vmatprep.subr.bf16.mxu0 0
        %466 = vmatpush1.bf16.msra.mxu0 0
        %467 = vmatprep.subr.bf16.mxu0 0
        %468 = vmatpush1.bf16.msra.mxu0 0
        %469 = vmatprep.subr.bf16.mxu0 0
        %470 = vmatpush1.bf16.msra.mxu0 0
        %471 = vmatprep.subr.bf16.mxu0 0
        %472 = vmatpush1.bf16.msra.mxu0 0
        %473 = vmatprep.mubr.bf16.mxu0 0
        %474 = vmatmul.mubr.bf16.gmra.mrb[0].mxu0 %v439
        %v475 = vpop.f32.mrb[0].mxu0
        %v476 = vadd.f32 %v406, %v475
        %v477 = vpop.f32.mrb[0].mxu0
        %v478 = vpop.f32.mrb[0].mxu0
        %v479 = vadd.f32 %v406, %v478
        %v480 = vpop.f32.mrb[0].mxu0
        %481 = vdwg.mxu0
        %v482 = vmax.f32 %v476, 0.0
        %v483 = vmax.f32 %v479, 0.0
        %v484 = vpack.c.bf16 %v483, %v482
        %v485 = vld [vmem:[#allocation6] sm:$0xf]
        %v486 = vld [vmem:[#allocation6 + $0x4] sm:$0xf]
        %v487 = vld [vmem:[#allocation6 + $0x8] sm:$0xf]
        %v488 = vld [vmem:[#allocation6 + $0xc] sm:$0xf]
        %v489 = vld [vmem:[#allocation6 + $0x10] sm:$0xf]
        %v490 = vld [vmem:[#allocation6 + $0x14] sm:$0xf]
        %v491 = vld [vmem:[#allocation6 + $0x18] sm:$0xf]
        %v492 = vld [vmem:[#allocation6 + $0x1c] sm:$0xf]
        %v493 = vld [vmem:[#allocation7] sm:$0x1]
        %v495 = vlaneseq
        %v496 = vshrl.u32 %v495, 7
        %v497 = vsub.s32 0, %v496
        %v498 = vrot.slane %v493, %v497
        %v508 = vunpack.c.l.b16 %v485
        %v509 = vunpack.c.l.b16 %v486
        %v510 = vunpack.c.l.b16 %v487
        %v511 = vunpack.c.l.b16 %v488
        %v512 = vunpack.c.l.b16 %v489
        %v513 = vunpack.c.l.b16 %v490
        %v514 = vunpack.c.l.b16 %v491
        %v515 = vunpack.c.l.b16 %v492
        %v516 = vpack.c.b16 %v509, %v508
        %v517 = vpack.c.b16 %v511, %v510
        %v518 = vpack.c.b16 %v513, %v512
        %v519 = vpack.c.b16 %v515, %v514
        %v525 = vsel %vm437, %v484, 0
        %527 = vmatprep.subr.bf16.mxu0 0
        %528 = vmatpush1.bf16.msra.mxu0 %v516
        %529 = vmatprep.subr.bf16.mxu0 0
        %530 = vmatpush1.bf16.msra.mxu0 %v517
        %531 = vmatprep.subr.bf16.mxu0 0
        %532 = vmatpush1.bf16.msra.mxu0 %v518
        %533 = vmatprep.subr.bf16.mxu0 0
        %534 = vmatpush1.bf16.msra.mxu0 %v519
        %535 = vmatprep.subr.bf16.mxu0 0
        %536 = vmatpush1.bf16.msra.mxu0 0
        %537 = vmatprep.subr.bf16.mxu0 0
        %538 = vmatpush1.bf16.msra.mxu0 0
        %539 = vmatprep.subr.bf16.mxu0 0
        %540 = vmatpush1.bf16.msra.mxu0 0
        %541 = vmatprep.subr.bf16.mxu0 0
        %542 = vmatpush1.bf16.msra.mxu0 0
        %543 = vmatprep.subr.bf16.mxu0 0
        %544 = vmatpush1.bf16.msra.mxu0 0
        %545 = vmatprep.subr.bf16.mxu0 0
        %546 = vmatpush1.bf16.msra.mxu0 0
        %547 = vmatprep.subr.bf16.mxu0 0
        %548 = vmatpush1.bf16.msra.mxu0 0
        %549 = vmatprep.subr.bf16.mxu0 0
        %550 = vmatpush1.bf16.msra.mxu0 0
        %551 = vmatprep.subr.bf16.mxu0 0
        %552 = vmatpush1.bf16.msra.mxu0 0
        %553 = vmatprep.subr.bf16.mxu0 0
        %554 = vmatpush1.bf16.msra.mxu0 0
        %555 = vmatprep.subr.bf16.mxu0 0
        %556 = vmatpush1.bf16.msra.mxu0 0
        %557 = vmatprep.subr.bf16.mxu0 0
        %558 = vmatpush1.bf16.msra.mxu0 0
        %559 = vmatprep.mubr.bf16.mxu0 0
        %560 = vmatmul.mubr.bf16.gmra.mrb[0].mxu0 %v525
        %v561 = vpop.f32.mrb[0].mxu0
        %v562 = vadd.f32 %v498, %v561
        %v563 = vpop.f32.mrb[0].mxu0
        %v564 = vpop.f32.mrb[0].mxu0
        %v565 = vadd.f32 %v498, %v564
        %v566 = vpop.f32.mrb[0].mxu0
        %567 = vdwg.mxu0
        %v568 = vmax.f32 %v562, 0.0
        %v569 = vmax.f32 %v565, 0.0
        %v570 = vpack.c.bf16 %v569, %v568
        %v571 = vld [vmem:[#allocation9] sm:$0xf]
        %v572 = vld [vmem:[#allocation9 + $0x4] sm:$0xf]
        %v573 = vld [vmem:[#allocation9 + $0x8] sm:$0xf]
        %v574 = vld [vmem:[#allocation9 + $0xc] sm:$0xf]
        %v575 = vld [vmem:[#allocation9 + $0x10] sm:$0xf]
        %v576 = vld [vmem:[#allocation9 + $0x14] sm:$0xf]
        %v577 = vld [vmem:[#allocation9 + $0x18] sm:$0xf]
        %v578 = vld [vmem:[#allocation9 + $0x1c] sm:$0xf]
        %v579 = vld [vmem:[#allocation9 + $0x20] sm:$0xf]
        %v580 = vld [vmem:[#allocation9 + $0x24] sm:$0xf]
        %v581 = vld [vmem:[#allocation9 + $0x28] sm:$0xf]
        %v582 = vld [vmem:[#allocation9 + $0x2c] sm:$0xf]
        %v583 = vld [vmem:[#allocation9 + $0x30] sm:$0xf]
        %v584 = vld [vmem:[#allocation9 + $0x34] sm:$0xf]
        %v585 = vld [vmem:[#allocation9 + $0x38] sm:$0xf]
        %v586 = vld [vmem:[#allocation9 + $0x3c] sm:$0xf]
        %v587 = vld [vmem:[#allocation10] sm:$0x1]
        %v589 = vlaneseq
        %v590 = vshrl.u32 %v589, 7
        %v591 = vsub.s32 0, %v590
        %v592 = vrot.slane %v587, %v591
        %v610 = vunpack.c.l.b16 %v571
        %v611 = vunpack.c.l.b16 %v572
        %v612 = vunpack.c.l.b16 %v573
        %v613 = vunpack.c.l.b16 %v574
        %v614 = vunpack.c.l.b16 %v575
        %v615 = vunpack.c.l.b16 %v576
        %v616 = vunpack.c.l.b16 %v577
        %v617 = vunpack.c.l.b16 %v578
        %v618 = vunpack.c.l.b16 %v579
        %v619 = vunpack.c.l.b16 %v580
        %v620 = vunpack.c.l.b16 %v581
        %v621 = vunpack.c.l.b16 %v582
        %v622 = vunpack.c.l.b16 %v583
        %v623 = vunpack.c.l.b16 %v584
        %v624 = vunpack.c.l.b16 %v585
        %v625 = vunpack.c.l.b16 %v586
        %v626 = vpack.c.b16 %v611, %v610
        %v627 = vpack.c.b16 %v613, %v612
        %v628 = vpack.c.b16 %v615, %v614
        %v629 = vpack.c.b16 %v617, %v616
        %v630 = vpack.c.b16 %v619, %v618
        %v631 = vpack.c.b16 %v621, %v620
        %v632 = vpack.c.b16 %v623, %v622
        %v633 = vpack.c.b16 %v625, %v624
        %642 = vmatprep.subr.bf16.mxu0 0
        %643 = vmatpush1.bf16.msra.mxu0 %v626
        %644 = vmatprep.subr.bf16.mxu0 0
        %645 = vmatpush1.bf16.msra.mxu0 %v627
        %646 = vmatprep.subr.bf16.mxu0 0
        %647 = vmatpush1.bf16.msra.mxu0 %v628
        %648 = vmatprep.subr.bf16.mxu0 0
        %649 = vmatpush1.bf16.msra.mxu0 %v629
        %650 = vmatprep.subr.bf16.mxu0 0
        %651 = vmatpush1.bf16.msra.mxu0 %v630
        %652 = vmatprep.subr.bf16.mxu0 0
        %653 = vmatpush1.bf16.msra.mxu0 %v631
        %654 = vmatprep.subr.bf16.mxu0 0
        %655 = vmatpush1.bf16.msra.mxu0 %v632
        %656 = vmatprep.subr.bf16.mxu0 0
        %657 = vmatpush1.bf16.msra.mxu0 %v633
        %658 = vmatprep.subr.bf16.mxu0 0
        %659 = vmatpush1.bf16.msra.mxu0 0
        %660 = vmatprep.subr.bf16.mxu0 0
        %661 = vmatpush1.bf16.msra.mxu0 0
        %662 = vmatprep.subr.bf16.mxu0 0
        %663 = vmatpush1.bf16.msra.mxu0 0
        %664 = vmatprep.subr.bf16.mxu0 0
        %665 = vmatpush1.bf16.msra.mxu0 0
        %666 = vmatprep.subr.bf16.mxu0 0
        %667 = vmatpush1.bf16.msra.mxu0 0
        %668 = vmatprep.subr.bf16.mxu0 0
        %669 = vmatpush1.bf16.msra.mxu0 0
        %670 = vmatprep.subr.bf16.mxu0 0
        %671 = vmatpush1.bf16.msra.mxu0 0
        %672 = vmatprep.subr.bf16.mxu0 0
        %673 = vmatpush1.bf16.msra.mxu0 0
        %674 = vmatprep.mubr.bf16.mxu0 0
        %675 = vmatmul.mubr.bf16.gmra.mrb[0].mxu0 %v570
        %v676 = vpop.f32.mrb[0].mxu0
        %v677 = vadd.f32 %v592, %v676
        %v678 = vpop.f32.mrb[0].mxu0
        %v679 = vpop.f32.mrb[0].mxu0
        %v680 = vadd.f32 %v592, %v679
        %v681 = vpop.f32.mrb[0].mxu0
        %682 = vdwg.mxu0
        %v683 = vmax.f32 %v677, 0.0
        %v684 = vmax.f32 %v680, 0.0
        %v685 = vmax.f32 %v683, %v684
        %v686 = vrot.slane %v685, 4
        %v687 = vmax.f32 %v685, %v686
        %v688 = vrot.slane %v687, 2
        %v689 = vmax.f32 %v687, %v688
        %v690 = vrot.slane %v689, 1
        %v691 = vmax.f32 %v689, %v690
        %v692 = vld [vmem:[%s384] sm:$0x1]
        %v693 = vmax.f32 %v692, %v691
        %694 = vst [vmem:[%s384] sm:$0x1] %v693
        %p695 = scmp.lt.s32.totalorder %s26, 1
        %s696 = scalar_select %p695, %s26, 1
        %s697 = scalar_lea.vmem %s7, %s696
        // Predicated region
        $region77: #{stnkd_forward.2} parent=47 // pred_check
          %p698 = pneg %p206
        $region78: #{stnkd_forward.2} parent=47 // pred_check_branch
          %700 = sbr.rel (%p698) target = $region80
        $region79: #{stnkd_forward.2} parent=47 // pred_region
          _
        $region80: #{stnkd_forward.2} parent=47 // pred_fallthru
          _
      $region48: #{stnkd_forward.2} parent=5 // pred_fallthru
        _
      %p701 = scmp.le.s32.totalorder 2, %s17
      // Predicated region
      $region81: #{stnkd_forward.2} parent=5 // pred_check
        %p702 = pneg %p701
      $region82: #{stnkd_forward.2} parent=5 // pred_check_branch
        %704 = sbr.rel (%p702) target = $region84
      $region83: #{stnkd_forward.2} parent=5 // pred_region
        %s705 = ssub.s32 %s17, 2
        // Predicated region
        $region85: #{stnkd_forward.2} parent=83 // pred_check
          %p706 = pneg %p212
        $region86: #{stnkd_forward.2} parent=83 // pred_check_branch
          %708 = sbr.rel (%p706) target = $region88
        $region87: #{stnkd_forward.2} parent=83 // pred_region
          %p709 = scmp.lt.s32.totalorder %s28, 1
          %s710 = scalar_select %p709, %s28, 1
          %s711 = scalar_lea.vmem %s7, %s710
        $region88: #{stnkd_forward.2} parent=83 // pred_fallthru
          _
      $region84: #{stnkd_forward.2} parent=5 // pred_fallthru
        _
    $region6: #{stnkd_forward.2} parent=1 // loop_footer
      %s21 = sadd.s32 1, %s17
    $region7: #{stnkd_forward.2} parent=1 // loop_footer_branch
      %16 = sbr.rel target = $region3
    $region8: #{stnkd_forward.2} parent=1 // loop_exit
      _
    %712 = vsyncpa [#allocation3], 1
    %s713 = scalar_lea.sflag [#allocation3], 1
    %714 = vsyncpa %s713, 1
    %715 = vsyncpa [#allocation5], 1
    %716 = vsyncpa [#allocation8], 1
    %717 = vsyncpa [#allocation11], 1

// kernel: stnkd_forward.3
$region0: #{stnkd_forward.3}
  #allocation0 [shape = 'u32[]', space=smem, size = 0x4, offset = 0x4, fixed_abs, tag = 'smem constant byte address 0x4 - core index']
  #allocation1 [shape = 'u32[144,128]{1,0:T(1,128)}', space=vmem, size = 0x12000, scoped, tag = 'internal scratch']
  %s0 = inlined_call_operand.vmem [shape: f32[2,128], index: 0, kind: input, shape index: {}]
  %s1 = inlined_call_operand.hbm [shape: bf16[128,512], index: 1, kind: input, shape index: {}]
  %s2 = inlined_call_operand.hbm [shape: f32[1,512], index: 2, kind: input, shape index: {}]
  %s3 = inlined_call_operand.hbm [shape: bf16[512,256], index: 3, kind: input, shape index: {}]
  %s4 = inlined_call_operand.hbm [shape: f32[1,256], index: 4, kind: input, shape index: {}]
  %s5 = inlined_call_operand.hbm [shape: bf16[256,4096], index: 5, kind: input, shape index: {}]
  %s6 = inlined_call_operand.hbm [shape: f32[1,4096], index: 6, kind: input, shape index: {}]
  %s7 = inlined_call_operand.vmem [shape: f32[2,4096], index: 7, kind: output, shape index: {}]
  %s8 = sld [smem:[#allocation0]]
  $region62: #{stnkd_forward.3} parent=0
    _
  %s10 = ssub.s32 1, %s8
  %s11 = scalar_select 0, %s10, %s8
  $region1: #{stnkd_forward.3} parent=0
    #allocation2 [shape = 'u8[131072]{0}', space=vmem, size = 0x20000, scoped, tag = 'input window, operand 1, single buffered']
    #allocation3 [shape = 's32[1]{0}', space=sflag, size = 0x4, scoped, tag = 'scoped memory for stnkd_forward.3']
    #allocation4 [shape = 'u8[2048]{0}', space=vmem, size = 0x800, scoped, tag = 'input window, operand 2, single buffered']
    #allocation5 [shape = 's32[1]{0}', space=sflag, size = 0x4, scoped, tag = 'scoped memory for stnkd_forward.3']
    #allocation6 [shape = 'u8[262144]{0}', space=vmem, size = 0x40000, scoped, tag = 'input window, operand 3, single buffered']
    #allocation7 [shape = 'u8[1024]{0}', space=vmem, size = 0x400, scoped, tag = 'input window, operand 4, single buffered']
    #allocation8 [shape = 's32[1]{0}', space=sflag, size = 0x4, scoped, tag = 'scoped memory for stnkd_forward.3']
    #allocation9 [shape = 'u8[2097152]{0}', space=vmem, size = 0x200000, scoped, tag = 'input window, operand 5, single buffered']
    #allocation10 [shape = 'u8[16384]{0}', space=vmem, size = 0x4000, scoped, tag = 'input window, operand 6, single buffered']
    #allocation11 [shape = 's32[1]{0}', space=sflag, size = 0x4, scoped, tag = 'scoped memory for stnkd_forward.3']
    %12 = vsyncpa [#allocation3], 0
    %13 = vsyncpa [#allocation5], 0
    %14 = vsyncpa [#allocation8], 0
    %15 = vsyncpa [#allocation11], 0
    // Predicated region
    $region2: #{stnkd_forward.3} parent=1 // pred_check
      _
    $region3: #{stnkd_forward.3} parent=1 // pred_check_branch
      %17 = sbr.rel (0) target = $region5
    $region4: #{stnkd_forward.3} parent=1 // pred_region
      _
    $region5: #{stnkd_forward.3} parent=1 // pred_fallthru
      _
    // Predicated region
    $region6: #{stnkd_forward.3} parent=1 // pred_check
      _
    $region7: #{stnkd_forward.3} parent=1 // pred_check_branch
      %19 = sbr.rel (0) target = $region9
    $region8: #{stnkd_forward.3} parent=1 // pred_region
      %s21 = ssub.s32 4096, 4096
      %22 = vsyncadd [#allocation3], %s21
      %s23 = sshll.u32 [#allocation2], 4
      %s24 = int_to_ptr.vmem [resolvable:$true] %s23
      %29 = dma.hbm_to_vmem [thread:$0]  %s1, 4096, %s24, [#allocation3], 256, 256, 16
    $region9: #{stnkd_forward.3} parent=1 // pred_fallthru
      _
    // Predicated region
    $region10: #{stnkd_forward.3} parent=1 // pred_check
      _
    $region11: #{stnkd_forward.3} parent=1 // pred_check_branch
      %31 = sbr.rel (0) target = $region13
    $region12: #{stnkd_forward.3} parent=1 // pred_region
      %s33 = ssub.s32 64, 64
      %34 = vsyncadd [#allocation5], %s33
      %s36 = sshll.u32 [#allocation4], 4
      %s37 = int_to_ptr.vmem [resolvable:$true] %s36
      %39 = dma.hbm_to_vmem [thread:$0]  %s2, 64, %s37, [#allocation5]
    $region13: #{stnkd_forward.3} parent=1 // pred_fallthru
      _
    // Predicated region
    $region14: #{stnkd_forward.3} parent=1 // pred_check
      _
    $region15: #{stnkd_forward.3} parent=1 // pred_check_branch
      %41 = sbr.rel (0) target = $region17
    $region16: #{stnkd_forward.3} parent=1 // pred_region
      %s43 = ssub.s32 8192, 8192
      %44 = vsyncadd [#allocation5], %s43
      %s45 = sshll.u32 [#allocation6], 4
      %s46 = int_to_ptr.vmem [resolvable:$true] %s45
      %51 = dma.hbm_to_vmem [thread:$0]  %s3, 8192, %s46, [#allocation5], 128, 128, 8
    $region17: #{stnkd_forward.3} parent=1 // pred_fallthru
      _
    // Predicated region
    $region18: #{stnkd_forward.3} parent=1 // pred_check
      _
    $region19: #{stnkd_forward.3} parent=1 // pred_check_branch
      %53 = sbr.rel (0) target = $region21
    $region20: #{stnkd_forward.3} parent=1 // pred_region
      %s55 = ssub.s32 32, 32
      %56 = vsyncadd [#allocation8], %s55
      %s58 = sshll.u32 [#allocation7], 4
      %s59 = int_to_ptr.vmem [resolvable:$true] %s58
      %61 = dma.hbm_to_vmem [thread:$0]  %s4, 32, %s59, [#allocation8]
    $region21: #{stnkd_forward.3} parent=1 // pred_fallthru
      _
    // Predicated region
    $region22: #{stnkd_forward.3} parent=1 // pred_check
      _
    $region23: #{stnkd_forward.3} parent=1 // pred_check_branch
      %63 = sbr.rel (0) target = $region25
    $region24: #{stnkd_forward.3} parent=1 // pred_region
      %s65 = ssub.s32 65536, 65536
      %66 = vsyncadd [#allocation8], %s65
      %s67 = sshll.u32 [#allocation9], 4
      %s68 = int_to_ptr.vmem [resolvable:$true] %s67
      %73 = dma.hbm_to_vmem [thread:$0]  %s5, 65536, %s68, [#allocation8], 2048, 2048, 128
    $region25: #{stnkd_forward.3} parent=1 // pred_fallthru
      _
    // Predicated region
    $region26: #{stnkd_forward.3} parent=1 // pred_check
      _
    $region27: #{stnkd_forward.3} parent=1 // pred_check_branch
      %75 = sbr.rel (0) target = $region29
    $region28: #{stnkd_forward.3} parent=1 // pred_region
      %s77 = ssub.s32 512, 512
      %78 = vsyncadd [#allocation11], %s77
      %s80 = sshll.u32 [#allocation10], 4
      %s81 = int_to_ptr.vmem [resolvable:$true] %s80
      %83 = dma.hbm_to_vmem [thread:$0]  %s6, 512, %s81, [#allocation11]
    $region29: #{stnkd_forward.3} parent=1 // pred_fallthru
      _
    // Predicated region
    $region30: #{stnkd_forward.3} parent=1 // pred_check
      _
    $region31: #{stnkd_forward.3} parent=1 // pred_check_branch
      %85 = sbr.rel (0) target = $region33
    $region32: #{stnkd_forward.3} parent=1 // pred_region
      %86 = dma.done [#allocation3], 4096
    $region33: #{stnkd_forward.3} parent=1 // pred_fallthru
      _
    // Predicated region
    $region34: #{stnkd_forward.3} parent=1 // pred_check
      _
    $region35: #{stnkd_forward.3} parent=1 // pred_check_branch
      %88 = sbr.rel (0) target = $region37
    $region36: #{stnkd_forward.3} parent=1 // pred_region
      %89 = dma.done [#allocation5], 64
    $region37: #{stnkd_forward.3} parent=1 // pred_fallthru
      _
    // Predicated region
    $region38: #{stnkd_forward.3} parent=1 // pred_check
      _
    $region39: #{stnkd_forward.3} parent=1 // pred_check_branch
      %91 = sbr.rel (0) target = $region41
    $region40: #{stnkd_forward.3} parent=1 // pred_region
      %92 = dma.done [#allocation5], 8192
    $region41: #{stnkd_forward.3} parent=1 // pred_fallthru
      _
    // Predicated region
    $region42: #{stnkd_forward.3} parent=1 // pred_check
      _
    $region43: #{stnkd_forward.3} parent=1 // pred_check_branch
      %94 = sbr.rel (0) target = $region45
    $region44: #{stnkd_forward.3} parent=1 // pred_region
      %95 = dma.done [#allocation8], 32
    $region45: #{stnkd_forward.3} parent=1 // pred_fallthru
      _
    // Predicated region
    $region46: #{stnkd_forward.3} parent=1 // pred_check
      _
    $region47: #{stnkd_forward.3} parent=1 // pred_check_branch
      %97 = sbr.rel (0) target = $region49
    $region48: #{stnkd_forward.3} parent=1 // pred_region
      %98 = dma.done [#allocation8], 65536
    $region49: #{stnkd_forward.3} parent=1 // pred_fallthru
      _
    // Predicated region
    $region50: #{stnkd_forward.3} parent=1 // pred_check
      _
    $region51: #{stnkd_forward.3} parent=1 // pred_check_branch
      %100 = sbr.rel (0) target = $region53
    $region52: #{stnkd_forward.3} parent=1 // pred_region
      %101 = dma.done [#allocation11], 512
    $region53: #{stnkd_forward.3} parent=1 // pred_fallthru
      _
    %v103 = vld [vmem:[%s0] sm:$0x3]
    %v104 = vpack.c.bf16 %v103, %v103
    %v105 = vld [vmem:[#allocation2] sm:$0xff]
    %v106 = vld [vmem:[#allocation2 + $0x8] sm:$0xff]
    %v107 = vld [vmem:[#allocation2 + $0x10] sm:$0xff]
    %v108 = vld [vmem:[#allocation2 + $0x18] sm:$0xff]
    %v109 = vld [vmem:[#allocation2 + $0x20] sm:$0xff]
    %v110 = vld [vmem:[#allocation2 + $0x28] sm:$0xff]
    %v111 = vld [vmem:[#allocation2 + $0x30] sm:$0xff]
    %v112 = vld [vmem:[#allocation2 + $0x38] sm:$0xff]
    %v113 = vld [vmem:[#allocation2 + $0x40] sm:$0xff]
    %v114 = vld [vmem:[#allocation2 + $0x48] sm:$0xff]
    %v115 = vld [vmem:[#allocation2 + $0x50] sm:$0xff]
    %v116 = vld [vmem:[#allocation2 + $0x58] sm:$0xff]
    %v117 = vld [vmem:[#allocation2 + $0x60] sm:$0xff]
    %v118 = vld [vmem:[#allocation2 + $0x68] sm:$0xff]
    %v119 = vld [vmem:[#allocation2 + $0x70] sm:$0xff]
    %v120 = vld [vmem:[#allocation2 + $0x78] sm:$0xff]
    %v121 = vld [vmem:[#allocation2 + $0x80] sm:$0xff]
    %v122 = vld [vmem:[#allocation2 + $0x88] sm:$0xff]
    %v123 = vld [vmem:[#allocation2 + $0x90] sm:$0xff]
    %v124 = vld [vmem:[#allocation2 + $0x98] sm:$0xff]
    %v125 = vld [vmem:[#allocation2 + $0xa0] sm:$0xff]
    %v126 = vld [vmem:[#allocation2 + $0xa8] sm:$0xff]
    %v127 = vld [vmem:[#allocation2 + $0xb0] sm:$0xff]
    %v128 = vld [vmem:[#allocation2 + $0xb8] sm:$0xff]
    %v129 = vld [vmem:[#allocation2 + $0xc0] sm:$0xff]
    %v130 = vld [vmem:[#allocation2 + $0xc8] sm:$0xff]
    %v131 = vld [vmem:[#allocation2 + $0xd0] sm:$0xff]
    %v132 = vld [vmem:[#allocation2 + $0xd8] sm:$0xff]
    %v133 = vld [vmem:[#allocation2 + $0xe0] sm:$0xff]
    %v134 = vld [vmem:[#allocation2 + $0xe8] sm:$0xff]
    %v135 = vld [vmem:[#allocation2 + $0xf0] sm:$0xff]
    %v136 = vld [vmem:[#allocation2 + $0xf8] sm:$0xff]
    %v137 = vld [vmem:[#allocation4] sm:$0xf]
    %v139 = vlaneseq
    %v140 = vshrl.u32 %v139, 7
    %v141 = vsub.s32 0, %v140
    %v142 = vrot.slane %v137, %v141
    %v143 = vlaneseq
    %v144 = vshrl.u32 %v143, 7
    %v145 = vsub.s32 1, %v144
    %v146 = vrot.slane %v137, %v145
    %v147 = vlaneseq
    %v148 = vshrl.u32 %v147, 7
    %v149 = vsub.s32 2, %v148
    %v150 = vrot.slane %v137, %v149
    %v151 = vlaneseq
    %v152 = vshrl.u32 %v151, 7
    %v153 = vsub.s32 3, %v152
    %v154 = vrot.slane %v137, %v153
    %v191 = vunpack.c.l.b16 %v105
    %v192 = vunpack.c.h.b16 %v105
    %v193 = vunpack.c.l.b16 %v106
    %v194 = vunpack.c.h.b16 %v106
    %v195 = vunpack.c.l.b16 %v107
    %v196 = vunpack.c.h.b16 %v107
    %v197 = vunpack.c.l.b16 %v108
    %v198 = vunpack.c.h.b16 %v108
    %v199 = vunpack.c.l.b16 %v109
    %v200 = vunpack.c.h.b16 %v109
    %v201 = vunpack.c.l.b16 %v110
    %v202 = vunpack.c.h.b16 %v110
    %v203 = vunpack.c.l.b16 %v111
    %v204 = vunpack.c.h.b16 %v111
    %v205 = vunpack.c.l.b16 %v112
    %v206 = vunpack.c.h.b16 %v112
    %v207 = vunpack.c.l.b16 %v113
    %v208 = vunpack.c.h.b16 %v113
    %v209 = vunpack.c.l.b16 %v114
    %v210 = vunpack.c.h.b16 %v114
    %v211 = vunpack.c.l.b16 %v115
    %v212 = vunpack.c.h.b16 %v115
    %v213 = vunpack.c.l.b16 %v116
    %v214 = vunpack.c.h.b16 %v116
    %v215 = vunpack.c.l.b16 %v117
    %v216 = vunpack.c.h.b16 %v117
    %v217 = vunpack.c.l.b16 %v118
    %v218 = vunpack.c.h.b16 %v118
    %v219 = vunpack.c.l.b16 %v119
    %v220 = vunpack.c.h.b16 %v119
    %v221 = vunpack.c.l.b16 %v120
    %v222 = vunpack.c.h.b16 %v120
    %v223 = vunpack.c.l.b16 %v121
    %v224 = vunpack.c.h.b16 %v121
    %v225 = vunpack.c.l.b16 %v122
    %v226 = vunpack.c.h.b16 %v122
    %v227 = vunpack.c.l.b16 %v123
    %v228 = vunpack.c.h.b16 %v123
    %v229 = vunpack.c.l.b16 %v124
    %v230 = vunpack.c.h.b16 %v124
    %v231 = vunpack.c.l.b16 %v125
    %v232 = vunpack.c.h.b16 %v125
    %v233 = vunpack.c.l.b16 %v126
    %v234 = vunpack.c.h.b16 %v126
    %v235 = vunpack.c.l.b16 %v127
    %v236 = vunpack.c.h.b16 %v127
    %v237 = vunpack.c.l.b16 %v128
    %v238 = vunpack.c.h.b16 %v128
    %v239 = vunpack.c.l.b16 %v129
    %v240 = vunpack.c.h.b16 %v129
    %v241 = vunpack.c.l.b16 %v130
    %v242 = vunpack.c.h.b16 %v130
    %v243 = vunpack.c.l.b16 %v131
    %v244 = vunpack.c.h.b16 %v131
    %v245 = vunpack.c.l.b16 %v132
    %v246 = vunpack.c.h.b16 %v132
    %v247 = vunpack.c.l.b16 %v133
    %v248 = vunpack.c.h.b16 %v133
    %v249 = vunpack.c.l.b16 %v134
    %v250 = vunpack.c.h.b16 %v134
    %v251 = vunpack.c.l.b16 %v135
    %v252 = vunpack.c.h.b16 %v135
    %v253 = vunpack.c.l.b16 %v136
    %v254 = vunpack.c.h.b16 %v136
    %v255 = vpack.c.b16 %v195, %v191
    %v256 = vpack.c.b16 %v196, %v192
    %v257 = vpack.c.b16 %v197, %v193
    %v258 = vpack.c.b16 %v198, %v194
    %v259 = vpack.c.b16 %v203, %v199
    %v260 = vpack.c.b16 %v204, %v200
    %v261 = vpack.c.b16 %v205, %v201
    %v262 = vpack.c.b16 %v206, %v202
    %v263 = vpack.c.b16 %v211, %v207
    %v264 = vpack.c.b16 %v212, %v208
    %v265 = vpack.c.b16 %v213, %v209
    %v266 = vpack.c.b16 %v214, %v210
    %v267 = vpack.c.b16 %v219, %v215
    %v268 = vpack.c.b16 %v220, %v216
    %v269 = vpack.c.b16 %v221, %v217
    %v270 = vpack.c.b16 %v222, %v218
    %v271 = vpack.c.b16 %v227, %v223
    %v272 = vpack.c.b16 %v228, %v224
    %v273 = vpack.c.b16 %v229, %v225
    %v274 = vpack.c.b16 %v230, %v226
    %v275 = vpack.c.b16 %v235, %v231
    %v276 = vpack.c.b16 %v236, %v232
    %v277 = vpack.c.b16 %v237, %v233
    %v278 = vpack.c.b16 %v238, %v234
    %v279 = vpack.c.b16 %v243, %v239
    %v280 = vpack.c.b16 %v244, %v240
    %v281 = vpack.c.b16 %v245, %v241
    %v282 = vpack.c.b16 %v246, %v242
    %v283 = vpack.c.b16 %v251, %v247
    %v284 = vpack.c.b16 %v252, %v248
    %v285 = vpack.c.b16 %v253, %v249
    %v286 = vpack.c.b16 %v254, %v250
    %319 = vmatprep.subr.bf16.mxu0 %v256
    %320 = vmatpush1.bf16.msra.mxu0 %v255
    %321 = vmatprep.subr.bf16.mxu0 %v260
    %322 = vmatpush1.bf16.msra.mxu0 %v259
    %323 = vmatprep.subr.bf16.mxu0 %v264
    %324 = vmatpush1.bf16.msra.mxu0 %v263
    %325 = vmatprep.subr.bf16.mxu0 %v268
    %326 = vmatpush1.bf16.msra.mxu0 %v267
    %327 = vmatprep.subr.bf16.mxu0 %v272
    %328 = vmatpush1.bf16.msra.mxu0 %v271
    %329 = vmatprep.subr.bf16.mxu0 %v276
    %330 = vmatpush1.bf16.msra.mxu0 %v275
    %331 = vmatprep.subr.bf16.mxu0 %v280
    %332 = vmatpush1.bf16.msra.mxu0 %v279
    %333 = vmatprep.subr.bf16.mxu0 %v284
    %334 = vmatpush1.bf16.msra.mxu0 %v283
    %335 = vmatprep.subr.bf16.mxu0 0
    %336 = vmatpush1.bf16.msra.mxu0 0
    %337 = vmatprep.subr.bf16.mxu0 0
    %338 = vmatpush1.bf16.msra.mxu0 0
    %339 = vmatprep.subr.bf16.mxu0 0
    %340 = vmatpush1.bf16.msra.mxu0 0
    %341 = vmatprep.subr.bf16.mxu0 0
    %342 = vmatpush1.bf16.msra.mxu0 0
    %343 = vmatprep.subr.bf16.mxu0 0
    %344 = vmatpush1.bf16.msra.mxu0 0
    %345 = vmatprep.subr.bf16.mxu0 0
    %346 = vmatpush1.bf16.msra.mxu0 0
    %347 = vmatprep.subr.bf16.mxu0 0
    %348 = vmatpush1.bf16.msra.mxu0 0
    %349 = vmatprep.subr.bf16.mxu0 0
    %350 = vmatpush1.bf16.msra.mxu0 0
    %351 = vmatprep.mubr.bf16.mxu0 0
    %352 = vmatmul.mubr.bf16.gmra.mrb[0].mxu0 %v104
    %v353 = vpop.f32.mrb[0].mxu0
    %v354 = vadd.f32 %v142, %v353
    %v355 = vpop.f32.mrb[0].mxu0
    %v356 = vadd.f32 %v146, %v355
    %v357 = vpop.f32.mrb[0].mxu0
    %v358 = vpop.f32.mrb[0].mxu0
    %359 = vdwg.mxu0
    %360 = vmatprep.subr.bf16.mxu0 %v258
    %361 = vmatpush1.bf16.msra.mxu0 %v257
    %362 = vmatprep.subr.bf16.mxu0 %v262
    %363 = vmatpush1.bf16.msra.mxu0 %v261
    %364 = vmatprep.subr.bf16.mxu0 %v266
    %365 = vmatpush1.bf16.msra.mxu0 %v265
    %366 = vmatprep.subr.bf16.mxu0 %v270
    %367 = vmatpush1.bf16.msra.mxu0 %v269
    %368 = vmatprep.subr.bf16.mxu0 %v274
    %369 = vmatpush1.bf16.msra.mxu0 %v273
    %370 = vmatprep.subr.bf16.mxu0 %v278
    %371 = vmatpush1.bf16.msra.mxu0 %v277
    %372 = vmatprep.subr.bf16.mxu0 %v282
    %373 = vmatpush1.bf16.msra.mxu0 %v281
    %374 = vmatprep.subr.bf16.mxu0 %v286
    %375 = vmatpush1.bf16.msra.mxu0 %v285
    %376 = vmatprep.subr.bf16.mxu0 0
    %377 = vmatpush1.bf16.msra.mxu0 0
    %378 = vmatprep.subr.bf16.mxu0 0
    %379 = vmatpush1.bf16.msra.mxu0 0
    %380 = vmatprep.subr.bf16.mxu0 0
    %381 = vmatpush1.bf16.msra.mxu0 0
    %382 = vmatprep.subr.bf16.mxu0 0
    %383 = vmatpush1.bf16.msra.mxu0 0
    %384 = vmatprep.subr.bf16.mxu0 0
    %385 = vmatpush1.bf16.msra.mxu0 0
    %386 = vmatprep.subr.bf16.mxu0 0
    %387 = vmatpush1.bf16.msra.mxu0 0
    %388 = vmatprep.subr.bf16.mxu0 0
    %389 = vmatpush1.bf16.msra.mxu0 0
    %390 = vmatprep.subr.bf16.mxu0 0
    %391 = vmatpush1.bf16.msra.mxu0 0
    %392 = vmatprep.mubr.bf16.mxu0 0
    %393 = vmatmul.mubr.bf16.gmra.mrb[0].mxu0 %v104
    %v394 = vpop.f32.mrb[0].mxu0
    %v395 = vadd.f32 %v150, %v394
    %v396 = vpop.f32.mrb[0].mxu0
    %v397 = vadd.f32 %v154, %v396
    %v398 = vpop.f32.mrb[0].mxu0
    %v399 = vpop.f32.mrb[0].mxu0
    %400 = vdwg.mxu0
    %v401 = vmax.f32 %v354, 0.0
    %v402 = vmax.f32 %v356, 0.0
    %v403 = vmax.f32 %v395, 0.0
    %v404 = vmax.f32 %v397, 0.0
    %v405 = vpack.c.bf16 %v401, %v401
    %v406 = vpack.c.bf16 %v402, %v402
    %v407 = vpack.c.bf16 %v403, %v403
    %v408 = vpack.c.bf16 %v404, %v404
    %v409 = vld [vmem:[#allocation6] sm:$0xff]
    %v410 = vld [vmem:[#allocation6 + $0x8] sm:$0xff]
    %v411 = vld [vmem:[#allocation6 + $0x10] sm:$0xff]
    %v412 = vld [vmem:[#allocation6 + $0x18] sm:$0xff]
    %v413 = vld [vmem:[#allocation6 + $0x20] sm:$0xff]
    %v414 = vld [vmem:[#allocation6 + $0x28] sm:$0xff]
    %v415 = vld [vmem:[#allocation6 + $0x30] sm:$0xff]
    %v416 = vld [vmem:[#allocation6 + $0x38] sm:$0xff]
    %v417 = vld [vmem:[#allocation6 + $0x40] sm:$0xff]
    %v418 = vld [vmem:[#allocation6 + $0x48] sm:$0xff]
    %v419 = vld [vmem:[#allocation6 + $0x50] sm:$0xff]
    %v420 = vld [vmem:[#allocation6 + $0x58] sm:$0xff]
    %v421 = vld [vmem:[#allocation6 + $0x60] sm:$0xff]
    %v422 = vld [vmem:[#allocation6 + $0x68] sm:$0xff]
    %v423 = vld [vmem:[#allocation6 + $0x70] sm:$0xff]
    %v424 = vld [vmem:[#allocation6 + $0x78] sm:$0xff]
    %v425 = vld [vmem:[#allocation6 + $0x80] sm:$0xff]
    %v426 = vld [vmem:[#allocation6 + $0x88] sm:$0xff]
    %v427 = vld [vmem:[#allocation6 + $0x90] sm:$0xff]
    %v428 = vld [vmem:[#allocation6 + $0x98] sm:$0xff]
    %v429 = vld [vmem:[#allocation6 + $0xa0] sm:$0xff]
    %v430 = vld [vmem:[#allocation6 + $0xa8] sm:$0xff]
    %v431 = vld [vmem:[#allocation6 + $0xb0] sm:$0xff]
    %v432 = vld [vmem:[#allocation6 + $0xb8] sm:$0xff]
    %v433 = vld [vmem:[#allocation6 + $0xc0] sm:$0xff]
    %v434 = vld [vmem:[#allocation6 + $0xc8] sm:$0xff]
    %v435 = vld [vmem:[#allocation6 + $0xd0] sm:$0xff]
    %v436 = vld [vmem:[#allocation6 + $0xd8] sm:$0xff]
    %v437 = vld [vmem:[#allocation6 + $0xe0] sm:$0xff]
    %v438 = vld [vmem:[#allocation6 + $0xe8] sm:$0xff]
    %v439 = vld [vmem:[#allocation6 + $0xf0] sm:$0xff]
    %v440 = vld [vmem:[#allocation6 + $0xf8] sm:$0xff]
    %v441 = vld [vmem:[#allocation6 + $0x100] sm:$0xff]
    %v442 = vld [vmem:[#allocation6 + $0x108] sm:$0xff]
    %v443 = vld [vmem:[#allocation6 + $0x110] sm:$0xff]
    %v444 = vld [vmem:[#allocation6 + $0x118] sm:$0xff]
    %v445 = vld [vmem:[#allocation6 + $0x120] sm:$0xff]
    %v446 = vld [vmem:[#allocation6 + $0x128] sm:$0xff]
    %v447 = vld [vmem:[#allocation6 + $0x130] sm:$0xff]
    %v448 = vld [vmem:[#allocation6 + $0x138] sm:$0xff]
    %v449 = vld [vmem:[#allocation6 + $0x140] sm:$0xff]
    %v450 = vld [vmem:[#allocation6 + $0x148] sm:$0xff]
    %v451 = vld [vmem:[#allocation6 + $0x150] sm:$0xff]
    %v452 = vld [vmem:[#allocation6 + $0x158] sm:$0xff]
    %v453 = vld [vmem:[#allocation6 + $0x160] sm:$0xff]
    %v454 = vld [vmem:[#allocation6 + $0x168] sm:$0xff]
    %v455 = vld [vmem:[#allocation6 + $0x170] sm:$0xff]
    %v456 = vld [vmem:[#allocation6 + $0x178] sm:$0xff]
    %v457 = vld [vmem:[#allocation6 + $0x180] sm:$0xff]
    %v458 = vld [vmem:[#allocation6 + $0x188] sm:$0xff]
    %v459 = vld [vmem:[#allocation6 + $0x190] sm:$0xff]
    %v460 = vld [vmem:[#allocation6 + $0x198] sm:$0xff]
    %v461 = vld [vmem:[#allocation6 + $0x1a0] sm:$0xff]
    %v462 = vld [vmem:[#allocation6 + $0x1a8] sm:$0xff]
    %v463 = vld [vmem:[#allocation6 + $0x1b0] sm:$0xff]
    %v464 = vld [vmem:[#allocation6 + $0x1b8] sm:$0xff]
    %v465 = vld [vmem:[#allocation6 + $0x1c0] sm:$0xff]
    %v466 = vld [vmem:[#allocation6 + $0x1c8] sm:$0xff]
    %v467 = vld [vmem:[#allocation6 + $0x1d0] sm:$0xff]
    %v468 = vld [vmem:[#allocation6 + $0x1d8] sm:$0xff]
    %v469 = vld [vmem:[#allocation6 + $0x1e0] sm:$0xff]
    %v470 = vld [vmem:[#allocation6 + $0x1e8] sm:$0xff]
    %v471 = vld [vmem:[#allocation6 + $0x1f0] sm:$0xff]
    %v472 = vld [vmem:[#allocation6 + $0x1f8] sm:$0xff]
    %v473 = vld [vmem:[#allocation7] sm:$0x3]
    %v475 = vlaneseq
    %v476 = vshrl.u32 %v475, 7
    %v477 = vsub.s32 0, %v476
    %v478 = vrot.slane %v473, %v477
    %v479 = vlaneseq
    %v480 = vshrl.u32 %v479, 7
    %v481 = vsub.s32 1, %v480
    %v482 = vrot.slane %v473, %v481
    %v549 = vunpack.c.l.b16 %v409
    %v550 = vunpack.c.h.b16 %v409
    %v551 = vunpack.c.l.b16 %v410
    %v552 = vunpack.c.h.b16 %v410
    %v553 = vunpack.c.l.b16 %v411
    %v554 = vunpack.c.h.b16 %v411
    %v555 = vunpack.c.l.b16 %v412
    %v556 = vunpack.c.h.b16 %v412
    %v557 = vunpack.c.l.b16 %v413
    %v558 = vunpack.c.h.b16 %v413
    %v559 = vunpack.c.l.b16 %v414
    %v560 = vunpack.c.h.b16 %v414
    %v561 = vunpack.c.l.b16 %v415
    %v562 = vunpack.c.h.b16 %v415
    %v563 = vunpack.c.l.b16 %v416
    %v564 = vunpack.c.h.b16 %v416
    %v565 = vunpack.c.l.b16 %v417
    %v566 = vunpack.c.h.b16 %v417
    %v567 = vunpack.c.l.b16 %v418
    %v568 = vunpack.c.h.b16 %v418
    %v569 = vunpack.c.l.b16 %v419
    %v570 = vunpack.c.h.b16 %v419
    %v571 = vunpack.c.l.b16 %v420
    %v572 = vunpack.c.h.b16 %v420
    %v573 = vunpack.c.l.b16 %v421
    %v574 = vunpack.c.h.b16 %v421
    %v575 = vunpack.c.l.b16 %v422
    %v576 = vunpack.c.h.b16 %v422
    %v577 = vunpack.c.l.b16 %v423
    %v578 = vunpack.c.h.b16 %v423
    %v579 = vunpack.c.l.b16 %v424
    %v580 = vunpack.c.h.b16 %v424
    %v581 = vunpack.c.l.b16 %v425
    %v582 = vunpack.c.h.b16 %v425
    %v583 = vunpack.c.l.b16 %v426
    %v584 = vunpack.c.h.b16 %v426
    %v585 = vunpack.c.l.b16 %v427
    %v586 = vunpack.c.h.b16 %v427
    %v587 = vunpack.c.l.b16 %v428
    %v588 = vunpack.c.h.b16 %v428
    %v589 = vunpack.c.l.b16 %v429
    %v590 = vunpack.c.h.b16 %v429
    %v591 = vunpack.c.l.b16 %v430
    %v592 = vunpack.c.h.b16 %v430
    %v593 = vunpack.c.l.b16 %v431
    %v594 = vunpack.c.h.b16 %v431
    %v595 = vunpack.c.l.b16 %v432
    %v596 = vunpack.c.h.b16 %v432
    %v597 = vunpack.c.l.b16 %v433
    %v598 = vunpack.c.h.b16 %v433
    %v599 = vunpack.c.l.b16 %v434
    %v600 = vunpack.c.h.b16 %v434
    %v601 = vunpack.c.l.b16 %v435
    %v602 = vunpack.c.h.b16 %v435
    %v603 = vunpack.c.l.b16 %v436
    %v604 = vunpack.c.h.b16 %v436
    %v605 = vunpack.c.l.b16 %v437
    %v606 = vunpack.c.h.b16 %v437
    %v607 = vunpack.c.l.b16 %v438
    %v608 = vunpack.c.h.b16 %v438
    %v609 = vunpack.c.l.b16 %v439
    %v610 = vunpack.c.h.b16 %v439
    %v611 = vunpack.c.l.b16 %v440
    %v612 = vunpack.c.h.b16 %v440
    %v613 = vunpack.c.l.b16 %v441
    %v614 = vunpack.c.h.b16 %v441
    %v615 = vunpack.c.l.b16 %v442
    %v616 = vunpack.c.h.b16 %v442
    %v617 = vunpack.c.l.b16 %v443
    %v618 = vunpack.c.h.b16 %v443
    %v619 = vunpack.c.l.b16 %v444
    %v620 = vunpack.c.h.b16 %v444
    %v621 = vunpack.c.l.b16 %v445
    %v622 = vunpack.c.h.b16 %v445
    %v623 = vunpack.c.l.b16 %v446
    %v624 = vunpack.c.h.b16 %v446
    %v625 = vunpack.c.l.b16 %v447
    %v626 = vunpack.c.h.b16 %v447
    %v627 = vunpack.c.l.b16 %v448
    %v628 = vunpack.c.h.b16 %v448
    %v629 = vunpack.c.l.b16 %v449
    %v630 = vunpack.c.h.b16 %v449
    %v631 = vunpack.c.l.b16 %v450
    %v632 = vunpack.c.h.b16 %v450
    %v633 = vunpack.c.l.b16 %v451
    %v634 = vunpack.c.h.b16 %v451
    %v635 = vunpack.c.l.b16 %v452
    %v636 = vunpack.c.h.b16 %v452
    %v637 = vunpack.c.l.b16 %v453
    %v638 = vunpack.c.h.b16 %v453
    %v639 = vunpack.c.l.b16 %v454
    %v640 = vunpack.c.h.b16 %v454
    %v641 = vunpack.c.l.b16 %v455
    %v642 = vunpack.c.h.b16 %v455
    %v643 = vunpack.c.l.b16 %v456
    %v644 = vunpack.c.h.b16 %v456
    %v645 = vunpack.c.l.b16 %v457
    %v646 = vunpack.c.h.b16 %v457
    %v647 = vunpack.c.l.b16 %v458
    %v648 = vunpack.c.h.b16 %v458
    %v649 = vunpack.c.l.b16 %v459
    %v650 = vunpack.c.h.b16 %v459
    %v651 = vunpack.c.l.b16 %v460
    %v652 = vunpack.c.h.b16 %v460
    %v653 = vunpack.c.l.b16 %v461
    %v654 = vunpack.c.h.b16 %v461
    %v655 = vunpack.c.l.b16 %v462
    %v656 = vunpack.c.h.b16 %v462
    %v657 = vunpack.c.l.b16 %v463
    %v658 = vunpack.c.h.b16 %v463
    %v659 = vunpack.c.l.b16 %v464
    %v660 = vunpack.c.h.b16 %v464
    %v661 = vunpack.c.l.b16 %v465
    %v662 = vunpack.c.h.b16 %v465
    %v663 = vunpack.c.l.b16 %v466
    %v664 = vunpack.c.h.b16 %v466
    %v665 = vunpack.c.l.b16 %v467
    %v666 = vunpack.c.h.b16 %v467
    %v667 = vunpack.c.l.b16 %v468
    %v668 = vunpack.c.h.b16 %v468
    %v669 = vunpack.c.l.b16 %v469
    %v670 = vunpack.c.h.b16 %v469
    %v671 = vunpack.c.l.b16 %v470
    %v672 = vunpack.c.h.b16 %v470
    %v673 = vunpack.c.l.b16 %v471
    %v674 = vunpack.c.h.b16 %v471
    %v675 = vunpack.c.l.b16 %v472
    %v676 = vunpack.c.h.b16 %v472
    %v677 = vpack.c.b16 %v551, %v549
    %v678 = vpack.c.b16 %v552, %v550
    %v679 = vpack.c.b16 %v555, %v553
    %v680 = vpack.c.b16 %v556, %v554
    %v681 = vpack.c.b16 %v559, %v557
    %v682 = vpack.c.b16 %v560, %v558
    %v683 = vpack.c.b16 %v563, %v561
    %v684 = vpack.c.b16 %v564, %v562
    %v685 = vpack.c.b16 %v567, %v565
    %v686 = vpack.c.b16 %v568, %v566
    %v687 = vpack.c.b16 %v571, %v569
    %v688 = vpack.c.b16 %v572, %v570
    %v689 = vpack.c.b16 %v575, %v573
    %v690 = vpack.c.b16 %v576, %v574
    %v691 = vpack.c.b16 %v579, %v577
    %v692 = vpack.c.b16 %v580, %v578
    %v693 = vpack.c.b16 %v583, %v581
    %v694 = vpack.c.b16 %v584, %v582
    %v695 = vpack.c.b16 %v587, %v585
    %v696 = vpack.c.b16 %v588, %v586
    %v697 = vpack.c.b16 %v591, %v589
    %v698 = vpack.c.b16 %v592, %v590
    %v699 = vpack.c.b16 %v595, %v593
    %v700 = vpack.c.b16 %v596, %v594
    %v701 = vpack.c.b16 %v599, %v597
    %v702 = vpack.c.b16 %v600, %v598
    %v703 = vpack.c.b16 %v603, %v601
    %v704 = vpack.c.b16 %v604, %v602
    %v705 = vpack.c.b16 %v607, %v605
    %v706 = vpack.c.b16 %v608, %v606
    %v707 = vpack.c.b16 %v611, %v609
    %v708 = vpack.c.b16 %v612, %v610
    %v709 = vpack.c.b16 %v615, %v613
    %v710 = vpack.c.b16 %v616, %v614
    %v711 = vpack.c.b16 %v619, %v617
    %v712 = vpack.c.b16 %v620, %v618
    %v713 = vpack.c.b16 %v623, %v621
    %v714 = vpack.c.b16 %v624, %v622
    %v715 = vpack.c.b16 %v627, %v625
    %v716 = vpack.c.b16 %v628, %v626
    %v717 = vpack.c.b16 %v631, %v629
    %v718 = vpack.c.b16 %v632, %v630
    %v719 = vpack.c.b16 %v635, %v633
    %v720 = vpack.c.b16 %v636, %v634
    %v721 = vpack.c.b16 %v639, %v637
    %v722 = vpack.c.b16 %v640, %v638
    %v723 = vpack.c.b16 %v643, %v641
    %v724 = vpack.c.b16 %v644, %v642
    %v725 = vpack.c.b16 %v647, %v645
    %v726 = vpack.c.b16 %v648, %v646
    %v727 = vpack.c.b16 %v651, %v649
    %v728 = vpack.c.b16 %v652, %v650
    %v729 = vpack.c.b16 %v655, %v653
    %v730 = vpack.c.b16 %v656, %v654
    %v731 = vpack.c.b16 %v659, %v657
    %v732 = vpack.c.b16 %v660, %v658
    %v733 = vpack.c.b16 %v663, %v661
    %v734 = vpack.c.b16 %v664, %v662
    %v735 = vpack.c.b16 %v667, %v665
    %v736 = vpack.c.b16 %v668, %v666
    %v737 = vpack.c.b16 %v671, %v669
    %v738 = vpack.c.b16 %v672, %v670
    %v739 = vpack.c.b16 %v675, %v673
    %v740 = vpack.c.b16 %v676, %v674
    %805 = vmatprep.subr.bf16.mxu0 %v678
    %806 = vmatpush1.bf16.msra.mxu0 %v677
    %807 = vmatprep.subr.bf16.mxu0 %v680
    %808 = vmatpush1.bf16.msra.mxu0 %v679
    %809 = vmatprep.subr.bf16.mxu0 %v682
    %810 = vmatpush1.bf16.msra.mxu0 %v681
    %811 = vmatprep.subr.bf16.mxu0 %v684
    %812 = vmatpush1.bf16.msra.mxu0 %v683
    %813 = vmatprep.subr.bf16.mxu0 %v686
    %814 = vmatpush1.bf16.msra.mxu0 %v685
    %815 = vmatprep.subr.bf16.mxu0 %v688
    %816 = vmatpush1.bf16.msra.mxu0 %v687
    %817 = vmatprep.subr.bf16.mxu0 %v690
    %818 = vmatpush1.bf16.msra.mxu0 %v689
    %819 = vmatprep.subr.bf16.mxu0 %v692
    %820 = vmatpush1.bf16.msra.mxu0 %v691
    %821 = vmatprep.subr.bf16.mxu0 %v694
    %822 = vmatpush1.bf16.msra.mxu0 %v693
    %823 = vmatprep.subr.bf16.mxu0 %v696
    %824 = vmatpush1.bf16.msra.mxu0 %v695
    %825 = vmatprep.subr.bf16.mxu0 %v698
    %826 = vmatpush1.bf16.msra.mxu0 %v697
    %827 = vmatprep.subr.bf16.mxu0 %v700
    %828 = vmatpush1.bf16.msra.mxu0 %v699
    %829 = vmatprep.subr.bf16.mxu0 %v702
    %830 = vmatpush1.bf16.msra.mxu0 %v701
    %831 = vmatprep.subr.bf16.mxu0 %v704
    %832 = vmatpush1.bf16.msra.mxu0 %v703
    %833 = vmatprep.subr.bf16.mxu0 %v706
    %834 = vmatpush1.bf16.msra.mxu0 %v705
    %835 = vmatprep.subr.bf16.mxu0 %v708
    %836 = vmatpush1.bf16.msra.mxu0 %v707
    %837 = vmatprep.mubr.bf16.mxu0 %v406
    %838 = vmatmul.mubr.bf16.gmra.mrb[0].mxu0 %v405
    %v839 = vpop.f32.mrb[0].mxu0
    %v840 = vadd.f32 %v478, %v839
    %v841 = vpop.f32.mrb[0].mxu0
    %v842 = vadd.f32 %v482, %v841
    %v843 = vpop.f32.mrb[0].mxu0
    %v844 = vpop.f32.mrb[0].mxu0
    %845 = vdwg.mxu0
    %846 = vmatprep.subr.bf16.mxu0 %v710
    %847 = vmatpush1.bf16.msra.mxu0 %v709
    %848 = vmatprep.subr.bf16.mxu0 %v712
    %849 = vmatpush1.bf16.msra.mxu0 %v711
    %850 = vmatprep.subr.bf16.mxu0 %v714
    %851 = vmatpush1.bf16.msra.mxu0 %v713
    %852 = vmatprep.subr.bf16.mxu0 %v716
    %853 = vmatpush1.bf16.msra.mxu0 %v715
    %854 = vmatprep.subr.bf16.mxu0 %v718
    %855 = vmatpush1.bf16.msra.mxu0 %v717
    %856 = vmatprep.subr.bf16.mxu0 %v720
    %857 = vmatpush1.bf16.msra.mxu0 %v719
    %858 = vmatprep.subr.bf16.mxu0 %v722
    %859 = vmatpush1.bf16.msra.mxu0 %v721
    %860 = vmatprep.subr.bf16.mxu0 %v724
    %861 = vmatpush1.bf16.msra.mxu0 %v723
    %862 = vmatprep.subr.bf16.mxu0 %v726
    %863 = vmatpush1.bf16.msra.mxu0 %v725
    %864 = vmatprep.subr.bf16.mxu0 %v728
    %865 = vmatpush1.bf16.msra.mxu0 %v727
    %866 = vmatprep.subr.bf16.mxu0 %v730
    %867 = vmatpush1.bf16.msra.mxu0 %v729
    %868 = vmatprep.subr.bf16.mxu0 %v732
    %869 = vmatpush1.bf16.msra.mxu0 %v731
    %870 = vmatprep.subr.bf16.mxu0 %v734
    %871 = vmatpush1.bf16.msra.mxu0 %v733
    %872 = vmatprep.subr.bf16.mxu0 %v736
    %873 = vmatpush1.bf16.msra.mxu0 %v735
    %874 = vmatprep.subr.bf16.mxu0 %v738
    %875 = vmatpush1.bf16.msra.mxu0 %v737
    %876 = vmatprep.subr.bf16.mxu0 %v740
    %877 = vmatpush1.bf16.msra.mxu0 %v739
    %878 = vmatprep.mubr.bf16.mxu0 %v408
    %879 = vmatmul.mubr.bf16.gmra.mrb[0].mxu0 %v407
    %v880 = vpop.f32.mrb[0].mxu0
    %v881 = vadd.f32 %v840, %v880
    %v882 = vpop.f32.mrb[0].mxu0
    %v883 = vadd.f32 %v842, %v882
    %v884 = vpop.f32.mrb[0].mxu0
    %v885 = vpop.f32.mrb[0].mxu0
    %886 = vdwg.mxu0
    %v887 = vmax.f32 %v881, 0.0
    %v888 = vmax.f32 %v883, 0.0
    %v889 = vpack.c.bf16 %v887, %v887
    %v890 = vpack.c.bf16 %v888, %v888
    %v891 = vld [vmem:[#allocation9] sm:$0xff]
    %v892 = vld [vmem:[#allocation9 + $0x8] sm:$0xff]
    %v893 = vld [vmem:[#allocation9 + $0x10] sm:$0xff]
    %v894 = vld [vmem:[#allocation9 + $0x18] sm:$0xff]
    %v895 = vld [vmem:[#allocation9 + $0x20] sm:$0xff]
    %v896 = vld [vmem:[#allocation9 + $0x28] sm:$0xff]
    %v897 = vld [vmem:[#allocation9 + $0x30] sm:$0xff]
    %v898 = vld [vmem:[#allocation9 + $0x38] sm:$0xff]
    %v899 = vld [vmem:[#allocation9 + $0x40] sm:$0xff]
    %v900 = vld [vmem:[#allocation9 + $0x48] sm:$0xff]
    %v901 = vld [vmem:[#allocation9 + $0x50] sm:$0xff]
    %v902 = vld [vmem:[#allocation9 + $0x58] sm:$0xff]
    %v903 = vld [vmem:[#allocation9 + $0x60] sm:$0xff]
    %v904 = vld [vmem:[#allocation9 + $0x68] sm:$0xff]
    %v905 = vld [vmem:[#allocation9 + $0x70] sm:$0xff]
    %v906 = vld [vmem:[#allocation9 + $0x78] sm:$0xff]
    %v907 = vld [vmem:[#allocation9 + $0x80] sm:$0xff]
    %v908 = vld [vmem:[#allocation9 + $0x88] sm:$0xff]
    %v909 = vld [vmem:[#allocation9 + $0x90] sm:$0xff]
    %v910 = vld [vmem:[#allocation9 + $0x98] sm:$0xff]
    %v911 = vld [vmem:[#allocation9 + $0xa0] sm:$0xff]
    %v912 = vld [vmem:[#allocation9 + $0xa8] sm:$0xff]
    %v913 = vld [vmem:[#allocation9 + $0xb0] sm:$0xff]
    %v914 = vld [vmem:[#allocation9 + $0xb8] sm:$0xff]
    %v915 = vld [vmem:[#allocation9 + $0xc0] sm:$0xff]
    %v916 = vld [vmem:[#allocation9 + $0xc8] sm:$0xff]
    %v917 = vld [vmem:[#allocation9 + $0xd0] sm:$0xff]
    %v918 = vld [vmem:[#allocation9 + $0xd8] sm:$0xff]
    %v919 = vld [vmem:[#allocation9 + $0xe0] sm:$0xff]
    %v920 = vld [vmem:[#allocation9 + $0xe8] sm:$0xff]
    %v921 = vld [vmem:[#allocation9 + $0xf0] sm:$0xff]
    %v922 = vld [vmem:[#allocation9 + $0xf8] sm:$0xff]
    %v923 = vld [vmem:[#allocation9 + $0x100] sm:$0xff]
    %v924 = vld [vmem:[#allocation9 + $0x108] sm:$0xff]
    %v925 = vld [vmem:[#allocation9 + $0x110] sm:$0xff]
    %v926 = vld [vmem:[#allocation9 + $0x118] sm:$0xff]
    %v927 = vld [vmem:[#allocation9 + $0x120] sm:$0xff]
    %v928 = vld [vmem:[#allocation9 + $0x128] sm:$0xff]
    %v929 = vld [vmem:[#allocation9 + $0x130] sm:$0xff]
    %v930 = vld [vmem:[#allocation9 + $0x138] sm:$0xff]
    %v931 = vld [vmem:[#allocation9 + $0x140] sm:$0xff]
    %v932 = vld [vmem:[#allocation9 + $0x148] sm:$0xff]
    %v933 = vld [vmem:[#allocation9 + $0x150] sm:$0xff]
    %v934 = vld [vmem:[#allocation9 + $0x158] sm:$0xff]
    %v935 = vld [vmem:[#allocation9 + $0x160] sm:$0xff]
    %v936 = vld [vmem:[#allocation9 + $0x168] sm:$0xff]
    %v937 = vld [vmem:[#allocation9 + $0x170] sm:$0xff]
    %v938 = vld [vmem:[#allocation9 + $0x178] sm:$0xff]
    %v939 = vld [vmem:[#allocation9 + $0x180] sm:$0xff]
    %v940 = vld [vmem:[#allocation9 + $0x188] sm:$0xff]
    %v941 = vld [vmem:[#allocation9 + $0x190] sm:$0xff]
    %v942 = vld [vmem:[#allocation9 + $0x198] sm:$0xff]
    %v943 = vld [vmem:[#allocation9 + $0x1a0] sm:$0xff]
    %v944 = vld [vmem:[#allocation9 + $0x1a8] sm:$0xff]
    %v945 = vld [vmem:[#allocation9 + $0x1b0] sm:$0xff]
    %v946 = vld [vmem:[#allocation9 + $0x1b8] sm:$0xff]
    %v947 = vld [vmem:[#allocation9 + $0x1c0] sm:$0xff]
    %v948 = vld [vmem:[#allocation9 + $0x1c8] sm:$0xff]
    %v949 = vld [vmem:[#allocation9 + $0x1d0] sm:$0xff]
    %v950 = vld [vmem:[#allocation9 + $0x1d8] sm:$0xff]
    %v951 = vld [vmem:[#allocation9 + $0x1e0] sm:$0xff]
    %v952 = vld [vmem:[#allocation9 + $0x1e8] sm:$0xff]
    %v953 = vld [vmem:[#allocation9 + $0x1f0] sm:$0xff]
    %v954 = vld [vmem:[#allocation9 + $0x1f8] sm:$0xff]
    %v955 = vld [vmem:[#allocation9 + $0x200] sm:$0xff]
    %v956 = vld [vmem:[#allocation9 + $0x208] sm:$0xff]
    %v957 = vld [vmem:[#allocation9 + $0x210] sm:$0xff]
    %v958 = vld [vmem:[#allocation9 + $0x218] sm:$0xff]
    %v959 = vld [vmem:[#allocation9 + $0x220] sm:$0xff]
    %v960 = vld [vmem:[#allocation9 + $0x228] sm:$0xff]
    %v961 = vld [vmem:[#allocation9 + $0x230] sm:$0xff]
    %v962 = vld [vmem:[#allocation9 + $0x238] sm:$0xff]
    %v963 = vld [vmem:[#allocation9 + $0x240] sm:$0xff]
    %v964 = vld [vmem:[#allocation9 + $0x248] sm:$0xff]
    %v965 = vld [vmem:[#allocation9 + $0x250] sm:$0xff]
    %v966 = vld [vmem:[#allocation9 + $0x258] sm:$0xff]
    %v967 = vld [vmem:[#allocation9 + $0x260] sm:$0xff]
    %v968 = vld [vmem:[#allocation9 + $0x268] sm:$0xff]
    %v969 = vld [vmem:[#allocation9 + $0x270] sm:$0xff]
    %v970 = vld [vmem:[#allocation9 + $0x278] sm:$0xff]
    %v971 = vld [vmem:[#allocation9 + $0x280] sm:$0xff]
    %v972 = vld [vmem:[#allocation9 + $0x288] sm:$0xff]
    %v973 = vld [vmem:[#allocation9 + $0x290] sm:$0xff]
    %v974 = vld [vmem:[#allocation9 + $0x298] sm:$0xff]
    %v975 = vld [vmem:[#allocation9 + $0x2a0] sm:$0xff]
    %v976 = vld [vmem:[#allocation9 + $0x2a8] sm:$0xff]
    %v977 = vld [vmem:[#allocation9 + $0x2b0] sm:$0xff]
    %v978 = vld [vmem:[#allocation9 + $0x2b8] sm:$0xff]
    %v979 = vld [vmem:[#allocation9 + $0x2c0] sm:$0xff]
    %v980 = vld [vmem:[#allocation9 + $0x2c8] sm:$0xff]
    %v981 = vld [vmem:[#allocation9 + $0x2d0] sm:$0xff]
    %v982 = vld [vmem:[#allocation9 + $0x2d8] sm:$0xff]
    %v983 = vld [vmem:[#allocation9 + $0x2e0] sm:$0xff]
    %v984 = vld [vmem:[#allocation9 + $0x2e8] sm:$0xff]
    %v985 = vld [vmem:[#allocation9 + $0x2f0] sm:$0xff]
    %v986 = vld [vmem:[#allocation9 + $0x2f8] sm:$0xff]
    %v987 = vld [vmem:[#allocation9 + $0x300] sm:$0xff]
    %v988 = vld [vmem:[#allocation9 + $0x308] sm:$0xff]
    %v989 = vld [vmem:[#allocation9 + $0x310] sm:$0xff]
    %v990 = vld [vmem:[#allocation9 + $0x318] sm:$0xff]
    %v991 = vld [vmem:[#allocation9 + $0x320] sm:$0xff]
    %v992 = vld [vmem:[#allocation9 + $0x328] sm:$0xff]
    %v993 = vld [vmem:[#allocation9 + $0x330] sm:$0xff]
    %v994 = vld [vmem:[#allocation9 + $0x338] sm:$0xff]
    %v995 = vld [vmem:[#allocation9 + $0x340] sm:$0xff]
    %v996 = vld [vmem:[#allocation9 + $0x348] sm:$0xff]
    %v997 = vld [vmem:[#allocation9 + $0x350] sm:$0xff]
    %v998 = vld [vmem:[#allocation9 + $0x358] sm:$0xff]
    %v999 = vld [vmem:[#allocation9 + $0x360] sm:$0xff]
    %v1000 = vld [vmem:[#allocation9 + $0x368] sm:$0xff]
    %v1001 = vld [vmem:[#allocation9 + $0x370] sm:$0xff]
    %v1002 = vld [vmem:[#allocation9 + $0x378] sm:$0xff]
    %v1003 = vld [vmem:[#allocation9 + $0x380] sm:$0xff]
    %v1004 = vld [vmem:[#allocation9 + $0x388] sm:$0xff]
    %v1005 = vld [vmem:[#allocation9 + $0x390] sm:$0xff]
    %v1006 = vld [vmem:[#allocation9 + $0x398] sm:$0xff]
    %v1007 = vld [vmem:[#allocation9 + $0x3a0] sm:$0xff]
    %v1008 = vld [vmem:[#allocation9 + $0x3a8] sm:$0xff]
    %v1009 = vld [vmem:[#allocation9 + $0x3b0] sm:$0xff]
    %v1010 = vld [vmem:[#allocation9 + $0x3b8] sm:$0xff]
    %v1011 = vld [vmem:[#allocation9 + $0x3c0] sm:$0xff]
    %v1012 = vld [vmem:[#allocation9 + $0x3c8] sm:$0xff]
    %v1013 = vld [vmem:[#allocation9 + $0x3d0] sm:$0xff]
    %v1014 = vld [vmem:[#allocation9 + $0x3d8] sm:$0xff]
    %v1015 = vld [vmem:[#allocation9 + $0x3e0] sm:$0xff]
    %v1016 = vld [vmem:[#allocation9 + $0x3e8] sm:$0xff]
    %v1017 = vld [vmem:[#allocation9 + $0x3f0] sm:$0xff]
    %v1018 = vld [vmem:[#allocation9 + $0x3f8] sm:$0xff]
    %v1019 = vld [vmem:[#allocation9 + $0x400] sm:$0xff]
    %v1020 = vld [vmem:[#allocation9 + $0x408] sm:$0xff]
    %v1021 = vld [vmem:[#allocation9 + $0x410] sm:$0xff]
    %v1022 = vld [vmem:[#allocation9 + $0x418] sm:$0xff]
    %v1023 = vld [vmem:[#allocation9 + $0x420] sm:$0xff]
    %v1024 = vld [vmem:[#allocation9 + $0x428] sm:$0xff]
    %v1025 = vld [vmem:[#allocation9 + $0x430] sm:$0xff]
    %v1026 = vld [vmem:[#allocation9 + $0x438] sm:$0xff]
    %v1027 = vld [vmem:[#allocation9 + $0x440] sm:$0xff]
    %v1028 = vld [vmem:[#allocation9 + $0x448] sm:$0xff]
    %v1029 = vld [vmem:[#allocation9 + $0x450] sm:$0xff]
    %v1030 = vld [vmem:[#allocation9 + $0x458] sm:$0xff]
    %v1031 = vld [vmem:[#allocation9 + $0x460] sm:$0xff]
    %v1032 = vld [vmem:[#allocation9 + $0x468] sm:$0xff]
    %v1033 = vld [vmem:[#allocation9 + $0x470] sm:$0xff]
    %v1034 = vld [vmem:[#allocation9 + $0x478] sm:$0xff]
    %v1035 = vld [vmem:[#allocation9 + $0x480] sm:$0xff]
    %v1036 = vld [vmem:[#allocation9 + $0x488] sm:$0xff]
    %v1037 = vld [vmem:[#allocation9 + $0x490] sm:$0xff]
    %v1038 = vld [vmem:[#allocation9 + $0x498] sm:$0xff]
    %v1039 = vld [vmem:[#allocation9 + $0x4a0] sm:$0xff]
    %v1040 = vld [vmem:[#allocation9 + $0x4a8] sm:$0xff]
    %v1041 = vld [vmem:[#allocation9 + $0x4b0] sm:$0xff]
    %v1042 = vld [vmem:[#allocation9 + $0x4b8] sm:$0xff]
    %v1043 = vld [vmem:[#allocation9 + $0x4c0] sm:$0xff]
    %v1044 = vld [vmem:[#allocation9 + $0x4c8] sm:$0xff]
    %v1045 = vld [vmem:[#allocation9 + $0x4d0] sm:$0xff]
    %v1046 = vld [vmem:[#allocation9 + $0x4d8] sm:$0xff]
    %v1047 = vld [vmem:[#allocation9 + $0x4e0] sm:$0xff]
    %v1048 = vld [vmem:[#allocation9 + $0x4e8] sm:$0xff]
    %v1049 = vld [vmem:[#allocation9 + $0x4f0] sm:$0xff]
    %v1050 = vld [vmem:[#allocation9 + $0x4f8] sm:$0xff]
    %v1051 = vld [vmem:[#allocation9 + $0x500] sm:$0xff]
    %v1052 = vld [vmem:[#allocation9 + $0x508] sm:$0xff]
    %v1053 = vld [vmem:[#allocation9 + $0x510] sm:$0xff]
    %v1054 = vld [vmem:[#allocation9 + $0x518] sm:$0xff]
    %v1055 = vld [vmem:[#allocation9 + $0x520] sm:$0xff]
    %v1056 = vld [vmem:[#allocation9 + $0x528] sm:$0xff]
    %v1057 = vld [vmem:[#allocation9 + $0x530] sm:$0xff]
    %v1058 = vld [vmem:[#allocation9 + $0x538] sm:$0xff]
    %v1059 = vld [vmem:[#allocation9 + $0x540] sm:$0xff]
    %v1060 = vld [vmem:[#allocation9 + $0x548] sm:$0xff]
    %v1061 = vld [vmem:[#allocation9 + $0x550] sm:$0xff]
    %v1062 = vld [vmem:[#allocation9 + $0x558] sm:$0xff]
    %v1063 = vld [vmem:[#allocation9 + $0x560] sm:$0xff]
    %v1064 = vld [vmem:[#allocation9 + $0x568] sm:$0xff]
    %v1065 = vld [vmem:[#allocation9 + $0x570] sm:$0xff]
    %v1066 = vld [vmem:[#allocation9 + $0x578] sm:$0xff]
    %v1067 = vld [vmem:[#allocation9 + $0x580] sm:$0xff]
    %v1068 = vld [vmem:[#allocation9 + $0x588] sm:$0xff]
    %v1069 = vld [vmem:[#allocation9 + $0x590] sm:$0xff]
    %v1070 = vld [vmem:[#allocation9 + $0x598] sm:$0xff]
    %v1071 = vld [vmem:[#allocation9 + $0x5a0] sm:$0xff]
    %v1072 = vld [vmem:[#allocation9 + $0x5a8] sm:$0xff]
    %v1073 = vld [vmem:[#allocation9 + $0x5b0] sm:$0xff]
    %v1074 = vld [vmem:[#allocation9 + $0x5b8] sm:$0xff]
    %v1075 = vld [vmem:[#allocation9 + $0x5c0] sm:$0xff]
    %v1076 = vld [vmem:[#allocation9 + $0x5c8] sm:$0xff]
    %v1077 = vld [vmem:[#allocation9 + $0x5d0] sm:$0xff]
    %v1078 = vld [vmem:[#allocation9 + $0x5d8] sm:$0xff]
    %v1079 = vld [vmem:[#allocation9 + $0x5e0] sm:$0xff]
    %v1080 = vld [vmem:[#allocation9 + $0x5e8] sm:$0xff]
    %v1081 = vld [vmem:[#allocation9 + $0x5f0] sm:$0xff]
    %v1082 = vld [vmem:[#allocation9 + $0x5f8] sm:$0xff]
    %v1083 = vld [vmem:[#allocation9 + $0x600] sm:$0xff]
    %v1084 = vld [vmem:[#allocation9 + $0x608] sm:$0xff]
    %v1085 = vld [vmem:[#allocation9 + $0x610] sm:$0xff]
    %v1086 = vld [vmem:[#allocation9 + $0x618] sm:$0xff]
    %v1087 = vld [vmem:[#allocation9 + $0x620] sm:$0xff]
    %v1088 = vld [vmem:[#allocation9 + $0x628] sm:$0xff]
    %v1089 = vld [vmem:[#allocation9 + $0x630] sm:$0xff]
    %v1090 = vld [vmem:[#allocation9 + $0x638] sm:$0xff]
    %v1091 = vld [vmem:[#allocation9 + $0x640] sm:$0xff]
    %v1092 = vld [vmem:[#allocation9 + $0x648] sm:$0xff]
    %v1093 = vld [vmem:[#allocation9 + $0x650] sm:$0xff]
    %v1094 = vld [vmem:[#allocation9 + $0x658] sm:$0xff]
    %v1095 = vld [vmem:[#allocation9 + $0x660] sm:$0xff]
    %v1096 = vld [vmem:[#allocation9 + $0x668] sm:$0xff]
    %v1097 = vld [vmem:[#allocation9 + $0x670] sm:$0xff]
    %v1098 = vld [vmem:[#allocation9 + $0x678] sm:$0xff]
    %v1099 = vld [vmem:[#allocation9 + $0x680] sm:$0xff]
    %v1100 = vld [vmem:[#allocation9 + $0x688] sm:$0xff]
    %v1101 = vld [vmem:[#allocation9 + $0x690] sm:$0xff]
    %v1102 = vld [vmem:[#allocation9 + $0x698] sm:$0xff]
    %v1103 = vld [vmem:[#allocation9 + $0x6a0] sm:$0xff]
    %v1104 = vld [vmem:[#allocation9 + $0x6a8] sm:$0xff]
    %v1105 = vld [vmem:[#allocation9 + $0x6b0] sm:$0xff]
    %v1106 = vld [vmem:[#allocation9 + $0x6b8] sm:$0xff]
    %v1107 = vld [vmem:[#allocation9 + $0x6c0] sm:$0xff]
    %v1108 = vld [vmem:[#allocation9 + $0x6c8] sm:$0xff]
    %v1109 = vld [vmem:[#allocation9 + $0x6d0] sm:$0xff]
    %v1110 = vld [vmem:[#allocation9 + $0x6d8] sm:$0xff]
    %v1111 = vld [vmem:[#allocation9 + $0x6e0] sm:$0xff]
    %v1112 = vld [vmem:[#allocation9 + $0x6e8] sm:$0xff]
    %v1113 = vld [vmem:[#allocation9 + $0x6f0] sm:$0xff]
    %v1114 = vld [vmem:[#allocation9 + $0x6f8] sm:$0xff]
    %v1115 = vld [vmem:[#allocation9 + $0x700] sm:$0xff]
    %v1116 = vld [vmem:[#allocation9 + $0x708] sm:$0xff]
    %v1117 = vld [vmem:[#allocation9 + $0x710] sm:$0xff]
    %v1118 = vld [vmem:[#allocation9 + $0x718] sm:$0xff]
    %v1119 = vld [vmem:[#allocation9 + $0x720] sm:$0xff]
    %v1120 = vld [vmem:[#allocation9 + $0x728] sm:$0xff]
    %v1121 = vld [vmem:[#allocation9 + $0x730] sm:$0xff]
    %v1122 = vld [vmem:[#allocation9 + $0x738] sm:$0xff]
    %v1123 = vld [vmem:[#allocation9 + $0x740] sm:$0xff]
    %v1124 = vld [vmem:[#allocation9 + $0x748] sm:$0xff]
    %v1125 = vld [vmem:[#allocation9 + $0x750] sm:$0xff]
    %v1126 = vld [vmem:[#allocation9 + $0x758] sm:$0xff]
    %v1127 = vld [vmem:[#allocation9 + $0x760] sm:$0xff]
    %v1128 = vld [vmem:[#allocation9 + $0x768] sm:$0xff]
    %v1129 = vld [vmem:[#allocation9 + $0x770] sm:$0xff]
    %v1130 = vld [vmem:[#allocation9 + $0x778] sm:$0xff]
    %v1131 = vld [vmem:[#allocation9 + $0x780] sm:$0xff]
    %v1132 = vld [vmem:[#allocation9 + $0x788] sm:$0xff]
    %v1133 = vld [vmem:[#allocation9 + $0x790] sm:$0xff]
    %v1134 = vld [vmem:[#allocation9 + $0x798] sm:$0xff]
    %v1135 = vld [vmem:[#allocation9 + $0x7a0] sm:$0xff]
    %v1136 = vld [vmem:[#allocation9 + $0x7a8] sm:$0xff]
    %v1137 = vld [vmem:[#allocation9 + $0x7b0] sm:$0xff]
    %v1138 = vld [vmem:[#allocation9 + $0x7b8] sm:$0xff]
    %v1139 = vld [vmem:[#allocation9 + $0x7c0] sm:$0xff]
    %v1140 = vld [vmem:[#allocation9 + $0x7c8] sm:$0xff]
    %v1141 = vld [vmem:[#allocation9 + $0x7d0] sm:$0xff]
    %v1142 = vld [vmem:[#allocation9 + $0x7d8] sm:$0xff]
    %v1143 = vld [vmem:[#allocation9 + $0x7e0] sm:$0xff]
    %v1144 = vld [vmem:[#allocation9 + $0x7e8] sm:$0xff]
    %v1145 = vld [vmem:[#allocation9 + $0x7f0] sm:$0xff]
    %v1146 = vld [vmem:[#allocation9 + $0x7f8] sm:$0xff]
    %v1147 = vld [vmem:[#allocation9 + $0x800] sm:$0xff]
    %v1148 = vld [vmem:[#allocation9 + $0x808] sm:$0xff]
    %v1149 = vld [vmem:[#allocation9 + $0x810] sm:$0xff]
    %v1150 = vld [vmem:[#allocation9 + $0x818] sm:$0xff]
    %v1151 = vld [vmem:[#allocation9 + $0x820] sm:$0xff]
    %v1152 = vld [vmem:[#allocation9 + $0x828] sm:$0xff]
    %v1153 = vld [vmem:[#allocation9 + $0x830] sm:$0xff]
    %v1154 = vld [vmem:[#allocation9 + $0x838] sm:$0xff]
    %v1155 = vld [vmem:[#allocation9 + $0x840] sm:$0xff]
    %v1156 = vld [vmem:[#allocation9 + $0x848] sm:$0xff]
    %v1157 = vld [vmem:[#allocation9 + $0x850] sm:$0xff]
    %v1158 = vld [vmem:[#allocation9 + $0x858] sm:$0xff]
    %v1159 = vld [vmem:[#allocation9 + $0x860] sm:$0xff]
    %v1160 = vld [vmem:[#allocation9 + $0x868] sm:$0xff]
    %v1161 = vld [vmem:[#allocation9 + $0x870] sm:$0xff]
    %v1162 = vld [vmem:[#allocation9 + $0x878] sm:$0xff]
    %v1163 = vld [vmem:[#allocation9 + $0x880] sm:$0xff]
    %v1164 = vld [vmem:[#allocation9 + $0x888] sm:$0xff]
    %v1165 = vld [vmem:[#allocation9 + $0x890] sm:$0xff]
    %v1166 = vld [vmem:[#allocation9 + $0x898] sm:$0xff]
    %v1167 = vld [vmem:[#allocation9 + $0x8a0] sm:$0xff]
    %v1168 = vld [vmem:[#allocation9 + $0x8a8] sm:$0xff]
    %v1169 = vld [vmem:[#allocation9 + $0x8b0] sm:$0xff]
    %v1170 = vld [vmem:[#allocation9 + $0x8b8] sm:$0xff]
    %v1171 = vld [vmem:[#allocation9 + $0x8c0] sm:$0xff]
    %v1172 = vld [vmem:[#allocation9 + $0x8c8] sm:$0xff]
    %v1173 = vld [vmem:[#allocation9 + $0x8d0] sm:$0xff]
    %v1174 = vld [vmem:[#allocation9 + $0x8d8] sm:$0xff]
    %v1175 = vld [vmem:[#allocation9 + $0x8e0] sm:$0xff]
    %v1176 = vld [vmem:[#allocation9 + $0x8e8] sm:$0xff]
    %v1177 = vld [vmem:[#allocation9 + $0x8f0] sm:$0xff]
    %v1178 = vld [vmem:[#allocation9 + $0x8f8] sm:$0xff]
    %v1179 = vld [vmem:[#allocation9 + $0x900] sm:$0xff]
    %v1180 = vld [vmem:[#allocation9 + $0x908] sm:$0xff]
    %v1181 = vld [vmem:[#allocation9 + $0x910] sm:$0xff]
    %v1182 = vld [vmem:[#allocation9 + $0x918] sm:$0xff]
    %v1183 = vld [vmem:[#allocation9 + $0x920] sm:$0xff]
    %v1184 = vld [vmem:[#allocation9 + $0x928] sm:$0xff]
    %v1185 = vld [vmem:[#allocation9 + $0x930] sm:$0xff]
    %v1186 = vld [vmem:[#allocation9 + $0x938] sm:$0xff]
    %v1187 = vld [vmem:[#allocation9 + $0x940] sm:$0xff]
    %v1188 = vld [vmem:[#allocation9 + $0x948] sm:$0xff]
    %v1189 = vld [vmem:[#allocation9 + $0x950] sm:$0xff]
    %v1190 = vld [vmem:[#allocation9 + $0x958] sm:$0xff]
    %v1191 = vld [vmem:[#allocation9 + $0x960] sm:$0xff]
    %v1192 = vld [vmem:[#allocation9 + $0x968] sm:$0xff]
    %v1193 = vld [vmem:[#allocation9 + $0x970] sm:$0xff]
    %v1194 = vld [vmem:[#allocation9 + $0x978] sm:$0xff]
    %v1195 = vld [vmem:[#allocation9 + $0x980] sm:$0xff]
    %v1196 = vld [vmem:[#allocation9 + $0x988] sm:$0xff]
    %v1197 = vld [vmem:[#allocation9 + $0x990] sm:$0xff]
    %v1198 = vld [vmem:[#allocation9 + $0x998] sm:$0xff]
    %v1199 = vld [vmem:[#allocation9 + $0x9a0] sm:$0xff]
    %v1200 = vld [vmem:[#allocation9 + $0x9a8] sm:$0xff]
    %v1201 = vld [vmem:[#allocation9 + $0x9b0] sm:$0xff]
    %v1202 = vld [vmem:[#allocation9 + $0x9b8] sm:$0xff]
    %v1203 = vld [vmem:[#allocation9 + $0x9c0] sm:$0xff]
    %v1204 = vld [vmem:[#allocation9 + $0x9c8] sm:$0xff]
    %v1205 = vld [vmem:[#allocation9 + $0x9d0] sm:$0xff]
    %v1206 = vld [vmem:[#allocation9 + $0x9d8] sm:$0xff]
    %v1207 = vld [vmem:[#allocation9 + $0x9e0] sm:$0xff]
    %v1208 = vld [vmem:[#allocation9 + $0x9e8] sm:$0xff]
    %v1209 = vld [vmem:[#allocation9 + $0x9f0] sm:$0xff]
    %v1210 = vld [vmem:[#allocation9 + $0x9f8] sm:$0xff]
    %v1211 = vld [vmem:[#allocation9 + $0xa00] sm:$0xff]
    %v1212 = vld [vmem:[#allocation9 + $0xa08] sm:$0xff]
    %v1213 = vld [vmem:[#allocation9 + $0xa10] sm:$0xff]
    %v1214 = vld [vmem:[#allocation9 + $0xa18] sm:$0xff]
    %v1215 = vld [vmem:[#allocation9 + $0xa20] sm:$0xff]
    %v1216 = vld [vmem:[#allocation9 + $0xa28] sm:$0xff]
    %v1217 = vld [vmem:[#allocation9 + $0xa30] sm:$0xff]
    %v1218 = vld [vmem:[#allocation9 + $0xa38] sm:$0xff]
    %v1219 = vld [vmem:[#allocation9 + $0xa40] sm:$0xff]
    %v1220 = vld [vmem:[#allocation9 + $0xa48] sm:$0xff]
    %v1221 = vld [vmem:[#allocation9 + $0xa50] sm:$0xff]
    %v1222 = vld [vmem:[#allocation9 + $0xa58] sm:$0xff]
    %v1223 = vld [vmem:[#allocation9 + $0xa60] sm:$0xff]
    %v1224 = vld [vmem:[#allocation9 + $0xa68] sm:$0xff]
    %v1225 = vld [vmem:[#allocation9 + $0xa70] sm:$0xff]
    %v1226 = vld [vmem:[#allocation9 + $0xa78] sm:$0xff]
    %v1227 = vld [vmem:[#allocation9 + $0xa80] sm:$0xff]
    %v1228 = vld [vmem:[#allocation9 + $0xa88] sm:$0xff]
    %v1229 = vld [vmem:[#allocation9 + $0xa90] sm:$0xff]
    %v1230 = vld [vmem:[#allocation9 + $0xa98] sm:$0xff]
    %v1231 = vld [vmem:[#allocation9 + $0xaa0] sm:$0xff]
    %v1232 = vld [vmem:[#allocation9 + $0xaa8] sm:$0xff]
    %v1233 = vld [vmem:[#allocation9 + $0xab0] sm:$0xff]
    %v1234 = vld [vmem:[#allocation9 + $0xab8] sm:$0xff]
    %v1235 = vld [vmem:[#allocation9 + $0xac0] sm:$0xff]
    %v1236 = vld [vmem:[#allocation9 + $0xac8] sm:$0xff]
    %v1237 = vld [vmem:[#allocation9 + $0xad0] sm:$0xff]
    %v1238 = vld [vmem:[#allocation9 + $0xad8] sm:$0xff]
    %v1239 = vld [vmem:[#allocation9 + $0xae0] sm:$0xff]
    %v1240 = vld [vmem:[#allocation9 + $0xae8] sm:$0xff]
    %v1241 = vld [vmem:[#allocation9 + $0xaf0] sm:$0xff]
    %v1242 = vld [vmem:[#allocation9 + $0xaf8] sm:$0xff]
    %v1243 = vld [vmem:[#allocation9 + $0xb00] sm:$0xff]
    %v1244 = vld [vmem:[#allocation9 + $0xb08] sm:$0xff]
    %v1245 = vld [vmem:[#allocation9 + $0xb10] sm:$0xff]
    %v1246 = vld [vmem:[#allocation9 + $0xb18] sm:$0xff]
    %v1247 = vld [vmem:[#allocation9 + $0xb20] sm:$0xff]
    %v1248 = vld [vmem:[#allocation9 + $0xb28] sm:$0xff]
    %v1249 = vld [vmem:[#allocation9 + $0xb30] sm:$0xff]
    %v1250 = vld [vmem:[#allocation9 + $0xb38] sm:$0xff]
    %v1251 = vld [vmem:[#allocation9 + $0xb40] sm:$0xff]
    %v1252 = vld [vmem:[#allocation9 + $0xb48] sm:$0xff]
    %v1253 = vld [vmem:[#allocation9 + $0xb50] sm:$0xff]
    %v1254 = vld [vmem:[#allocation9 + $0xb58] sm:$0xff]
    %v1255 = vld [vmem:[#allocation9 + $0xb60] sm:$0xff]
    %v1256 = vld [vmem:[#allocation9 + $0xb68] sm:$0xff]
    %v1257 = vld [vmem:[#allocation9 + $0xb70] sm:$0xff]
    %v1258 = vld [vmem:[#allocation9 + $0xb78] sm:$0xff]
    %v1259 = vld [vmem:[#allocation9 + $0xb80] sm:$0xff]
    %v1260 = vld [vmem:[#allocation9 + $0xb88] sm:$0xff]
    %v1261 = vld [vmem:[#allocation9 + $0xb90] sm:$0xff]
    %v1262 = vld [vmem:[#allocation9 + $0xb98] sm:$0xff]
    %v1263 = vld [vmem:[#allocation9 + $0xba0] sm:$0xff]
    %v1264 = vld [vmem:[#allocation9 + $0xba8] sm:$0xff]
    %v1265 = vld [vmem:[#allocation9 + $0xbb0] sm:$0xff]
    %v1266 = vld [vmem:[#allocation9 + $0xbb8] sm:$0xff]
    %v1267 = vld [vmem:[#allocation9 + $0xbc0] sm:$0xff]
    %v1268 = vld [vmem:[#allocation9 + $0xbc8] sm:$0xff]
    %v1269 = vld [vmem:[#allocation9 + $0xbd0] sm:$0xff]
    %v1270 = vld [vmem:[#allocation9 + $0xbd8] sm:$0xff]
    %v1271 = vld [vmem:[#allocation9 + $0xbe0] sm:$0xff]
    %v1272 = vld [vmem:[#allocation9 + $0xbe8] sm:$0xff]
    %v1273 = vld [vmem:[#allocation9 + $0xbf0] sm:$0xff]
    %v1274 = vld [vmem:[#allocation9 + $0xbf8] sm:$0xff]
    %v1275 = vld [vmem:[#allocation9 + $0xc00] sm:$0xff]
    %v1276 = vld [vmem:[#allocation9 + $0xc08] sm:$0xff]
    %v1277 = vld [vmem:[#allocation9 + $0xc10] sm:$0xff]
    %v1278 = vld [vmem:[#allocation9 + $0xc18] sm:$0xff]
    %v1279 = vld [vmem:[#allocation9 + $0xc20] sm:$0xff]
    %v1280 = vld [vmem:[#allocation9 + $0xc28] sm:$0xff]
    %v1281 = vld [vmem:[#allocation9 + $0xc30] sm:$0xff]
    %v1282 = vld [vmem:[#allocation9 + $0xc38] sm:$0xff]
    %v1283 = vld [vmem:[#allocation9 + $0xc40] sm:$0xff]
    %v1284 = vld [vmem:[#allocation9 + $0xc48] sm:$0xff]
    %v1285 = vld [vmem:[#allocation9 + $0xc50] sm:$0xff]
    %v1286 = vld [vmem:[#allocation9 + $0xc58] sm:$0xff]
    %v1287 = vld [vmem:[#allocation9 + $0xc60] sm:$0xff]
    %v1288 = vld [vmem:[#allocation9 + $0xc68] sm:$0xff]
    %v1289 = vld [vmem:[#allocation9 + $0xc70] sm:$0xff]
    %v1290 = vld [vmem:[#allocation9 + $0xc78] sm:$0xff]
    %v1291 = vld [vmem:[#allocation9 + $0xc80] sm:$0xff]
    %v1292 = vld [vmem:[#allocation9 + $0xc88] sm:$0xff]
    %v1293 = vld [vmem:[#allocation9 + $0xc90] sm:$0xff]
    %v1294 = vld [vmem:[#allocation9 + $0xc98] sm:$0xff]
    %v1295 = vld [vmem:[#allocation9 + $0xca0] sm:$0xff]
    %v1296 = vld [vmem:[#allocation9 + $0xca8] sm:$0xff]
    %v1297 = vld [vmem:[#allocation9 + $0xcb0] sm:$0xff]
    %v1298 = vld [vmem:[#allocation9 + $0xcb8] sm:$0xff]
    %v1299 = vld [vmem:[#allocation9 + $0xcc0] sm:$0xff]
    %v1300 = vld [vmem:[#allocation9 + $0xcc8] sm:$0xff]
    %v1301 = vld [vmem:[#allocation9 + $0xcd0] sm:$0xff]
    %v1302 = vld [vmem:[#allocation9 + $0xcd8] sm:$0xff]
    %v1303 = vld [vmem:[#allocation9 + $0xce0] sm:$0xff]
    %v1304 = vld [vmem:[#allocation9 + $0xce8] sm:$0xff]
    %v1305 = vld [vmem:[#allocation9 + $0xcf0] sm:$0xff]
    %v1306 = vld [vmem:[#allocation9 + $0xcf8] sm:$0xff]
    %v1307 = vld [vmem:[#allocation9 + $0xd00] sm:$0xff]
    %v1308 = vld [vmem:[#allocation9 + $0xd08] sm:$0xff]
    %v1309 = vld [vmem:[#allocation9 + $0xd10] sm:$0xff]
    %v1310 = vld [vmem:[#allocation9 + $0xd18] sm:$0xff]
    %v1311 = vld [vmem:[#allocation9 + $0xd20] sm:$0xff]
    %v1312 = vld [vmem:[#allocation9 + $0xd28] sm:$0xff]
    %v1313 = vld [vmem:[#allocation9 + $0xd30] sm:$0xff]
    %v1314 = vld [vmem:[#allocation9 + $0xd38] sm:$0xff]
    %v1315 = vld [vmem:[#allocation9 + $0xd40] sm:$0xff]
    %v1316 = vld [vmem:[#allocation9 + $0xd48] sm:$0xff]
    %v1317 = vld [vmem:[#allocation9 + $0xd50] sm:$0xff]
    %v1318 = vld [vmem:[#allocation9 + $0xd58] sm:$0xff]
    %v1319 = vld [vmem:[#allocation9 + $0xd60] sm:$0xff]
    %v1320 = vld [vmem:[#allocation9 + $0xd68] sm:$0xff]
    %v1321 = vld [vmem:[#allocation9 + $0xd70] sm:$0xff]
    %v1322 = vld [vmem:[#allocation9 + $0xd78] sm:$0xff]
    %v1323 = vld [vmem:[#allocation9 + $0xd80] sm:$0xff]
    %v1324 = vld [vmem:[#allocation9 + $0xd88] sm:$0xff]
    %v1325 = vld [vmem:[#allocation9 + $0xd90] sm:$0xff]
    %v1326 = vld [vmem:[#allocation9 + $0xd98] sm:$0xff]
    %v1327 = vld [vmem:[#allocation9 + $0xda0] sm:$0xff]
    %v1328 = vld [vmem:[#allocation9 + $0xda8] sm:$0xff]
    %v1329 = vld [vmem:[#allocation9 + $0xdb0] sm:$0xff]
    %v1330 = vld [vmem:[#allocation9 + $0xdb8] sm:$0xff]
    %v1331 = vld [vmem:[#allocation9 + $0xdc0] sm:$0xff]
    %v1332 = vld [vmem:[#allocation9 + $0xdc8] sm:$0xff]
    %v1333 = vld [vmem:[#allocation9 + $0xdd0] sm:$0xff]
    %v1334 = vld [vmem:[#allocation9 + $0xdd8] sm:$0xff]
    %v1335 = vld [vmem:[#allocation9 + $0xde0] sm:$0xff]
    %v1336 = vld [vmem:[#allocation9 + $0xde8] sm:$0xff]
    %v1337 = vld [vmem:[#allocation9 + $0xdf0] sm:$0xff]
    %v1338 = vld [vmem:[#allocation9 + $0xdf8] sm:$0xff]
    %v1339 = vld [vmem:[#allocation9 + $0xe00] sm:$0xff]
    %v1340 = vld [vmem:[#allocation9 + $0xe08] sm:$0xff]
    %v1341 = vld [vmem:[#allocation9 + $0xe10] sm:$0xff]
    %v1342 = vld [vmem:[#allocation9 + $0xe18] sm:$0xff]
    %v1343 = vld [vmem:[#allocation9 + $0xe20] sm:$0xff]
    %v1344 = vld [vmem:[#allocation9 + $0xe28] sm:$0xff]
    %v1345 = vld [vmem:[#allocation9 + $0xe30] sm:$0xff]
    %v1346 = vld [vmem:[#allocation9 + $0xe38] sm:$0xff]
    %v1347 = vld [vmem:[#allocation9 + $0xe40] sm:$0xff]
    %v1348 = vld [vmem:[#allocation9 + $0xe48] sm:$0xff]
    %v1349 = vld [vmem:[#allocation9 + $0xe50] sm:$0xff]
    %v1350 = vld [vmem:[#allocation9 + $0xe58] sm:$0xff]
    %v1351 = vld [vmem:[#allocation9 + $0xe60] sm:$0xff]
    %v1352 = vld [vmem:[#allocation9 + $0xe68] sm:$0xff]
    %v1353 = vld [vmem:[#allocation9 + $0xe70] sm:$0xff]
    %v1354 = vld [vmem:[#allocation9 + $0xe78] sm:$0xff]
    %v1355 = vld [vmem:[#allocation9 + $0xe80] sm:$0xff]
    %v1356 = vld [vmem:[#allocation9 + $0xe88] sm:$0xff]
    %v1357 = vld [vmem:[#allocation9 + $0xe90] sm:$0xff]
    %v1358 = vld [vmem:[#allocation9 + $0xe98] sm:$0xff]
    %v1359 = vld [vmem:[#allocation9 + $0xea0] sm:$0xff]
    %v1360 = vld [vmem:[#allocation9 + $0xea8] sm:$0xff]
    %v1361 = vld [vmem:[#allocation9 + $0xeb0] sm:$0xff]
    %v1362 = vld [vmem:[#allocation9 + $0xeb8] sm:$0xff]
    %v1363 = vld [vmem:[#allocation9 + $0xec0] sm:$0xff]
    %v1364 = vld [vmem:[#allocation9 + $0xec8] sm:$0xff]
    %v1365 = vld [vmem:[#allocation9 + $0xed0] sm:$0xff]
    %v1366 = vld [vmem:[#allocation9 + $0xed8] sm:$0xff]
    %v1367 = vld [vmem:[#allocation9 + $0xee0] sm:$0xff]
    %v1368 = vld [vmem:[#allocation9 + $0xee8] sm:$0xff]
    %v1369 = vld [vmem:[#allocation9 + $0xef0] sm:$0xff]
    %v1370 = vld [vmem:[#allocation9 + $0xef8] sm:$0xff]
    %v1371 = vld [vmem:[#allocation9 + $0xf00] sm:$0xff]
    %v1372 = vld [vmem:[#allocation9 + $0xf08] sm:$0xff]
    %v1373 = vld [vmem:[#allocation9 + $0xf10] sm:$0xff]
    %v1374 = vld [vmem:[#allocation9 + $0xf18] sm:$0xff]
    %v1375 = vld [vmem:[#allocation9 + $0xf20] sm:$0xff]
    %v1376 = vld [vmem:[#allocation9 + $0xf28] sm:$0xff]
    %v1377 = vld [vmem:[#allocation9 + $0xf30] sm:$0xff]
    %v1378 = vld [vmem:[#allocation9 + $0xf38] sm:$0xff]
    %v1379 = vld [vmem:[#allocation9 + $0xf40] sm:$0xff]
    %v1380 = vld [vmem:[#allocation9 + $0xf48] sm:$0xff]
    %v1381 = vld [vmem:[#allocation9 + $0xf50] sm:$0xff]
    %v1382 = vld [vmem:[#allocation9 + $0xf58] sm:$0xff]
    %v1383 = vld [vmem:[#allocation9 + $0xf60] sm:$0xff]
    %v1384 = vld [vmem:[#allocation9 + $0xf68] sm:$0xff]
    %v1385 = vld [vmem:[#allocation9 + $0xf70] sm:$0xff]
    %v1386 = vld [vmem:[#allocation9 + $0xf78] sm:$0xff]
    %v1387 = vld [vmem:[#allocation9 + $0xf80] sm:$0xff]
    %v1388 = vld [vmem:[#allocation9 + $0xf88] sm:$0xff]
    %v1389 = vld [vmem:[#allocation9 + $0xf90] sm:$0xff]
    %v1390 = vld [vmem:[#allocation9 + $0xf98] sm:$0xff]
    %v1391 = vld [vmem:[#allocation9 + $0xfa0] sm:$0xff]
    %v1392 = vld [vmem:[#allocation9 + $0xfa8] sm:$0xff]
    %v1393 = vld [vmem:[#allocation9 + $0xfb0] sm:$0xff]
    %v1394 = vld [vmem:[#allocation9 + $0xfb8] sm:$0xff]
    %v1395 = vld [vmem:[#allocation9 + $0xfc0] sm:$0xff]
    %v1396 = vld [vmem:[#allocation9 + $0xfc8] sm:$0xff]
    %v1397 = vld [vmem:[#allocation9 + $0xfd0] sm:$0xff]
    %v1398 = vld [vmem:[#allocation9 + $0xfd8] sm:$0xff]
    %v1399 = vld [vmem:[#allocation9 + $0xfe0] sm:$0xff]
    %v1400 = vld [vmem:[#allocation9 + $0xfe8] sm:$0xff]
    %v1401 = vld [vmem:[#allocation9 + $0xff0] sm:$0xff]
    %v1402 = vld [vmem:[#allocation9 + $0xff8] sm:$0xff]
    %v1403 = vld [vmem:[#allocation10] sm:$0xff]
    %v1404 = vld [vmem:[#allocation10 + $0x8] sm:$0xff]
    %v1405 = vld [vmem:[#allocation10 + $0x10] sm:$0xff]
    %v1406 = vld [vmem:[#allocation10 + $0x18] sm:$0xff]
    %v1411 = vlaneseq
    %v1412 = vshrl.u32 %v1411, 7
    %v1413 = vsub.s32 0, %v1412
    %v1414 = vrot.slane %v1403, %v1413
    %v1415 = vlaneseq
    %v1416 = vshrl.u32 %v1415, 7
    %v1417 = vsub.s32 1, %v1416
    %v1418 = vrot.slane %v1403, %v1417
    %v1419 = vlaneseq
    %v1420 = vshrl.u32 %v1419, 7
    %v1421 = vsub.s32 2, %v1420
    %v1422 = vrot.slane %v1403, %v1421
    %v1423 = vlaneseq
    %v1424 = vshrl.u32 %v1423, 7
    %v1425 = vsub.s32 3, %v1424
    %v1426 = vrot.slane %v1403, %v1425
    %v1427 = vlaneseq
    %v1428 = vshrl.u32 %v1427, 7
    %v1429 = vsub.s32 4, %v1428
    %v1430 = vrot.slane %v1403, %v1429
    %v1431 = vlaneseq
    %v1432 = vshrl.u32 %v1431, 7
    %v1433 = vsub.s32 5, %v1432
    %v1434 = vrot.slane %v1403, %v1433
    %v1435 = vlaneseq
    %v1436 = vshrl.u32 %v1435, 7
    %v1437 = vsub.s32 6, %v1436
    %v1438 = vrot.slane %v1403, %v1437
    %v1439 = vlaneseq
    %v1440 = vshrl.u32 %v1439, 7
    %v1441 = vsub.s32 7, %v1440
    %v1442 = vrot.slane %v1403, %v1441
    %v1443 = vlaneseq
    %v1444 = vshrl.u32 %v1443, 7
    %v1445 = vsub.s32 0, %v1444
    %v1446 = vrot.slane %v1404, %v1445
    %v1447 = vlaneseq
    %v1448 = vshrl.u32 %v1447, 7
    %v1449 = vsub.s32 1, %v1448
    %v1450 = vrot.slane %v1404, %v1449
    %v1451 = vlaneseq
    %v1452 = vshrl.u32 %v1451, 7
    %v1453 = vsub.s32 2, %v1452
    %v1454 = vrot.slane %v1404, %v1453
    %v1455 = vlaneseq
    %v1456 = vshrl.u32 %v1455, 7
    %v1457 = vsub.s32 3, %v1456
    %v1458 = vrot.slane %v1404, %v1457
    %v1459 = vlaneseq
    %v1460 = vshrl.u32 %v1459, 7
    %v1461 = vsub.s32 4, %v1460
    %v1462 = vrot.slane %v1404, %v1461
    %v1463 = vlaneseq
    %v1464 = vshrl.u32 %v1463, 7
    %v1465 = vsub.s32 5, %v1464
    %v1466 = vrot.slane %v1404, %v1465
    %v1467 = vlaneseq
    %v1468 = vshrl.u32 %v1467, 7
    %v1469 = vsub.s32 6, %v1468
    %v1470 = vrot.slane %v1404, %v1469
    %v1471 = vlaneseq
    %v1472 = vshrl.u32 %v1471, 7
    %v1473 = vsub.s32 7, %v1472
    %v1474 = vrot.slane %v1404, %v1473
    %v1475 = vlaneseq
    %v1476 = vshrl.u32 %v1475, 7
    %v1477 = vsub.s32 0, %v1476
    %v1478 = vrot.slane %v1405, %v1477
    %v1479 = vlaneseq
    %v1480 = vshrl.u32 %v1479, 7
    %v1481 = vsub.s32 1, %v1480
    %v1482 = vrot.slane %v1405, %v1481
    %v1483 = vlaneseq
    %v1484 = vshrl.u32 %v1483, 7
    %v1485 = vsub.s32 2, %v1484
    %v1486 = vrot.slane %v1405, %v1485
    %v1487 = vlaneseq
    %v1488 = vshrl.u32 %v1487, 7
    %v1489 = vsub.s32 3, %v1488
    %v1490 = vrot.slane %v1405, %v1489
    %v1491 = vlaneseq
    %v1492 = vshrl.u32 %v1491, 7
    %v1493 = vsub.s32 4, %v1492
    %v1494 = vrot.slane %v1405, %v1493
    %v1495 = vlaneseq
    %v1496 = vshrl.u32 %v1495, 7
    %v1497 = vsub.s32 5, %v1496
    %v1498 = vrot.slane %v1405, %v1497
    %v1499 = vlaneseq
    %v1500 = vshrl.u32 %v1499, 7
    %v1501 = vsub.s32 6, %v1500
    %v1502 = vrot.slane %v1405, %v1501
    %v1503 = vlaneseq
    %v1504 = vshrl.u32 %v1503, 7
    %v1505 = vsub.s32 7, %v1504
    %v1506 = vrot.slane %v1405, %v1505
    %v1507 = vlaneseq
    %v1508 = vshrl.u32 %v1507, 7
    %v1509 = vsub.s32 0, %v1508
    %v1510 = vrot.slane %v1406, %v1509
    %v1511 = vlaneseq
    %v1512 = vshrl.u32 %v1511, 7
    %v1513 = vsub.s32 1, %v1512
    %v1514 = vrot.slane %v1406, %v1513
    %v1515 = vlaneseq
    %v1516 = vshrl.u32 %v1515, 7
    %v1517 = vsub.s32 2, %v1516
    %v1518 = vrot.slane %v1406, %v1517
    %v1519 = vlaneseq
    %v1520 = vshrl.u32 %v1519, 7
    %v1521 = vsub.s32 3, %v1520
    %v1522 = vrot.slane %v1406, %v1521
    %v1523 = vlaneseq
    %v1524 = vshrl.u32 %v1523, 7
    %v1525 = vsub.s32 4, %v1524
    %v1526 = vrot.slane %v1406, %v1525
    %v1527 = vlaneseq
    %v1528 = vshrl.u32 %v1527, 7
    %v1529 = vsub.s32 5, %v1528
    %v1530 = vrot.slane %v1406, %v1529
    %v1531 = vlaneseq
    %v1532 = vshrl.u32 %v1531, 7
    %v1533 = vsub.s32 6, %v1532
    %v1534 = vrot.slane %v1406, %v1533
    %v1535 = vlaneseq
    %v1536 = vshrl.u32 %v1535, 7
    %v1537 = vsub.s32 7, %v1536
    %v1538 = vrot.slane %v1406, %v1537
    %v2083 = vunpack.c.l.b16 %v891
    %v2084 = vunpack.c.h.b16 %v891
    %v2085 = vunpack.c.l.b16 %v892
    %v2086 = vunpack.c.h.b16 %v892
    %v2087 = vunpack.c.l.b16 %v893
    %v2088 = vunpack.c.h.b16 %v893
    %v2089 = vunpack.c.l.b16 %v894
    %v2090 = vunpack.c.h.b16 %v894
    %v2091 = vunpack.c.l.b16 %v895
    %v2092 = vunpack.c.h.b16 %v895
    %v2093 = vunpack.c.l.b16 %v896
    %v2094 = vunpack.c.h.b16 %v896
    %v2095 = vunpack.c.l.b16 %v897
    %v2096 = vunpack.c.h.b16 %v897
    %v2097 = vunpack.c.l.b16 %v898
    %v2098 = vunpack.c.h.b16 %v898
    %v2099 = vunpack.c.l.b16 %v899
    %v2100 = vunpack.c.h.b16 %v899
    %v2101 = vunpack.c.l.b16 %v900
    %v2102 = vunpack.c.h.b16 %v900
    %v2103 = vunpack.c.l.b16 %v901
    %v2104 = vunpack.c.h.b16 %v901
    %v2105 = vunpack.c.l.b16 %v902
    %v2106 = vunpack.c.h.b16 %v902
    %v2107 = vunpack.c.l.b16 %v903
    %v2108 = vunpack.c.h.b16 %v903
    %v2109 = vunpack.c.l.b16 %v904
    %v2110 = vunpack.c.h.b16 %v904
    %v2111 = vunpack.c.l.b16 %v905
    %v2112 = vunpack.c.h.b16 %v905
    %v2113 = vunpack.c.l.b16 %v906
    %v2114 = vunpack.c.h.b16 %v906
    %v2115 = vunpack.c.l.b16 %v907
    %v2116 = vunpack.c.h.b16 %v907
    %v2117 = vunpack.c.l.b16 %v908
    %v2118 = vunpack.c.h.b16 %v908
    %v2119 = vunpack.c.l.b16 %v909
    %v2120 = vunpack.c.h.b16 %v909
    %v2121 = vunpack.c.l.b16 %v910
    %v2122 = vunpack.c.h.b16 %v910
    %v2123 = vunpack.c.l.b16 %v911
    %v2124 = vunpack.c.h.b16 %v911
    %v2125 = vunpack.c.l.b16 %v912
    %v2126 = vunpack.c.h.b16 %v912
    %v2127 = vunpack.c.l.b16 %v913
    %v2128 = vunpack.c.h.b16 %v913
    %v2129 = vunpack.c.l.b16 %v914
    %v2130 = vunpack.c.h.b16 %v914
    %v2131 = vunpack.c.l.b16 %v915
    %v2132 = vunpack.c.h.b16 %v915
    %v2133 = vunpack.c.l.b16 %v916
    %v2134 = vunpack.c.h.b16 %v916
    %v2135 = vunpack.c.l.b16 %v917
    %v2136 = vunpack.c.h.b16 %v917
    %v2137 = vunpack.c.l.b16 %v918
    %v2138 = vunpack.c.h.b16 %v918
    %v2139 = vunpack.c.l.b16 %v919
    %v2140 = vunpack.c.h.b16 %v919
    %v2141 = vunpack.c.l.b16 %v920
    %v2142 = vunpack.c.h.b16 %v920
    %v2143 = vunpack.c.l.b16 %v921
    %v2144 = vunpack.c.h.b16 %v921
    %v2145 = vunpack.c.l.b16 %v922
    %v2146 = vunpack.c.h.b16 %v922
    %v2147 = vunpack.c.l.b16 %v923
    %v2148 = vunpack.c.h.b16 %v923
    %v2149 = vunpack.c.l.b16 %v924
    %v2150 = vunpack.c.h.b16 %v924
    %v2151 = vunpack.c.l.b16 %v925
    %v2152 = vunpack.c.h.b16 %v925
    %v2153 = vunpack.c.l.b16 %v926
    %v2154 = vunpack.c.h.b16 %v926
    %v2155 = vunpack.c.l.b16 %v927
    %v2156 = vunpack.c.h.b16 %v927
    %v2157 = vunpack.c.l.b16 %v928
    %v2158 = vunpack.c.h.b16 %v928
    %v2159 = vunpack.c.l.b16 %v929
    %v2160 = vunpack.c.h.b16 %v929
    %v2161 = vunpack.c.l.b16 %v930
    %v2162 = vunpack.c.h.b16 %v930
    %v2163 = vunpack.c.l.b16 %v931
    %v2164 = vunpack.c.h.b16 %v931
    %v2165 = vunpack.c.l.b16 %v932
    %v2166 = vunpack.c.h.b16 %v932
    %v2167 = vunpack.c.l.b16 %v933
    %v2168 = vunpack.c.h.b16 %v933
    %v2169 = vunpack.c.l.b16 %v934
    %v2170 = vunpack.c.h.b16 %v934
    %v2171 = vunpack.c.l.b16 %v935
    %v2172 = vunpack.c.h.b16 %v935
    %v2173 = vunpack.c.l.b16 %v936
    %v2174 = vunpack.c.h.b16 %v936
    %v2175 = vunpack.c.l.b16 %v937
    %v2176 = vunpack.c.h.b16 %v937
    %v2177 = vunpack.c.l.b16 %v938
    %v2178 = vunpack.c.h.b16 %v938
    %v2179 = vunpack.c.l.b16 %v939
    %v2180 = vunpack.c.h.b16 %v939
    %v2181 = vunpack.c.l.b16 %v940
    %v2182 = vunpack.c.h.b16 %v940
    %v2183 = vunpack.c.l.b16 %v941
    %v2184 = vunpack.c.h.b16 %v941
    %v2185 = vunpack.c.l.b16 %v942
    %v2186 = vunpack.c.h.b16 %v942
    %v2187 = vunpack.c.l.b16 %v943
    %v2188 = vunpack.c.h.b16 %v943
    %v2189 = vunpack.c.l.b16 %v944
    %v2190 = vunpack.c.h.b16 %v944
    %v2191 = vunpack.c.l.b16 %v945
    %v2192 = vunpack.c.h.b16 %v945
    %v2193 = vunpack.c.l.b16 %v946
    %v2194 = vunpack.c.h.b16 %v946
    %v2195 = vunpack.c.l.b16 %v947
    %v2196 = vunpack.c.h.b16 %v947
    %v2197 = vunpack.c.l.b16 %v948
    %v2198 = vunpack.c.h.b16 %v948
    %v2199 = vunpack.c.l.b16 %v949
    %v2200 = vunpack.c.h.b16 %v949
    %v2201 = vunpack.c.l.b16 %v950
    %v2202 = vunpack.c.h.b16 %v950
    %v2203 = vunpack.c.l.b16 %v951
    %v2204 = vunpack.c.h.b16 %v951
    %v2205 = vunpack.c.l.b16 %v952
    %v2206 = vunpack.c.h.b16 %v952
    %v2207 = vunpack.c.l.b16 %v953
    %v2208 = vunpack.c.h.b16 %v953
    %v2209 = vunpack.c.l.b16 %v954
    %v2210 = vunpack.c.h.b16 %v954
    %v2211 = vunpack.c.l.b16 %v955
    %v2212 = vunpack.c.h.b16 %v955
    %v2213 = vunpack.c.l.b16 %v956
    %v2214 = vunpack.c.h.b16 %v956
    %v2215 = vunpack.c.l.b16 %v957
    %v2216 = vunpack.c.h.b16 %v957
    %v2217 = vunpack.c.l.b16 %v958
    %v2218 = vunpack.c.h.b16 %v958
    %v2219 = vunpack.c.l.b16 %v959
    %v2220 = vunpack.c.h.b16 %v959
    %v2221 = vunpack.c.l.b16 %v960
    %v2222 = vunpack.c.h.b16 %v960
    %v2223 = vunpack.c.l.b16 %v961
    %v2224 = vunpack.c.h.b16 %v961
    %v2225 = vunpack.c.l.b16 %v962
    %v2226 = vunpack.c.h.b16 %v962
    %v2227 = vunpack.c.l.b16 %v963
    %v2228 = vunpack.c.h.b16 %v963
    %v2229 = vunpack.c.l.b16 %v964
    %v2230 = vunpack.c.h.b16 %v964
    %v2231 = vunpack.c.l.b16 %v965
    %v2232 = vunpack.c.h.b16 %v965
    %v2233 = vunpack.c.l.b16 %v966
    %v2234 = vunpack.c.h.b16 %v966
    %v2235 = vunpack.c.l.b16 %v967
    %v2236 = vunpack.c.h.b16 %v967
    %v2237 = vunpack.c.l.b16 %v968
    %v2238 = vunpack.c.h.b16 %v968
    %v2239 = vunpack.c.l.b16 %v969
    %v2240 = vunpack.c.h.b16 %v969
    %v2241 = vunpack.c.l.b16 %v970
    %v2242 = vunpack.c.h.b16 %v970
    %v2243 = vunpack.c.l.b16 %v971
    %v2244 = vunpack.c.h.b16 %v971
    %v2245 = vunpack.c.l.b16 %v972
    %v2246 = vunpack.c.h.b16 %v972
    %v2247 = vunpack.c.l.b16 %v973
    %v2248 = vunpack.c.h.b16 %v973
    %v2249 = vunpack.c.l.b16 %v974
    %v2250 = vunpack.c.h.b16 %v974
    %v2251 = vunpack.c.l.b16 %v975
    %v2252 = vunpack.c.h.b16 %v975
    %v2253 = vunpack.c.l.b16 %v976
    %v2254 = vunpack.c.h.b16 %v976
    %v2255 = vunpack.c.l.b16 %v977
    %v2256 = vunpack.c.h.b16 %v977
    %v2257 = vunpack.c.l.b16 %v978
    %v2258 = vunpack.c.h.b16 %v978
    %v2259 = vunpack.c.l.b16 %v979
    %v2260 = vunpack.c.h.b16 %v979
    %v2261 = vunpack.c.l.b16 %v980
    %v2262 = vunpack.c.h.b16 %v980
    %v2263 = vunpack.c.l.b16 %v981
    %v2264 = vunpack.c.h.b16 %v981
    %v2265 = vunpack.c.l.b16 %v982
    %v2266 = vunpack.c.h.b16 %v982
    %v2267 = vunpack.c.l.b16 %v983
    %v2268 = vunpack.c.h.b16 %v983
    %v2269 = vunpack.c.l.b16 %v984
    %v2270 = vunpack.c.h.b16 %v984
    %v2271 = vunpack.c.l.b16 %v985
    %v2272 = vunpack.c.h.b16 %v985
    %v2273 = vunpack.c.l.b16 %v986
    %v2274 = vunpack.c.h.b16 %v986
    %v2275 = vunpack.c.l.b16 %v987
    %v2276 = vunpack.c.h.b16 %v987
    %v2277 = vunpack.c.l.b16 %v988
    %v2278 = vunpack.c.h.b16 %v988
    %v2279 = vunpack.c.l.b16 %v989
    %v2280 = vunpack.c.h.b16 %v989
    %v2281 = vunpack.c.l.b16 %v990
    %v2282 = vunpack.c.h.b16 %v990
    %v2283 = vunpack.c.l.b16 %v991
    %v2284 = vunpack.c.h.b16 %v991
    %v2285 = vunpack.c.l.b16 %v992
    %v2286 = vunpack.c.h.b16 %v992
    %v2287 = vunpack.c.l.b16 %v993
    %v2288 = vunpack.c.h.b16 %v993
    %v2289 = vunpack.c.l.b16 %v994
    %v2290 = vunpack.c.h.b16 %v994
    %v2291 = vunpack.c.l.b16 %v995
    %v2292 = vunpack.c.h.b16 %v995
    %v2293 = vunpack.c.l.b16 %v996
    %v2294 = vunpack.c.h.b16 %v996
    %v2295 = vunpack.c.l.b16 %v997
    %v2296 = vunpack.c.h.b16 %v997
    %v2297 = vunpack.c.l.b16 %v998
    %v2298 = vunpack.c.h.b16 %v998
    %v2299 = vunpack.c.l.b16 %v999
    %v2300 = vunpack.c.h.b16 %v999
    %v2301 = vunpack.c.l.b16 %v1000
    %v2302 = vunpack.c.h.b16 %v1000
    %v2303 = vunpack.c.l.b16 %v1001
    %v2304 = vunpack.c.h.b16 %v1001
    %v2305 = vunpack.c.l.b16 %v1002
    %v2306 = vunpack.c.h.b16 %v1002
    %v2307 = vunpack.c.l.b16 %v1003
    %v2308 = vunpack.c.h.b16 %v1003
    %v2309 = vunpack.c.l.b16 %v1004
    %v2310 = vunpack.c.h.b16 %v1004
    %v2311 = vunpack.c.l.b16 %v1005
    %v2312 = vunpack.c.h.b16 %v1005
    %v2313 = vunpack.c.l.b16 %v1006
    %v2314 = vunpack.c.h.b16 %v1006
    %v2315 = vunpack.c.l.b16 %v1007
    %v2316 = vunpack.c.h.b16 %v1007
    %v2317 = vunpack.c.l.b16 %v1008
    %v2318 = vunpack.c.h.b16 %v1008
    %v2319 = vunpack.c.l.b16 %v1009
    %v2320 = vunpack.c.h.b16 %v1009
    %v2321 = vunpack.c.l.b16 %v1010
    %v2322 = vunpack.c.h.b16 %v1010
    %v2323 = vunpack.c.l.b16 %v1011
    %v2324 = vunpack.c.h.b16 %v1011
    %v2325 = vunpack.c.l.b16 %v1012
    %v2326 = vunpack.c.h.b16 %v1012
    %v2327 = vunpack.c.l.b16 %v1013
    %v2328 = vunpack.c.h.b16 %v1013
    %v2329 = vunpack.c.l.b16 %v1014
    %v2330 = vunpack.c.h.b16 %v1014
    %v2331 = vunpack.c.l.b16 %v1015
    %v2332 = vunpack.c.h.b16 %v1015
    %v2333 = vunpack.c.l.b16 %v1016
    %v2334 = vunpack.c.h.b16 %v1016
    %v2335 = vunpack.c.l.b16 %v1017
    %v2336 = vunpack.c.h.b16 %v1017
    %v2337 = vunpack.c.l.b16 %v1018
    %v2338 = vunpack.c.h.b16 %v1018
    %v2339 = vunpack.c.l.b16 %v1019
    %v2340 = vunpack.c.h.b16 %v1019
    %v2341 = vunpack.c.l.b16 %v1020
    %v2342 = vunpack.c.h.b16 %v1020
    %v2343 = vunpack.c.l.b16 %v1021
    %v2344 = vunpack.c.h.b16 %v1021
    %v2345 = vunpack.c.l.b16 %v1022
    %v2346 = vunpack.c.h.b16 %v1022
    %v2347 = vunpack.c.l.b16 %v1023
    %v2348 = vunpack.c.h.b16 %v1023
    %v2349 = vunpack.c.l.b16 %v1024
    %v2350 = vunpack.c.h.b16 %v1024
    %v2351 = vunpack.c.l.b16 %v1025
    %v2352 = vunpack.c.h.b16 %v1025
    %v2353 = vunpack.c.l.b16 %v1026
    %v2354 = vunpack.c.h.b16 %v1026
    %v2355 = vunpack.c.l.b16 %v1027
    %v2356 = vunpack.c.h.b16 %v1027
    %v2357 = vunpack.c.l.b16 %v1028
    %v2358 = vunpack.c.h.b16 %v1028
    %v2359 = vunpack.c.l.b16 %v1029
    %v2360 = vunpack.c.h.b16 %v1029
    %v2361 = vunpack.c.l.b16 %v1030
    %v2362 = vunpack.c.h.b16 %v1030
    %v2363 = vunpack.c.l.b16 %v1031
    %v2364 = vunpack.c.h.b16 %v1031
    %v2365 = vunpack.c.l.b16 %v1032
    %v2366 = vunpack.c.h.b16 %v1032
    %v2367 = vunpack.c.l.b16 %v1033
    %v2368 = vunpack.c.h.b16 %v1033
    %v2369 = vunpack.c.l.b16 %v1034
    %v2370 = vunpack.c.h.b16 %v1034
    %v2371 = vunpack.c.l.b16 %v1035
    %v2372 = vunpack.c.h.b16 %v1035
    %v2373 = vunpack.c.l.b16 %v1036
    %v2374 = vunpack.c.h.b16 %v1036
    %v2375 = vunpack.c.l.b16 %v1037
    %v2376 = vunpack.c.h.b16 %v1037
    %v2377 = vunpack.c.l.b16 %v1038
    %v2378 = vunpack.c.h.b16 %v1038
    %v2379 = vunpack.c.l.b16 %v1039
    %v2380 = vunpack.c.h.b16 %v1039
    %v2381 = vunpack.c.l.b16 %v1040
    %v2382 = vunpack.c.h.b16 %v1040
    %v2383 = vunpack.c.l.b16 %v1041
    %v2384 = vunpack.c.h.b16 %v1041
    %v2385 = vunpack.c.l.b16 %v1042
    %v2386 = vunpack.c.h.b16 %v1042
    %v2387 = vunpack.c.l.b16 %v1043
    %v2388 = vunpack.c.h.b16 %v1043
    %v2389 = vunpack.c.l.b16 %v1044
    %v2390 = vunpack.c.h.b16 %v1044
    %v2391 = vunpack.c.l.b16 %v1045
    %v2392 = vunpack.c.h.b16 %v1045
    %v2393 = vunpack.c.l.b16 %v1046
    %v2394 = vunpack.c.h.b16 %v1046
    %v2395 = vunpack.c.l.b16 %v1047
    %v2396 = vunpack.c.h.b16 %v1047
    %v2397 = vunpack.c.l.b16 %v1048
    %v2398 = vunpack.c.h.b16 %v1048
    %v2399 = vunpack.c.l.b16 %v1049
    %v2400 = vunpack.c.h.b16 %v1049
    %v2401 = vunpack.c.l.b16 %v1050
    %v2402 = vunpack.c.h.b16 %v1050
    %v2403 = vunpack.c.l.b16 %v1051
    %v2404 = vunpack.c.h.b16 %v1051
    %v2405 = vunpack.c.l.b16 %v1052
    %v2406 = vunpack.c.h.b16 %v1052
    %v2407 = vunpack.c.l.b16 %v1053
    %v2408 = vunpack.c.h.b16 %v1053
    %v2409 = vunpack.c.l.b16 %v1054
    %v2410 = vunpack.c.h.b16 %v1054
    %v2411 = vunpack.c.l.b16 %v1055
    %v2412 = vunpack.c.h.b16 %v1055
    %v2413 = vunpack.c.l.b16 %v1056
    %v2414 = vunpack.c.h.b16 %v1056
    %v2415 = vunpack.c.l.b16 %v1057
    %v2416 = vunpack.c.h.b16 %v1057
    %v2417 = vunpack.c.l.b16 %v1058
    %v2418 = vunpack.c.h.b16 %v1058
    %v2419 = vunpack.c.l.b16 %v1059
    %v2420 = vunpack.c.h.b16 %v1059
    %v2421 = vunpack.c.l.b16 %v1060
    %v2422 = vunpack.c.h.b16 %v1060
    %v2423 = vunpack.c.l.b16 %v1061
    %v2424 = vunpack.c.h.b16 %v1061
    %v2425 = vunpack.c.l.b16 %v1062
    %v2426 = vunpack.c.h.b16 %v1062
    %v2427 = vunpack.c.l.b16 %v1063
    %v2428 = vunpack.c.h.b16 %v1063
    %v2429 = vunpack.c.l.b16 %v1064
    %v2430 = vunpack.c.h.b16 %v1064
    %v2431 = vunpack.c.l.b16 %v1065
    %v2432 = vunpack.c.h.b16 %v1065
    %v2433 = vunpack.c.l.b16 %v1066
    %v2434 = vunpack.c.h.b16 %v1066
    %v2435 = vunpack.c.l.b16 %v1067
    %v2436 = vunpack.c.h.b16 %v1067
    %v2437 = vunpack.c.l.b16 %v1068
    %v2438 = vunpack.c.h.b16 %v1068
    %v2439 = vunpack.c.l.b16 %v1069
    %v2440 = vunpack.c.h.b16 %v1069
    %v2441 = vunpack.c.l.b16 %v1070
    %v2442 = vunpack.c.h.b16 %v1070
    %v2443 = vunpack.c.l.b16 %v1071
    %v2444 = vunpack.c.h.b16 %v1071
    %v2445 = vunpack.c.l.b16 %v1072
    %v2446 = vunpack.c.h.b16 %v1072
    %v2447 = vunpack.c.l.b16 %v1073
    %v2448 = vunpack.c.h.b16 %v1073
    %v2449 = vunpack.c.l.b16 %v1074
    %v2450 = vunpack.c.h.b16 %v1074
    %v2451 = vunpack.c.l.b16 %v1075
    %v2452 = vunpack.c.h.b16 %v1075
    %v2453 = vunpack.c.l.b16 %v1076
    %v2454 = vunpack.c.h.b16 %v1076
    %v2455 = vunpack.c.l.b16 %v1077
    %v2456 = vunpack.c.h.b16 %v1077
    %v2457 = vunpack.c.l.b16 %v1078
    %v2458 = vunpack.c.h.b16 %v1078
    %v2459 = vunpack.c.l.b16 %v1079
    %v2460 = vunpack.c.h.b16 %v1079
    %v2461 = vunpack.c.l.b16 %v1080
    %v2462 = vunpack.c.h.b16 %v1080
    %v2463 = vunpack.c.l.b16 %v1081
    %v2464 = vunpack.c.h.b16 %v1081
    %v2465 = vunpack.c.l.b16 %v1082
    %v2466 = vunpack.c.h.b16 %v1082
    %v2467 = vunpack.c.l.b16 %v1083
    %v2468 = vunpack.c.h.b16 %v1083
    %v2469 = vunpack.c.l.b16 %v1084
    %v2470 = vunpack.c.h.b16 %v1084
    %v2471 = vunpack.c.l.b16 %v1085
    %v2472 = vunpack.c.h.b16 %v1085
    %v2473 = vunpack.c.l.b16 %v1086
    %v2474 = vunpack.c.h.b16 %v1086
    %v2475 = vunpack.c.l.b16 %v1087
    %v2476 = vunpack.c.h.b16 %v1087
    %v2477 = vunpack.c.l.b16 %v1088
    %v2478 = vunpack.c.h.b16 %v1088
    %v2479 = vunpack.c.l.b16 %v1089
    %v2480 = vunpack.c.h.b16 %v1089
    %v2481 = vunpack.c.l.b16 %v1090
    %v2482 = vunpack.c.h.b16 %v1090
    %v2483 = vunpack.c.l.b16 %v1091
    %v2484 = vunpack.c.h.b16 %v1091
    %v2485 = vunpack.c.l.b16 %v1092
    %v2486 = vunpack.c.h.b16 %v1092
    %v2487 = vunpack.c.l.b16 %v1093
    %v2488 = vunpack.c.h.b16 %v1093
    %v2489 = vunpack.c.l.b16 %v1094
    %v2490 = vunpack.c.h.b16 %v1094
    %v2491 = vunpack.c.l.b16 %v1095
    %v2492 = vunpack.c.h.b16 %v1095
    %v2493 = vunpack.c.l.b16 %v1096
    %v2494 = vunpack.c.h.b16 %v1096
    %v2495 = vunpack.c.l.b16 %v1097
    %v2496 = vunpack.c.h.b16 %v1097
    %v2497 = vunpack.c.l.b16 %v1098
    %v2498 = vunpack.c.h.b16 %v1098
    %v2499 = vunpack.c.l.b16 %v1099
    %v2500 = vunpack.c.h.b16 %v1099
    %v2501 = vunpack.c.l.b16 %v1100
    %v2502 = vunpack.c.h.b16 %v1100
    %v2503 = vunpack.c.l.b16 %v1101
    %v2504 = vunpack.c.h.b16 %v1101
    %v2505 = vunpack.c.l.b16 %v1102
    %v2506 = vunpack.c.h.b16 %v1102
    %v2507 = vunpack.c.l.b16 %v1103
    %v2508 = vunpack.c.h.b16 %v1103
    %v2509 = vunpack.c.l.b16 %v1104
    %v2510 = vunpack.c.h.b16 %v1104
    %v2511 = vunpack.c.l.b16 %v1105
    %v2512 = vunpack.c.h.b16 %v1105
    %v2513 = vunpack.c.l.b16 %v1106
    %v2514 = vunpack.c.h.b16 %v1106
    %v2515 = vunpack.c.l.b16 %v1107
    %v2516 = vunpack.c.h.b16 %v1107
    %v2517 = vunpack.c.l.b16 %v1108
    %v2518 = vunpack.c.h.b16 %v1108
    %v2519 = vunpack.c.l.b16 %v1109
    %v2520 = vunpack.c.h.b16 %v1109
    %v2521 = vunpack.c.l.b16 %v1110
    %v2522 = vunpack.c.h.b16 %v1110
    %v2523 = vunpack.c.l.b16 %v1111
    %v2524 = vunpack.c.h.b16 %v1111
    %v2525 = vunpack.c.l.b16 %v1112
    %v2526 = vunpack.c.h.b16 %v1112
    %v2527 = vunpack.c.l.b16 %v1113
    %v2528 = vunpack.c.h.b16 %v1113
    %v2529 = vunpack.c.l.b16 %v1114
    %v2530 = vunpack.c.h.b16 %v1114
    %v2531 = vunpack.c.l.b16 %v1115
    %v2532 = vunpack.c.h.b16 %v1115
    %v2533 = vunpack.c.l.b16 %v1116
    %v2534 = vunpack.c.h.b16 %v1116
    %v2535 = vunpack.c.l.b16 %v1117
    %v2536 = vunpack.c.h.b16 %v1117
    %v2537 = vunpack.c.l.b16 %v1118
    %v2538 = vunpack.c.h.b16 %v1118
    %v2539 = vunpack.c.l.b16 %v1119
    %v2540 = vunpack.c.h.b16 %v1119
    %v2541 = vunpack.c.l.b16 %v1120
    %v2542 = vunpack.c.h.b16 %v1120
    %v2543 = vunpack.c.l.b16 %v1121
    %v2544 = vunpack.c.h.b16 %v1121
    %v2545 = vunpack.c.l.b16 %v1122
    %v2546 = vunpack.c.h.b16 %v1122
    %v2547 = vunpack.c.l.b16 %v1123
    %v2548 = vunpack.c.h.b16 %v1123
    %v2549 = vunpack.c.l.b16 %v1124
    %v2550 = vunpack.c.h.b16 %v1124
    %v2551 = vunpack.c.l.b16 %v1125
    %v2552 = vunpack.c.h.b16 %v1125
    %v2553 = vunpack.c.l.b16 %v1126
    %v2554 = vunpack.c.h.b16 %v1126
    %v2555 = vunpack.c.l.b16 %v1127
    %v2556 = vunpack.c.h.b16 %v1127
    %v2557 = vunpack.c.l.b16 %v1128
    %v2558 = vunpack.c.h.b16 %v1128
    %v2559 = vunpack.c.l.b16 %v1129
    %v2560 = vunpack.c.h.b16 %v1129
    %v2561 = vunpack.c.l.b16 %v1130
    %v2562 = vunpack.c.h.b16 %v1130
    %v2563 = vunpack.c.l.b16 %v1131
    %v2564 = vunpack.c.h.b16 %v1131
    %v2565 = vunpack.c.l.b16 %v1132
    %v2566 = vunpack.c.h.b16 %v1132
    %v2567 = vunpack.c.l.b16 %v1133
    %v2568 = vunpack.c.h.b16 %v1133
    %v2569 = vunpack.c.l.b16 %v1134
    %v2570 = vunpack.c.h.b16 %v1134
    %v2571 = vunpack.c.l.b16 %v1135
    %v2572 = vunpack.c.h.b16 %v1135
    %v2573 = vunpack.c.l.b16 %v1136
    %v2574 = vunpack.c.h.b16 %v1136
    %v2575 = vunpack.c.l.b16 %v1137
    %v2576 = vunpack.c.h.b16 %v1137
    %v2577 = vunpack.c.l.b16 %v1138
    %v2578 = vunpack.c.h.b16 %v1138
    %v2579 = vunpack.c.l.b16 %v1139
    %v2580 = vunpack.c.h.b16 %v1139
    %v2581 = vunpack.c.l.b16 %v1140
    %v2582 = vunpack.c.h.b16 %v1140
    %v2583 = vunpack.c.l.b16 %v1141
    %v2584 = vunpack.c.h.b16 %v1141
    %v2585 = vunpack.c.l.b16 %v1142
    %v2586 = vunpack.c.h.b16 %v1142
    %v2587 = vunpack.c.l.b16 %v1143
    %v2588 = vunpack.c.h.b16 %v1143
    %v2589 = vunpack.c.l.b16 %v1144
    %v2590 = vunpack.c.h.b16 %v1144
    %v2591 = vunpack.c.l.b16 %v1145
    %v2592 = vunpack.c.h.b16 %v1145
    %v2593 = vunpack.c.l.b16 %v1146
    %v2594 = vunpack.c.h.b16 %v1146
    %v2595 = vunpack.c.l.b16 %v1147
    %v2596 = vunpack.c.h.b16 %v1147
    %v2597 = vunpack.c.l.b16 %v1148
    %v2598 = vunpack.c.h.b16 %v1148
    %v2599 = vunpack.c.l.b16 %v1149
    %v2600 = vunpack.c.h.b16 %v1149
    %v2601 = vunpack.c.l.b16 %v1150
    %v2602 = vunpack.c.h.b16 %v1150
    %v2603 = vunpack.c.l.b16 %v1151
    %v2604 = vunpack.c.h.b16 %v1151
    %v2605 = vunpack.c.l.b16 %v1152
    %v2606 = vunpack.c.h.b16 %v1152
    %v2607 = vunpack.c.l.b16 %v1153
    %v2608 = vunpack.c.h.b16 %v1153
    %v2609 = vunpack.c.l.b16 %v1154
    %v2610 = vunpack.c.h.b16 %v1154
    %v2611 = vunpack.c.l.b16 %v1155
    %v2612 = vunpack.c.h.b16 %v1155
    %v2613 = vunpack.c.l.b16 %v1156
    %v2614 = vunpack.c.h.b16 %v1156
    %v2615 = vunpack.c.l.b16 %v1157
    %v2616 = vunpack.c.h.b16 %v1157
    %v2617 = vunpack.c.l.b16 %v1158
    %v2618 = vunpack.c.h.b16 %v1158
    %v2619 = vunpack.c.l.b16 %v1159
    %v2620 = vunpack.c.h.b16 %v1159
    %v2621 = vunpack.c.l.b16 %v1160
    %v2622 = vunpack.c.h.b16 %v1160
    %v2623 = vunpack.c.l.b16 %v1161
    %v2624 = vunpack.c.h.b16 %v1161
    %v2625 = vunpack.c.l.b16 %v1162
    %v2626 = vunpack.c.h.b16 %v1162
    %v2627 = vunpack.c.l.b16 %v1163
    %v2628 = vunpack.c.h.b16 %v1163
    %v2629 = vunpack.c.l.b16 %v1164
    %v2630 = vunpack.c.h.b16 %v1164
    %v2631 = vunpack.c.l.b16 %v1165
    %v2632 = vunpack.c.h.b16 %v1165
    %v2633 = vunpack.c.l.b16 %v1166
    %v2634 = vunpack.c.h.b16 %v1166
    %v2635 = vunpack.c.l.b16 %v1167
    %v2636 = vunpack.c.h.b16 %v1167
    %v2637 = vunpack.c.l.b16 %v1168
    %v2638 = vunpack.c.h.b16 %v1168
    %v2639 = vunpack.c.l.b16 %v1169
    %v2640 = vunpack.c.h.b16 %v1169
    %v2641 = vunpack.c.l.b16 %v1170
    %v2642 = vunpack.c.h.b16 %v1170
    %v2643 = vunpack.c.l.b16 %v1171
    %v2644 = vunpack.c.h.b16 %v1171
    %v2645 = vunpack.c.l.b16 %v1172
    %v2646 = vunpack.c.h.b16 %v1172
    %v2647 = vunpack.c.l.b16 %v1173
    %v2648 = vunpack.c.h.b16 %v1173
    %v2649 = vunpack.c.l.b16 %v1174
    %v2650 = vunpack.c.h.b16 %v1174
    %v2651 = vunpack.c.l.b16 %v1175
    %v2652 = vunpack.c.h.b16 %v1175
    %v2653 = vunpack.c.l.b16 %v1176
    %v2654 = vunpack.c.h.b16 %v1176
    %v2655 = vunpack.c.l.b16 %v1177
    %v2656 = vunpack.c.h.b16 %v1177
    %v2657 = vunpack.c.l.b16 %v1178
    %v2658 = vunpack.c.h.b16 %v1178
    %v2659 = vunpack.c.l.b16 %v1179
    %v2660 = vunpack.c.h.b16 %v1179
    %v2661 = vunpack.c.l.b16 %v1180
    %v2662 = vunpack.c.h.b16 %v1180
    %v2663 = vunpack.c.l.b16 %v1181
    %v2664 = vunpack.c.h.b16 %v1181
    %v2665 = vunpack.c.l.b16 %v1182
    %v2666 = vunpack.c.h.b16 %v1182
    %v2667 = vunpack.c.l.b16 %v1183
    %v2668 = vunpack.c.h.b16 %v1183
    %v2669 = vunpack.c.l.b16 %v1184
    %v2670 = vunpack.c.h.b16 %v1184
    %v2671 = vunpack.c.l.b16 %v1185
    %v2672 = vunpack.c.h.b16 %v1185
    %v2673 = vunpack.c.l.b16 %v1186
    %v2674 = vunpack.c.h.b16 %v1186
    %v2675 = vunpack.c.l.b16 %v1187
    %v2676 = vunpack.c.h.b16 %v1187
    %v2677 = vunpack.c.l.b16 %v1188
    %v2678 = vunpack.c.h.b16 %v1188
    %v2679 = vunpack.c.l.b16 %v1189
    %v2680 = vunpack.c.h.b16 %v1189
    %v2681 = vunpack.c.l.b16 %v1190
    %v2682 = vunpack.c.h.b16 %v1190
    %v2683 = vunpack.c.l.b16 %v1191
    %v2684 = vunpack.c.h.b16 %v1191
    %v2685 = vunpack.c.l.b16 %v1192
    %v2686 = vunpack.c.h.b16 %v1192
    %v2687 = vunpack.c.l.b16 %v1193
    %v2688 = vunpack.c.h.b16 %v1193
    %v2689 = vunpack.c.l.b16 %v1194
    %v2690 = vunpack.c.h.b16 %v1194
    %v2691 = vunpack.c.l.b16 %v1195
    %v2692 = vunpack.c.h.b16 %v1195
    %v2693 = vunpack.c.l.b16 %v1196
    %v2694 = vunpack.c.h.b16 %v1196
    %v2695 = vunpack.c.l.b16 %v1197
    %v2696 = vunpack.c.h.b16 %v1197
    %v2697 = vunpack.c.l.b16 %v1198
    %v2698 = vunpack.c.h.b16 %v1198
    %v2699 = vunpack.c.l.b16 %v1199
    %v2700 = vunpack.c.h.b16 %v1199
    %v2701 = vunpack.c.l.b16 %v1200
    %v2702 = vunpack.c.h.b16 %v1200
    %v2703 = vunpack.c.l.b16 %v1201
    %v2704 = vunpack.c.h.b16 %v1201
    %v2705 = vunpack.c.l.b16 %v1202
    %v2706 = vunpack.c.h.b16 %v1202
    %v2707 = vunpack.c.l.b16 %v1203
    %v2708 = vunpack.c.h.b16 %v1203
    %v2709 = vunpack.c.l.b16 %v1204
    %v2710 = vunpack.c.h.b16 %v1204
    %v2711 = vunpack.c.l.b16 %v1205
    %v2712 = vunpack.c.h.b16 %v1205
    %v2713 = vunpack.c.l.b16 %v1206
    %v2714 = vunpack.c.h.b16 %v1206
    %v2715 = vunpack.c.l.b16 %v1207
    %v2716 = vunpack.c.h.b16 %v1207
    %v2717 = vunpack.c.l.b16 %v1208
    %v2718 = vunpack.c.h.b16 %v1208
    %v2719 = vunpack.c.l.b16 %v1209
    %v2720 = vunpack.c.h.b16 %v1209
    %v2721 = vunpack.c.l.b16 %v1210
    %v2722 = vunpack.c.h.b16 %v1210
    %v2723 = vunpack.c.l.b16 %v1211
    %v2724 = vunpack.c.h.b16 %v1211
    %v2725 = vunpack.c.l.b16 %v1212
    %v2726 = vunpack.c.h.b16 %v1212
    %v2727 = vunpack.c.l.b16 %v1213
    %v2728 = vunpack.c.h.b16 %v1213
    %v2729 = vunpack.c.l.b16 %v1214
    %v2730 = vunpack.c.h.b16 %v1214
    %v2731 = vunpack.c.l.b16 %v1215
    %v2732 = vunpack.c.h.b16 %v1215
    %v2733 = vunpack.c.l.b16 %v1216
    %v2734 = vunpack.c.h.b16 %v1216
    %v2735 = vunpack.c.l.b16 %v1217
    %v2736 = vunpack.c.h.b16 %v1217
    %v2737 = vunpack.c.l.b16 %v1218
    %v2738 = vunpack.c.h.b16 %v1218
    %v2739 = vunpack.c.l.b16 %v1219
    %v2740 = vunpack.c.h.b16 %v1219
    %v2741 = vunpack.c.l.b16 %v1220
    %v2742 = vunpack.c.h.b16 %v1220
    %v2743 = vunpack.c.l.b16 %v1221
    %v2744 = vunpack.c.h.b16 %v1221
    %v2745 = vunpack.c.l.b16 %v1222
    %v2746 = vunpack.c.h.b16 %v1222
    %v2747 = vunpack.c.l.b16 %v1223
    %v2748 = vunpack.c.h.b16 %v1223
    %v2749 = vunpack.c.l.b16 %v1224
    %v2750 = vunpack.c.h.b16 %v1224
    %v2751 = vunpack.c.l.b16 %v1225
    %v2752 = vunpack.c.h.b16 %v1225
    %v2753 = vunpack.c.l.b16 %v1226
    %v2754 = vunpack.c.h.b16 %v1226
    %v2755 = vunpack.c.l.b16 %v1227
    %v2756 = vunpack.c.h.b16 %v1227
    %v2757 = vunpack.c.l.b16 %v1228
    %v2758 = vunpack.c.h.b16 %v1228
    %v2759 = vunpack.c.l.b16 %v1229
    %v2760 = vunpack.c.h.b16 %v1229
    %v2761 = vunpack.c.l.b16 %v1230
    %v2762 = vunpack.c.h.b16 %v1230
    %v2763 = vunpack.c.l.b16 %v1231
    %v2764 = vunpack.c.h.b16 %v1231
    %v2765 = vunpack.c.l.b16 %v1232
    %v2766 = vunpack.c.h.b16 %v1232
    %v2767 = vunpack.c.l.b16 %v1233
    %v2768 = vunpack.c.h.b16 %v1233
    %v2769 = vunpack.c.l.b16 %v1234
    %v2770 = vunpack.c.h.b16 %v1234
    %v2771 = vunpack.c.l.b16 %v1235
    %v2772 = vunpack.c.h.b16 %v1235
    %v2773 = vunpack.c.l.b16 %v1236
    %v2774 = vunpack.c.h.b16 %v1236
    %v2775 = vunpack.c.l.b16 %v1237
    %v2776 = vunpack.c.h.b16 %v1237
    %v2777 = vunpack.c.l.b16 %v1238
    %v2778 = vunpack.c.h.b16 %v1238
    %v2779 = vunpack.c.l.b16 %v1239
    %v2780 = vunpack.c.h.b16 %v1239
    %v2781 = vunpack.c.l.b16 %v1240
    %v2782 = vunpack.c.h.b16 %v1240
    %v2783 = vunpack.c.l.b16 %v1241
    %v2784 = vunpack.c.h.b16 %v1241
    %v2785 = vunpack.c.l.b16 %v1242
    %v2786 = vunpack.c.h.b16 %v1242
    %v2787 = vunpack.c.l.b16 %v1243
    %v2788 = vunpack.c.h.b16 %v1243
    %v2789 = vunpack.c.l.b16 %v1244
    %v2790 = vunpack.c.h.b16 %v1244
    %v2791 = vunpack.c.l.b16 %v1245
    %v2792 = vunpack.c.h.b16 %v1245
    %v2793 = vunpack.c.l.b16 %v1246
    %v2794 = vunpack.c.h.b16 %v1246
    %v2795 = vunpack.c.l.b16 %v1247
    %v2796 = vunpack.c.h.b16 %v1247
    %v2797 = vunpack.c.l.b16 %v1248
    %v2798 = vunpack.c.h.b16 %v1248
    %v2799 = vunpack.c.l.b16 %v1249
    %v2800 = vunpack.c.h.b16 %v1249
    %v2801 = vunpack.c.l.b16 %v1250
    %v2802 = vunpack.c.h.b16 %v1250
    %v2803 = vunpack.c.l.b16 %v1251
    %v2804 = vunpack.c.h.b16 %v1251
    %v2805 = vunpack.c.l.b16 %v1252
    %v2806 = vunpack.c.h.b16 %v1252
    %v2807 = vunpack.c.l.b16 %v1253
    %v2808 = vunpack.c.h.b16 %v1253
    %v2809 = vunpack.c.l.b16 %v1254
    %v2810 = vunpack.c.h.b16 %v1254
    %v2811 = vunpack.c.l.b16 %v1255
    %v2812 = vunpack.c.h.b16 %v1255
    %v2813 = vunpack.c.l.b16 %v1256
    %v2814 = vunpack.c.h.b16 %v1256
    %v2815 = vunpack.c.l.b16 %v1257
    %v2816 = vunpack.c.h.b16 %v1257
    %v2817 = vunpack.c.l.b16 %v1258
    %v2818 = vunpack.c.h.b16 %v1258
    %v2819 = vunpack.c.l.b16 %v1259
    %v2820 = vunpack.c.h.b16 %v1259
    %v2821 = vunpack.c.l.b16 %v1260
    %v2822 = vunpack.c.h.b16 %v1260
    %v2823 = vunpack.c.l.b16 %v1261
    %v2824 = vunpack.c.h.b16 %v1261
    %v2825 = vunpack.c.l.b16 %v1262
    %v2826 = vunpack.c.h.b16 %v1262
    %v2827 = vunpack.c.l.b16 %v1263
    %v2828 = vunpack.c.h.b16 %v1263
    %v2829 = vunpack.c.l.b16 %v1264
    %v2830 = vunpack.c.h.b16 %v1264
    %v2831 = vunpack.c.l.b16 %v1265
    %v2832 = vunpack.c.h.b16 %v1265
    %v2833 = vunpack.c.l.b16 %v1266
    %v2834 = vunpack.c.h.b16 %v1266
    %v2835 = vunpack.c.l.b16 %v1267
    %v2836 = vunpack.c.h.b16 %v1267
    %v2837 = vunpack.c.l.b16 %v1268
    %v2838 = vunpack.c.h.b16 %v1268
    %v2839 = vunpack.c.l.b16 %v1269
    %v2840 = vunpack.c.h.b16 %v1269
    %v2841 = vunpack.c.l.b16 %v1270
    %v2842 = vunpack.c.h.b16 %v1270
    %v2843 = vunpack.c.l.b16 %v1271
    %v2844 = vunpack.c.h.b16 %v1271
    %v2845 = vunpack.c.l.b16 %v1272
    %v2846 = vunpack.c.h.b16 %v1272
    %v2847 = vunpack.c.l.b16 %v1273
    %v2848 = vunpack.c.h.b16 %v1273
    %v2849 = vunpack.c.l.b16 %v1274
    %v2850 = vunpack.c.h.b16 %v1274
    %v2851 = vunpack.c.l.b16 %v1275
    %v2852 = vunpack.c.h.b16 %v1275
    %v2853 = vunpack.c.l.b16 %v1276
    %v2854 = vunpack.c.h.b16 %v1276
    %v2855 = vunpack.c.l.b16 %v1277
    %v2856 = vunpack.c.h.b16 %v1277
    %v2857 = vunpack.c.l.b16 %v1278
    %v2858 = vunpack.c.h.b16 %v1278
    %v2859 = vunpack.c.l.b16 %v1279
    %v2860 = vunpack.c.h.b16 %v1279
    %v2861 = vunpack.c.l.b16 %v1280
    %v2862 = vunpack.c.h.b16 %v1280
    %v2863 = vunpack.c.l.b16 %v1281
    %v2864 = vunpack.c.h.b16 %v1281
    %v2865 = vunpack.c.l.b16 %v1282
    %v2866 = vunpack.c.h.b16 %v1282
    %v2867 = vunpack.c.l.b16 %v1283
    %v2868 = vunpack.c.h.b16 %v1283
    %v2869 = vunpack.c.l.b16 %v1284
    %v2870 = vunpack.c.h.b16 %v1284
    %v2871 = vunpack.c.l.b16 %v1285
    %v2872 = vunpack.c.h.b16 %v1285
    %v2873 = vunpack.c.l.b16 %v1286
    %v2874 = vunpack.c.h.b16 %v1286
    %v2875 = vunpack.c.l.b16 %v1287
    %v2876 = vunpack.c.h.b16 %v1287
    %v2877 = vunpack.c.l.b16 %v1288
    %v2878 = vunpack.c.h.b16 %v1288
    %v2879 = vunpack.c.l.b16 %v1289
    %v2880 = vunpack.c.h.b16 %v1289
    %v2881 = vunpack.c.l.b16 %v1290
    %v2882 = vunpack.c.h.b16 %v1290
    %v2883 = vunpack.c.l.b16 %v1291
    %v2884 = vunpack.c.h.b16 %v1291
    %v2885 = vunpack.c.l.b16 %v1292
    %v2886 = vunpack.c.h.b16 %v1292
    %v2887 = vunpack.c.l.b16 %v1293
    %v2888 = vunpack.c.h.b16 %v1293
    %v2889 = vunpack.c.l.b16 %v1294
    %v2890 = vunpack.c.h.b16 %v1294
    %v2891 = vunpack.c.l.b16 %v1295
    %v2892 = vunpack.c.h.b16 %v1295
    %v2893 = vunpack.c.l.b16 %v1296
    %v2894 = vunpack.c.h.b16 %v1296
    %v2895 = vunpack.c.l.b16 %v1297
    %v2896 = vunpack.c.h.b16 %v1297
    %v2897 = vunpack.c.l.b16 %v1298
    %v2898 = vunpack.c.h.b16 %v1298
    %v2899 = vunpack.c.l.b16 %v1299
    %v2900 = vunpack.c.h.b16 %v1299
    %v2901 = vunpack.c.l.b16 %v1300
    %v2902 = vunpack.c.h.b16 %v1300
    %v2903 = vunpack.c.l.b16 %v1301
    %v2904 = vunpack.c.h.b16 %v1301
    %v2905 = vunpack.c.l.b16 %v1302
    %v2906 = vunpack.c.h.b16 %v1302
    %v2907 = vunpack.c.l.b16 %v1303
    %v2908 = vunpack.c.h.b16 %v1303
    %v2909 = vunpack.c.l.b16 %v1304
    %v2910 = vunpack.c.h.b16 %v1304
    %v2911 = vunpack.c.l.b16 %v1305
    %v2912 = vunpack.c.h.b16 %v1305
    %v2913 = vunpack.c.l.b16 %v1306
    %v2914 = vunpack.c.h.b16 %v1306
    %v2915 = vunpack.c.l.b16 %v1307
    %v2916 = vunpack.c.h.b16 %v1307
    %v2917 = vunpack.c.l.b16 %v1308
    %v2918 = vunpack.c.h.b16 %v1308
    %v2919 = vunpack.c.l.b16 %v1309
    %v2920 = vunpack.c.h.b16 %v1309
    %v2921 = vunpack.c.l.b16 %v1310
    %v2922 = vunpack.c.h.b16 %v1310
    %v2923 = vunpack.c.l.b16 %v1311
    %v2924 = vunpack.c.h.b16 %v1311
    %v2925 = vunpack.c.l.b16 %v1312
    %v2926 = vunpack.c.h.b16 %v1312
    %v2927 = vunpack.c.l.b16 %v1313
    %v2928 = vunpack.c.h.b16 %v1313
    %v2929 = vunpack.c.l.b16 %v1314
    %v2930 = vunpack.c.h.b16 %v1314
    %v2931 = vunpack.c.l.b16 %v1315
    %v2932 = vunpack.c.h.b16 %v1315
    %v2933 = vunpack.c.l.b16 %v1316
    %v2934 = vunpack.c.h.b16 %v1316
    %v2935 = vunpack.c.l.b16 %v1317
    %v2936 = vunpack.c.h.b16 %v1317
    %v2937 = vunpack.c.l.b16 %v1318
    %v2938 = vunpack.c.h.b16 %v1318
    %v2939 = vunpack.c.l.b16 %v1319
    %v2940 = vunpack.c.h.b16 %v1319
    %v2941 = vunpack.c.l.b16 %v1320
    %v2942 = vunpack.c.h.b16 %v1320
    %v2943 = vunpack.c.l.b16 %v1321
    %v2944 = vunpack.c.h.b16 %v1321
    %v2945 = vunpack.c.l.b16 %v1322
    %v2946 = vunpack.c.h.b16 %v1322
    %v2947 = vunpack.c.l.b16 %v1323
    %v2948 = vunpack.c.h.b16 %v1323
    %v2949 = vunpack.c.l.b16 %v1324
    %v2950 = vunpack.c.h.b16 %v1324
    %v2951 = vunpack.c.l.b16 %v1325
    %v2952 = vunpack.c.h.b16 %v1325
    %v2953 = vunpack.c.l.b16 %v1326
    %v2954 = vunpack.c.h.b16 %v1326
    %v2955 = vunpack.c.l.b16 %v1327
    %v2956 = vunpack.c.h.b16 %v1327
    %v2957 = vunpack.c.l.b16 %v1328
    %v2958 = vunpack.c.h.b16 %v1328
    %v2959 = vunpack.c.l.b16 %v1329
    %v2960 = vunpack.c.h.b16 %v1329
    %v2961 = vunpack.c.l.b16 %v1330
    %v2962 = vunpack.c.h.b16 %v1330
    %v2963 = vunpack.c.l.b16 %v1331
    %v2964 = vunpack.c.h.b16 %v1331
    %v2965 = vunpack.c.l.b16 %v1332
    %v2966 = vunpack.c.h.b16 %v1332
    %v2967 = vunpack.c.l.b16 %v1333
    %v2968 = vunpack.c.h.b16 %v1333
    %v2969 = vunpack.c.l.b16 %v1334
    %v2970 = vunpack.c.h.b16 %v1334
    %v2971 = vunpack.c.l.b16 %v1335
    %v2972 = vunpack.c.h.b16 %v1335
    %v2973 = vunpack.c.l.b16 %v1336
    %v2974 = vunpack.c.h.b16 %v1336
    %v2975 = vunpack.c.l.b16 %v1337
    %v2976 = vunpack.c.h.b16 %v1337
    %v2977 = vunpack.c.l.b16 %v1338
    %v2978 = vunpack.c.h.b16 %v1338
    %v2979 = vunpack.c.l.b16 %v1339
    %v2980 = vunpack.c.h.b16 %v1339
    %v2981 = vunpack.c.l.b16 %v1340
    %v2982 = vunpack.c.h.b16 %v1340
    %v2983 = vunpack.c.l.b16 %v1341
    %v2984 = vunpack.c.h.b16 %v1341
    %v2985 = vunpack.c.l.b16 %v1342
    %v2986 = vunpack.c.h.b16 %v1342
    %v2987 = vunpack.c.l.b16 %v1343
    %v2988 = vunpack.c.h.b16 %v1343
    %v2989 = vunpack.c.l.b16 %v1344
    %v2990 = vunpack.c.h.b16 %v1344
    %v2991 = vunpack.c.l.b16 %v1345
    %v2992 = vunpack.c.h.b16 %v1345
    %v2993 = vunpack.c.l.b16 %v1346
    %v2994 = vunpack.c.h.b16 %v1346
    %v2995 = vunpack.c.l.b16 %v1347
    %v2996 = vunpack.c.h.b16 %v1347
    %v2997 = vunpack.c.l.b16 %v1348
    %v2998 = vunpack.c.h.b16 %v1348
    %v2999 = vunpack.c.l.b16 %v1349
    %v3000 = vunpack.c.h.b16 %v1349
    %v3001 = vunpack.c.l.b16 %v1350
    %v3002 = vunpack.c.h.b16 %v1350
    %v3003 = vunpack.c.l.b16 %v1351
    %v3004 = vunpack.c.h.b16 %v1351
    %v3005 = vunpack.c.l.b16 %v1352
    %v3006 = vunpack.c.h.b16 %v1352
    %v3007 = vunpack.c.l.b16 %v1353
    %v3008 = vunpack.c.h.b16 %v1353
    %v3009 = vunpack.c.l.b16 %v1354
    %v3010 = vunpack.c.h.b16 %v1354
    %v3011 = vunpack.c.l.b16 %v1355
    %v3012 = vunpack.c.h.b16 %v1355
    %v3013 = vunpack.c.l.b16 %v1356
    %v3014 = vunpack.c.h.b16 %v1356
    %v3015 = vunpack.c.l.b16 %v1357
    %v3016 = vunpack.c.h.b16 %v1357
    %v3017 = vunpack.c.l.b16 %v1358
    %v3018 = vunpack.c.h.b16 %v1358
    %v3019 = vunpack.c.l.b16 %v1359
    %v3020 = vunpack.c.h.b16 %v1359
    %v3021 = vunpack.c.l.b16 %v1360
    %v3022 = vunpack.c.h.b16 %v1360
    %v3023 = vunpack.c.l.b16 %v1361
    %v3024 = vunpack.c.h.b16 %v1361
    %v3025 = vunpack.c.l.b16 %v1362
    %v3026 = vunpack.c.h.b16 %v1362
    %v3027 = vunpack.c.l.b16 %v1363
    %v3028 = vunpack.c.h.b16 %v1363
    %v3029 = vunpack.c.l.b16 %v1364
    %v3030 = vunpack.c.h.b16 %v1364
    %v3031 = vunpack.c.l.b16 %v1365
    %v3032 = vunpack.c.h.b16 %v1365
    %v3033 = vunpack.c.l.b16 %v1366
    %v3034 = vunpack.c.h.b16 %v1366
    %v3035 = vunpack.c.l.b16 %v1367
    %v3036 = vunpack.c.h.b16 %v1367
    %v3037 = vunpack.c.l.b16 %v1368
    %v3038 = vunpack.c.h.b16 %v1368
    %v3039 = vunpack.c.l.b16 %v1369
    %v3040 = vunpack.c.h.b16 %v1369
    %v3041 = vunpack.c.l.b16 %v1370
    %v3042 = vunpack.c.h.b16 %v1370
    %v3043 = vunpack.c.l.b16 %v1371
    %v3044 = vunpack.c.h.b16 %v1371
    %v3045 = vunpack.c.l.b16 %v1372
    %v3046 = vunpack.c.h.b16 %v1372
    %v3047 = vunpack.c.l.b16 %v1373
    %v3048 = vunpack.c.h.b16 %v1373
    %v3049 = vunpack.c.l.b16 %v1374
    %v3050 = vunpack.c.h.b16 %v1374
    %v3051 = vunpack.c.l.b16 %v1375
    %v3052 = vunpack.c.h.b16 %v1375
    %v3053 = vunpack.c.l.b16 %v1376
    %v3054 = vunpack.c.h.b16 %v1376
    %v3055 = vunpack.c.l.b16 %v1377
    %v3056 = vunpack.c.h.b16 %v1377
    %v3057 = vunpack.c.l.b16 %v1378
    %v3058 = vunpack.c.h.b16 %v1378
    %v3059 = vunpack.c.l.b16 %v1379
    %v3060 = vunpack.c.h.b16 %v1379
    %v3061 = vunpack.c.l.b16 %v1380
    %v3062 = vunpack.c.h.b16 %v1380
    %v3063 = vunpack.c.l.b16 %v1381
    %v3064 = vunpack.c.h.b16 %v1381
    %v3065 = vunpack.c.l.b16 %v1382
    %v3066 = vunpack.c.h.b16 %v1382
    %v3067 = vunpack.c.l.b16 %v1383
    %v3068 = vunpack.c.h.b16 %v1383
    %v3069 = vunpack.c.l.b16 %v1384
    %v3070 = vunpack.c.h.b16 %v1384
    %v3071 = vunpack.c.l.b16 %v1385
    %v3072 = vunpack.c.h.b16 %v1385
    %v3073 = vunpack.c.l.b16 %v1386
    %v3074 = vunpack.c.h.b16 %v1386
    %v3075 = vunpack.c.l.b16 %v1387
    %v3076 = vunpack.c.h.b16 %v1387
    %v3077 = vunpack.c.l.b16 %v1388
    %v3078 = vunpack.c.h.b16 %v1388
    %v3079 = vunpack.c.l.b16 %v1389
    %v3080 = vunpack.c.h.b16 %v1389
    %v3081 = vunpack.c.l.b16 %v1390
    %v3082 = vunpack.c.h.b16 %v1390
    %v3083 = vunpack.c.l.b16 %v1391
    %v3084 = vunpack.c.h.b16 %v1391
    %v3085 = vunpack.c.l.b16 %v1392
    %v3086 = vunpack.c.h.b16 %v1392
    %v3087 = vunpack.c.l.b16 %v1393
    %v3088 = vunpack.c.h.b16 %v1393
    %v3089 = vunpack.c.l.b16 %v1394
    %v3090 = vunpack.c.h.b16 %v1394
    %v3091 = vunpack.c.l.b16 %v1395
    %v3092 = vunpack.c.h.b16 %v1395
    %v3093 = vunpack.c.l.b16 %v1396
    %v3094 = vunpack.c.h.b16 %v1396
    %v3095 = vunpack.c.l.b16 %v1397
    %v3096 = vunpack.c.h.b16 %v1397
    %v3097 = vunpack.c.l.b16 %v1398
    %v3098 = vunpack.c.h.b16 %v1398
    %v3099 = vunpack.c.l.b16 %v1399
    %v3100 = vunpack.c.h.b16 %v1399
    %v3101 = vunpack.c.l.b16 %v1400
    %v3102 = vunpack.c.h.b16 %v1400
    %v3103 = vunpack.c.l.b16 %v1401
    %v3104 = vunpack.c.h.b16 %v1401
    %v3105 = vunpack.c.l.b16 %v1402
    %v3106 = vunpack.c.h.b16 %v1402
    %v3107 = vpack.c.b16 %v2115, %v2083
    %v3108 = vpack.c.b16 %v2116, %v2084
    %v3109 = vpack.c.b16 %v2117, %v2085
    %v3110 = vpack.c.b16 %v2118, %v2086
    %v3111 = vpack.c.b16 %v2119, %v2087
    %v3112 = vpack.c.b16 %v2120, %v2088
    %v3113 = vpack.c.b16 %v2121, %v2089
    %v3114 = vpack.c.b16 %v2122, %v2090
    %v3115 = vpack.c.b16 %v2123, %v2091
    %v3116 = vpack.c.b16 %v2124, %v2092
    %v3117 = vpack.c.b16 %v2125, %v2093
    %v3118 = vpack.c.b16 %v2126, %v2094
    %v3119 = vpack.c.b16 %v2127, %v2095
    %v3120 = vpack.c.b16 %v2128, %v2096
    %v3121 = vpack.c.b16 %v2129, %v2097
    %v3122 = vpack.c.b16 %v2130, %v2098
    %v3123 = vpack.c.b16 %v2131, %v2099
    %v3124 = vpack.c.b16 %v2132, %v2100
    %v3125 = vpack.c.b16 %v2133, %v2101
    %v3126 = vpack.c.b16 %v2134, %v2102
    %v3127 = vpack.c.b16 %v2135, %v2103
    %v3128 = vpack.c.b16 %v2136, %v2104
    %v3129 = vpack.c.b16 %v2137, %v2105
    %v3130 = vpack.c.b16 %v2138, %v2106
    %v3131 = vpack.c.b16 %v2139, %v2107
    %v3132 = vpack.c.b16 %v2140, %v2108
    %v3133 = vpack.c.b16 %v2141, %v2109
    %v3134 = vpack.c.b16 %v2142, %v2110
    %v3135 = vpack.c.b16 %v2143, %v2111
    %v3136 = vpack.c.b16 %v2144, %v2112
    %v3137 = vpack.c.b16 %v2145, %v2113
    %v3138 = vpack.c.b16 %v2146, %v2114
    %v3139 = vpack.c.b16 %v2179, %v2147
    %v3140 = vpack.c.b16 %v2180, %v2148
    %v3141 = vpack.c.b16 %v2181, %v2149
    %v3142 = vpack.c.b16 %v2182, %v2150
    %v3143 = vpack.c.b16 %v2183, %v2151
    %v3144 = vpack.c.b16 %v2184, %v2152
    %v3145 = vpack.c.b16 %v2185, %v2153
    %v3146 = vpack.c.b16 %v2186, %v2154
    %v3147 = vpack.c.b16 %v2187, %v2155
    %v3148 = vpack.c.b16 %v2188, %v2156
    %v3149 = vpack.c.b16 %v2189, %v2157
    %v3150 = vpack.c.b16 %v2190, %v2158
    %v3151 = vpack.c.b16 %v2191, %v2159
    %v3152 = vpack.c.b16 %v2192, %v2160
    %v3153 = vpack.c.b16 %v2193, %v2161
    %v3154 = vpack.c.b16 %v2194, %v2162
    %v3155 = vpack.c.b16 %v2195, %v2163
    %v3156 = vpack.c.b16 %v2196, %v2164
    %v3157 = vpack.c.b16 %v2197, %v2165
    %v3158 = vpack.c.b16 %v2198, %v2166
    %v3159 = vpack.c.b16 %v2199, %v2167
    %v3160 = vpack.c.b16 %v2200, %v2168
    %v3161 = vpack.c.b16 %v2201, %v2169
    %v3162 = vpack.c.b16 %v2202, %v2170
    %v3163 = vpack.c.b16 %v2203, %v2171
    %v3164 = vpack.c.b16 %v2204, %v2172
    %v3165 = vpack.c.b16 %v2205, %v2173
    %v3166 = vpack.c.b16 %v2206, %v2174
    %v3167 = vpack.c.b16 %v2207, %v2175
    %v3168 = vpack.c.b16 %v2208, %v2176
    %v3169 = vpack.c.b16 %v2209, %v2177
    %v3170 = vpack.c.b16 %v2210, %v2178
    %v3171 = vpack.c.b16 %v2243, %v2211
    %v3172 = vpack.c.b16 %v2244, %v2212
    %v3173 = vpack.c.b16 %v2245, %v2213
    %v3174 = vpack.c.b16 %v2246, %v2214
    %v3175 = vpack.c.b16 %v2247, %v2215
    %v3176 = vpack.c.b16 %v2248, %v2216
    %v3177 = vpack.c.b16 %v2249, %v2217
    %v3178 = vpack.c.b16 %v2250, %v2218
    %v3179 = vpack.c.b16 %v2251, %v2219
    %v3180 = vpack.c.b16 %v2252, %v2220
    %v3181 = vpack.c.b16 %v2253, %v2221
    %v3182 = vpack.c.b16 %v2254, %v2222
    %v3183 = vpack.c.b16 %v2255, %v2223
    %v3184 = vpack.c.b16 %v2256, %v2224
    %v3185 = vpack.c.b16 %v2257, %v2225
    %v3186 = vpack.c.b16 %v2258, %v2226
    %v3187 = vpack.c.b16 %v2259, %v2227
    %v3188 = vpack.c.b16 %v2260, %v2228
    %v3189 = vpack.c.b16 %v2261, %v2229
    %v3190 = vpack.c.b16 %v2262, %v2230
    %v3191 = vpack.c.b16 %v2263, %v2231
    %v3192 = vpack.c.b16 %v2264, %v2232
    %v3193 = vpack.c.b16 %v2265, %v2233
    %v3194 = vpack.c.b16 %v2266, %v2234
    %v3195 = vpack.c.b16 %v2267, %v2235
    %v3196 = vpack.c.b16 %v2268, %v2236
    %v3197 = vpack.c.b16 %v2269, %v2237
    %v3198 = vpack.c.b16 %v2270, %v2238
    %v3199 = vpack.c.b16 %v2271, %v2239
    %v3200 = vpack.c.b16 %v2272, %v2240
    %v3201 = vpack.c.b16 %v2273, %v2241
    %v3202 = vpack.c.b16 %v2274, %v2242
    %v3203 = vpack.c.b16 %v2307, %v2275
    %v3204 = vpack.c.b16 %v2308, %v2276
    %v3205 = vpack.c.b16 %v2309, %v2277
    %v3206 = vpack.c.b16 %v2310, %v2278
    %v3207 = vpack.c.b16 %v2311, %v2279
    %v3208 = vpack.c.b16 %v2312, %v2280
    %v3209 = vpack.c.b16 %v2313, %v2281
    %v3210 = vpack.c.b16 %v2314, %v2282
    %v3211 = vpack.c.b16 %v2315, %v2283
    %v3212 = vpack.c.b16 %v2316, %v2284
    %v3213 = vpack.c.b16 %v2317, %v2285
    %v3214 = vpack.c.b16 %v2318, %v2286
    %v3215 = vpack.c.b16 %v2319, %v2287
    %v3216 = vpack.c.b16 %v2320, %v2288
    %v3217 = vpack.c.b16 %v2321, %v2289
    %v3218 = vpack.c.b16 %v2322, %v2290
    %v3219 = vpack.c.b16 %v2323, %v2291
    %v3220 = vpack.c.b16 %v2324, %v2292
    %v3221 = vpack.c.b16 %v2325, %v2293
    %v3222 = vpack.c.b16 %v2326, %v2294
    %v3223 = vpack.c.b16 %v2327, %v2295
    %v3224 = vpack.c.b16 %v2328, %v2296
    %v3225 = vpack.c.b16 %v2329, %v2297
    %v3226 = vpack.c.b16 %v2330, %v2298
    %v3227 = vpack.c.b16 %v2331, %v2299
    %v3228 = vpack.c.b16 %v2332, %v2300
    %v3229 = vpack.c.b16 %v2333, %v2301
    %v3230 = vpack.c.b16 %v2334, %v2302
    %v3231 = vpack.c.b16 %v2335, %v2303
    %v3232 = vpack.c.b16 %v2336, %v2304
    %v3233 = vpack.c.b16 %v2337, %v2305
    %v3234 = vpack.c.b16 %v2338, %v2306
    %v3235 = vpack.c.b16 %v2371, %v2339
    %v3236 = vpack.c.b16 %v2372, %v2340
    %v3237 = vpack.c.b16 %v2373, %v2341
    %v3238 = vpack.c.b16 %v2374, %v2342
    %v3239 = vpack.c.b16 %v2375, %v2343
    %v3240 = vpack.c.b16 %v2376, %v2344
    %v3241 = vpack.c.b16 %v2377, %v2345
    %v3242 = vpack.c.b16 %v2378, %v2346
    %v3243 = vpack.c.b16 %v2379, %v2347
    %v3244 = vpack.c.b16 %v2380, %v2348
    %v3245 = vpack.c.b16 %v2381, %v2349
    %v3246 = vpack.c.b16 %v2382, %v2350
    %v3247 = vpack.c.b16 %v2383, %v2351
    %v3248 = vpack.c.b16 %v2384, %v2352
    %v3249 = vpack.c.b16 %v2385, %v2353
    %v3250 = vpack.c.b16 %v2386, %v2354
    %v3251 = vpack.c.b16 %v2387, %v2355
    %v3252 = vpack.c.b16 %v2388, %v2356
    %v3253 = vpack.c.b16 %v2389, %v2357
    %v3254 = vpack.c.b16 %v2390, %v2358
    %v3255 = vpack.c.b16 %v2391, %v2359
    %v3256 = vpack.c.b16 %v2392, %v2360
    %v3257 = vpack.c.b16 %v2393, %v2361
    %v3258 = vpack.c.b16 %v2394, %v2362
    %v3259 = vpack.c.b16 %v2395, %v2363
    %v3260 = vpack.c.b16 %v2396, %v2364
    %v3261 = vpack.c.b16 %v2397, %v2365
    %v3262 = vpack.c.b16 %v2398, %v2366
    %v3263 = vpack.c.b16 %v2399, %v2367
    %v3264 = vpack.c.b16 %v2400, %v2368
    %v3265 = vpack.c.b16 %v2401, %v2369
    %v3266 = vpack.c.b16 %v2402, %v2370
    %v3267 = vpack.c.b16 %v2435, %v2403
    %v3268 = vpack.c.b16 %v2436, %v2404
    %v3269 = vpack.c.b16 %v2437, %v2405
    %v3270 = vpack.c.b16 %v2438, %v2406
    %v3271 = vpack.c.b16 %v2439, %v2407
    %v3272 = vpack.c.b16 %v2440, %v2408
    %v3273 = vpack.c.b16 %v2441, %v2409
    %v3274 = vpack.c.b16 %v2442, %v2410
    %v3275 = vpack.c.b16 %v2443, %v2411
    %v3276 = vpack.c.b16 %v2444, %v2412
    %v3277 = vpack.c.b16 %v2445, %v2413
    %v3278 = vpack.c.b16 %v2446, %v2414
    %v3279 = vpack.c.b16 %v2447, %v2415
    %v3280 = vpack.c.b16 %v2448, %v2416
    %v3281 = vpack.c.b16 %v2449, %v2417
    %v3282 = vpack.c.b16 %v2450, %v2418
    %v3283 = vpack.c.b16 %v2451, %v2419
    %v3284 = vpack.c.b16 %v2452, %v2420
    %v3285 = vpack.c.b16 %v2453, %v2421
    %v3286 = vpack.c.b16 %v2454, %v2422
    %v3287 = vpack.c.b16 %v2455, %v2423
    %v3288 = vpack.c.b16 %v2456, %v2424
    %v3289 = vpack.c.b16 %v2457, %v2425
    %v3290 = vpack.c.b16 %v2458, %v2426
    %v3291 = vpack.c.b16 %v2459, %v2427
    %v3292 = vpack.c.b16 %v2460, %v2428
    %v3293 = vpack.c.b16 %v2461, %v2429
    %v3294 = vpack.c.b16 %v2462, %v2430
    %v3295 = vpack.c.b16 %v2463, %v2431
    %v3296 = vpack.c.b16 %v2464, %v2432
    %v3297 = vpack.c.b16 %v2465, %v2433
    %v3298 = vpack.c.b16 %v2466, %v2434
    %v3299 = vpack.c.b16 %v2499, %v2467
    %v3300 = vpack.c.b16 %v2500, %v2468
    %v3301 = vpack.c.b16 %v2501, %v2469
    %v3302 = vpack.c.b16 %v2502, %v2470
    %v3303 = vpack.c.b16 %v2503, %v2471
    %v3304 = vpack.c.b16 %v2504, %v2472
    %v3305 = vpack.c.b16 %v2505, %v2473
    %v3306 = vpack.c.b16 %v2506, %v2474
    %v3307 = vpack.c.b16 %v2507, %v2475
    %v3308 = vpack.c.b16 %v2508, %v2476
    %v3309 = vpack.c.b16 %v2509, %v2477
    %v3310 = vpack.c.b16 %v2510, %v2478
    %v3311 = vpack.c.b16 %v2511, %v2479
    %v3312 = vpack.c.b16 %v2512, %v2480
    %v3313 = vpack.c.b16 %v2513, %v2481
    %v3314 = vpack.c.b16 %v2514, %v2482
    %v3315 = vpack.c.b16 %v2515, %v2483
    %v3316 = vpack.c.b16 %v2516, %v2484
    %v3317 = vpack.c.b16 %v2517, %v2485
    %v3318 = vpack.c.b16 %v2518, %v2486
    %v3319 = vpack.c.b16 %v2519, %v2487
    %v3320 = vpack.c.b16 %v2520, %v2488
    %v3321 = vpack.c.b16 %v2521, %v2489
    %v3322 = vpack.c.b16 %v2522, %v2490
    %v3323 = vpack.c.b16 %v2523, %v2491
    %v3324 = vpack.c.b16 %v2524, %v2492
    %v3325 = vpack.c.b16 %v2525, %v2493
    %v3326 = vpack.c.b16 %v2526, %v2494
    %v3327 = vpack.c.b16 %v2527, %v2495
    %v3328 = vpack.c.b16 %v2528, %v2496
    %v3329 = vpack.c.b16 %v2529, %v2497
    %v3330 = vpack.c.b16 %v2530, %v2498
    %v3331 = vpack.c.b16 %v2563, %v2531
    %v3332 = vpack.c.b16 %v2564, %v2532
    %v3333 = vpack.c.b16 %v2565, %v2533
    %v3334 = vpack.c.b16 %v2566, %v2534
    %v3335 = vpack.c.b16 %v2567, %v2535
    %v3336 = vpack.c.b16 %v2568, %v2536
    %v3337 = vpack.c.b16 %v2569, %v2537
    %v3338 = vpack.c.b16 %v2570, %v2538
    %v3339 = vpack.c.b16 %v2571, %v2539
    %v3340 = vpack.c.b16 %v2572, %v2540
    %v3341 = vpack.c.b16 %v2573, %v2541
    %v3342 = vpack.c.b16 %v2574, %v2542
    %v3343 = vpack.c.b16 %v2575, %v2543
    %v3344 = vpack.c.b16 %v2576, %v2544
    %v3345 = vpack.c.b16 %v2577, %v2545
    %v3346 = vpack.c.b16 %v2578, %v2546
    %v3347 = vpack.c.b16 %v2579, %v2547
    %v3348 = vpack.c.b16 %v2580, %v2548
    %v3349 = vpack.c.b16 %v2581, %v2549
    %v3350 = vpack.c.b16 %v2582, %v2550
    %v3351 = vpack.c.b16 %v2583, %v2551
    %v3352 = vpack.c.b16 %v2584, %v2552
    %v3353 = vpack.c.b16 %v2585, %v2553
    %v3354 = vpack.c.b16 %v2586, %v2554
    %v3355 = vpack.c.b16 %v2587, %v2555
    %v3356 = vpack.c.b16 %v2588, %v2556
    %v3357 = vpack.c.b16 %v2589, %v2557
    %v3358 = vpack.c.b16 %v2590, %v2558
    %v3359 = vpack.c.b16 %v2591, %v2559
    %v3360 = vpack.c.b16 %v2592, %v2560
    %v3361 = vpack.c.b16 %v2593, %v2561
    %v3362 = vpack.c.b16 %v2594, %v2562
    %v3363 = vpack.c.b16 %v2627, %v2595
    %v3364 = vpack.c.b16 %v2628, %v2596
    %v3365 = vpack.c.b16 %v2629, %v2597
    %v3366 = vpack.c.b16 %v2630, %v2598
    %v3367 = vpack.c.b16 %v2631, %v2599
    %v3368 = vpack.c.b16 %v2632, %v2600
    %v3369 = vpack.c.b16 %v2633, %v2601
    %v3370 = vpack.c.b16 %v2634, %v2602
    %v3371 = vpack.c.b16 %v2635, %v2603
    %v3372 = vpack.c.b16 %v2636, %v2604
    %v3373 = vpack.c.b16 %v2637, %v2605
    %v3374 = vpack.c.b16 %v2638, %v2606
    %v3375 = vpack.c.b16 %v2639, %v2607
    %v3376 = vpack.c.b16 %v2640, %v2608
    %v3377 = vpack.c.b16 %v2641, %v2609
    %v3378 = vpack.c.b16 %v2642, %v2610
    %v3379 = vpack.c.b16 %v2643, %v2611
    %v3380 = vpack.c.b16 %v2644, %v2612
    %v3381 = vpack.c.b16 %v2645, %v2613
    %v3382 = vpack.c.b16 %v2646, %v2614
    %v3383 = vpack.c.b16 %v2647, %v2615
    %v3384 = vpack.c.b16 %v2648, %v2616
    %v3385 = vpack.c.b16 %v2649, %v2617
    %v3386 = vpack.c.b16 %v2650, %v2618
    %v3387 = vpack.c.b16 %v2651, %v2619
    %v3388 = vpack.c.b16 %v2652, %v2620
    %v3389 = vpack.c.b16 %v2653, %v2621
    %v3390 = vpack.c.b16 %v2654, %v2622
    %v3391 = vpack.c.b16 %v2655, %v2623
    %v3392 = vpack.c.b16 %v2656, %v2624
    %v3393 = vpack.c.b16 %v2657, %v2625
    %v3394 = vpack.c.b16 %v2658, %v2626
    %v3395 = vpack.c.b16 %v2691, %v2659
    %v3396 = vpack.c.b16 %v2692, %v2660
    %v3397 = vpack.c.b16 %v2693, %v2661
    %v3398 = vpack.c.b16 %v2694, %v2662
    %v3399 = vpack.c.b16 %v2695, %v2663
    %v3400 = vpack.c.b16 %v2696, %v2664
    %v3401 = vpack.c.b16 %v2697, %v2665
    %v3402 = vpack.c.b16 %v2698, %v2666
    %v3403 = vpack.c.b16 %v2699, %v2667
    %v3404 = vpack.c.b16 %v2700, %v2668
    %v3405 = vpack.c.b16 %v2701, %v2669
    %v3406 = vpack.c.b16 %v2702, %v2670
    %v3407 = vpack.c.b16 %v2703, %v2671
    %v3408 = vpack.c.b16 %v2704, %v2672
    %v3409 = vpack.c.b16 %v2705, %v2673
    %v3410 = vpack.c.b16 %v2706, %v2674
    %v3411 = vpack.c.b16 %v2707, %v2675
    %v3412 = vpack.c.b16 %v2708, %v2676
    %v3413 = vpack.c.b16 %v2709, %v2677
    %v3414 = vpack.c.b16 %v2710, %v2678
    %v3415 = vpack.c.b16 %v2711, %v2679
    %v3416 = vpack.c.b16 %v2712, %v2680
    %v3417 = vpack.c.b16 %v2713, %v2681
    %v3418 = vpack.c.b16 %v2714, %v2682
    %v3419 = vpack.c.b16 %v2715, %v2683
    %v3420 = vpack.c.b16 %v2716, %v2684
    %v3421 = vpack.c.b16 %v2717, %v2685
    %v3422 = vpack.c.b16 %v2718, %v2686
    %v3423 = vpack.c.b16 %v2719, %v2687
    %v3424 = vpack.c.b16 %v2720, %v2688
    %v3425 = vpack.c.b16 %v2721, %v2689
    %v3426 = vpack.c.b16 %v2722, %v2690
    %v3427 = vpack.c.b16 %v2755, %v2723
    %v3428 = vpack.c.b16 %v2756, %v2724
    %v3429 = vpack.c.b16 %v2757, %v2725
    %v3430 = vpack.c.b16 %v2758, %v2726
    %v3431 = vpack.c.b16 %v2759, %v2727
    %v3432 = vpack.c.b16 %v2760, %v2728
    %v3433 = vpack.c.b16 %v2761, %v2729
    %v3434 = vpack.c.b16 %v2762, %v2730
    %v3435 = vpack.c.b16 %v2763, %v2731
    %v3436 = vpack.c.b16 %v2764, %v2732
    %v3437 = vpack.c.b16 %v2765, %v2733
    %v3438 = vpack.c.b16 %v2766, %v2734
    %v3439 = vpack.c.b16 %v2767, %v2735
    %v3440 = vpack.c.b16 %v2768, %v2736
    %v3441 = vpack.c.b16 %v2769, %v2737
    %v3442 = vpack.c.b16 %v2770, %v2738
    %v3443 = vpack.c.b16 %v2771, %v2739
    %v3444 = vpack.c.b16 %v2772, %v2740
    %v3445 = vpack.c.b16 %v2773, %v2741
    %v3446 = vpack.c.b16 %v2774, %v2742
    %v3447 = vpack.c.b16 %v2775, %v2743
    %v3448 = vpack.c.b16 %v2776, %v2744
    %v3449 = vpack.c.b16 %v2777, %v2745
    %v3450 = vpack.c.b16 %v2778, %v2746
    %v3451 = vpack.c.b16 %v2779, %v2747
    %v3452 = vpack.c.b16 %v2780, %v2748
    %v3453 = vpack.c.b16 %v2781, %v2749
    %v3454 = vpack.c.b16 %v2782, %v2750
    %v3455 = vpack.c.b16 %v2783, %v2751
    %v3456 = vpack.c.b16 %v2784, %v2752
    %v3457 = vpack.c.b16 %v2785, %v2753
    %v3458 = vpack.c.b16 %v2786, %v2754
    %v3459 = vpack.c.b16 %v2819, %v2787
    %v3460 = vpack.c.b16 %v2820, %v2788
    %v3461 = vpack.c.b16 %v2821, %v2789
    %v3462 = vpack.c.b16 %v2822, %v2790
    %v3463 = vpack.c.b16 %v2823, %v2791
    %v3464 = vpack.c.b16 %v2824, %v2792
    %v3465 = vpack.c.b16 %v2825, %v2793
    %v3466 = vpack.c.b16 %v2826, %v2794
    %v3467 = vpack.c.b16 %v2827, %v2795
    %v3468 = vpack.c.b16 %v2828, %v2796
    %v3469 = vpack.c.b16 %v2829, %v2797
    %v3470 = vpack.c.b16 %v2830, %v2798
    %v3471 = vpack.c.b16 %v2831, %v2799
    %v3472 = vpack.c.b16 %v2832, %v2800
    %v3473 = vpack.c.b16 %v2833, %v2801
    %v3474 = vpack.c.b16 %v2834, %v2802
    %v3475 = vpack.c.b16 %v2835, %v2803
    %v3476 = vpack.c.b16 %v2836, %v2804
    %v3477 = vpack.c.b16 %v2837, %v2805
    %v3478 = vpack.c.b16 %v2838, %v2806
    %v3479 = vpack.c.b16 %v2839, %v2807
    %v3480 = vpack.c.b16 %v2840, %v2808
    %v3481 = vpack.c.b16 %v2841, %v2809
    %v3482 = vpack.c.b16 %v2842, %v2810
    %v3483 = vpack.c.b16 %v2843, %v2811
    %v3484 = vpack.c.b16 %v2844, %v2812
    %v3485 = vpack.c.b16 %v2845, %v2813
    %v3486 = vpack.c.b16 %v2846, %v2814
    %v3487 = vpack.c.b16 %v2847, %v2815
    %v3488 = vpack.c.b16 %v2848, %v2816
    %v3489 = vpack.c.b16 %v2849, %v2817
    %v3490 = vpack.c.b16 %v2850, %v2818
    %v3491 = vpack.c.b16 %v2883, %v2851
    %v3492 = vpack.c.b16 %v2884, %v2852
    %v3493 = vpack.c.b16 %v2885, %v2853
    %v3494 = vpack.c.b16 %v2886, %v2854
    %v3495 = vpack.c.b16 %v2887, %v2855
    %v3496 = vpack.c.b16 %v2888, %v2856
    %v3497 = vpack.c.b16 %v2889, %v2857
    %v3498 = vpack.c.b16 %v2890, %v2858
    %v3499 = vpack.c.b16 %v2891, %v2859
    %v3500 = vpack.c.b16 %v2892, %v2860
    %v3501 = vpack.c.b16 %v2893, %v2861
    %v3502 = vpack.c.b16 %v2894, %v2862
    %v3503 = vpack.c.b16 %v2895, %v2863
    %v3504 = vpack.c.b16 %v2896, %v2864
    %v3505 = vpack.c.b16 %v2897, %v2865
    %v3506 = vpack.c.b16 %v2898, %v2866
    %v3507 = vpack.c.b16 %v2899, %v2867
    %v3508 = vpack.c.b16 %v2900, %v2868
    %v3509 = vpack.c.b16 %v2901, %v2869
    %v3510 = vpack.c.b16 %v2902, %v2870
    %v3511 = vpack.c.b16 %v2903, %v2871
    %v3512 = vpack.c.b16 %v2904, %v2872
    %v3513 = vpack.c.b16 %v2905, %v2873
    %v3514 = vpack.c.b16 %v2906, %v2874
    %v3515 = vpack.c.b16 %v2907, %v2875
    %v3516 = vpack.c.b16 %v2908, %v2876
    %v3517 = vpack.c.b16 %v2909, %v2877
    %v3518 = vpack.c.b16 %v2910, %v2878
    %v3519 = vpack.c.b16 %v2911, %v2879
    %v3520 = vpack.c.b16 %v2912, %v2880
    %v3521 = vpack.c.b16 %v2913, %v2881
    %v3522 = vpack.c.b16 %v2914, %v2882
    %v3523 = vpack.c.b16 %v2947, %v2915
    %v3524 = vpack.c.b16 %v2948, %v2916
    %v3525 = vpack.c.b16 %v2949, %v2917
    %v3526 = vpack.c.b16 %v2950, %v2918
    %v3527 = vpack.c.b16 %v2951, %v2919
    %v3528 = vpack.c.b16 %v2952, %v2920
    %v3529 = vpack.c.b16 %v2953, %v2921
    %v3530 = vpack.c.b16 %v2954, %v2922
    %v3531 = vpack.c.b16 %v2955, %v2923
    %v3532 = vpack.c.b16 %v2956, %v2924
    %v3533 = vpack.c.b16 %v2957, %v2925
    %v3534 = vpack.c.b16 %v2958, %v2926
    %v3535 = vpack.c.b16 %v2959, %v2927
    %v3536 = vpack.c.b16 %v2960, %v2928
    %v3537 = vpack.c.b16 %v2961, %v2929
    %v3538 = vpack.c.b16 %v2962, %v2930
    %v3539 = vpack.c.b16 %v2963, %v2931
    %v3540 = vpack.c.b16 %v2964, %v2932
    %v3541 = vpack.c.b16 %v2965, %v2933
    %v3542 = vpack.c.b16 %v2966, %v2934
    %v3543 = vpack.c.b16 %v2967, %v2935
    %v3544 = vpack.c.b16 %v2968, %v2936
    %v3545 = vpack.c.b16 %v2969, %v2937
    %v3546 = vpack.c.b16 %v2970, %v2938
    %v3547 = vpack.c.b16 %v2971, %v2939
    %v3548 = vpack.c.b16 %v2972, %v2940
    %v3549 = vpack.c.b16 %v2973, %v2941
    %v3550 = vpack.c.b16 %v2974, %v2942
    %v3551 = vpack.c.b16 %v2975, %v2943
    %v3552 = vpack.c.b16 %v2976, %v2944
    %v3553 = vpack.c.b16 %v2977, %v2945
    %v3554 = vpack.c.b16 %v2978, %v2946
    %v3555 = vpack.c.b16 %v3011, %v2979
    %v3556 = vpack.c.b16 %v3012, %v2980
    %v3557 = vpack.c.b16 %v3013, %v2981
    %v3558 = vpack.c.b16 %v3014, %v2982
    %v3559 = vpack.c.b16 %v3015, %v2983
    %v3560 = vpack.c.b16 %v3016, %v2984
    %v3561 = vpack.c.b16 %v3017, %v2985
    %v3562 = vpack.c.b16 %v3018, %v2986
    %v3563 = vpack.c.b16 %v3019, %v2987
    %v3564 = vpack.c.b16 %v3020, %v2988
    %v3565 = vpack.c.b16 %v3021, %v2989
    %v3566 = vpack.c.b16 %v3022, %v2990
    %v3567 = vpack.c.b16 %v3023, %v2991
    %v3568 = vpack.c.b16 %v3024, %v2992
    %v3569 = vpack.c.b16 %v3025, %v2993
    %v3570 = vpack.c.b16 %v3026, %v2994
    %v3571 = vpack.c.b16 %v3027, %v2995
    %v3572 = vpack.c.b16 %v3028, %v2996
    %v3573 = vpack.c.b16 %v3029, %v2997
    %v3574 = vpack.c.b16 %v3030, %v2998
    %v3575 = vpack.c.b16 %v3031, %v2999
    %v3576 = vpack.c.b16 %v3032, %v3000
    %v3577 = vpack.c.b16 %v3033, %v3001
    %v3578 = vpack.c.b16 %v3034, %v3002
    %v3579 = vpack.c.b16 %v3035, %v3003
    %v3580 = vpack.c.b16 %v3036, %v3004
    %v3581 = vpack.c.b16 %v3037, %v3005
    %v3582 = vpack.c.b16 %v3038, %v3006
    %v3583 = vpack.c.b16 %v3039, %v3007
    %v3584 = vpack.c.b16 %v3040, %v3008
    %v3585 = vpack.c.b16 %v3041, %v3009
    %v3586 = vpack.c.b16 %v3042, %v3010
    %v3587 = vpack.c.b16 %v3075, %v3043
    %v3588 = vpack.c.b16 %v3076, %v3044
    %v3589 = vpack.c.b16 %v3077, %v3045
    %v3590 = vpack.c.b16 %v3078, %v3046
    %v3591 = vpack.c.b16 %v3079, %v3047
    %v3592 = vpack.c.b16 %v3080, %v3048
    %v3593 = vpack.c.b16 %v3081, %v3049
    %v3594 = vpack.c.b16 %v3082, %v3050
    %v3595 = vpack.c.b16 %v3083, %v3051
    %v3596 = vpack.c.b16 %v3084, %v3052
    %v3597 = vpack.c.b16 %v3085, %v3053
    %v3598 = vpack.c.b16 %v3086, %v3054
    %v3599 = vpack.c.b16 %v3087, %v3055
    %v3600 = vpack.c.b16 %v3088, %v3056
    %v3601 = vpack.c.b16 %v3089, %v3057
    %v3602 = vpack.c.b16 %v3090, %v3058
    %v3603 = vpack.c.b16 %v3091, %v3059
    %v3604 = vpack.c.b16 %v3092, %v3060
    %v3605 = vpack.c.b16 %v3093, %v3061
    %v3606 = vpack.c.b16 %v3094, %v3062
    %v3607 = vpack.c.b16 %v3095, %v3063
    %v3608 = vpack.c.b16 %v3096, %v3064
    %v3609 = vpack.c.b16 %v3097, %v3065
    %v3610 = vpack.c.b16 %v3098, %v3066
    %v3611 = vpack.c.b16 %v3099, %v3067
    %v3612 = vpack.c.b16 %v3100, %v3068
    %v3613 = vpack.c.b16 %v3101, %v3069
    %v3614 = vpack.c.b16 %v3102, %v3070
    %v3615 = vpack.c.b16 %v3103, %v3071
    %v3616 = vpack.c.b16 %v3104, %v3072
    %v3617 = vpack.c.b16 %v3105, %v3073
    %v3618 = vpack.c.b16 %v3106, %v3074
    %4131 = vmatprep.subr.bf16.mxu0 %v3108
    %4132 = vmatpush1.bf16.msra.mxu0 %v3107
    %4133 = vmatprep.subr.bf16.mxu0 %v3140
    %4134 = vmatpush1.bf16.msra.mxu0 %v3139
    %4135 = vmatprep.subr.bf16.mxu0 %v3172
    %4136 = vmatpush1.bf16.msra.mxu0 %v3171
    %4137 = vmatprep.subr.bf16.mxu0 %v3204
    %4138 = vmatpush1.bf16.msra.mxu0 %v3203
    %4139 = vmatprep.subr.bf16.mxu0 %v3236
    %4140 = vmatpush1.bf16.msra.mxu0 %v3235
    %4141 = vmatprep.subr.bf16.mxu0 %v3268
    %4142 = vmatpush1.bf16.msra.mxu0 %v3267
    %4143 = vmatprep.subr.bf16.mxu0 %v3300
    %4144 = vmatpush1.bf16.msra.mxu0 %v3299
    %4145 = vmatprep.subr.bf16.mxu0 %v3332
    %4146 = vmatpush1.bf16.msra.mxu0 %v3331
    %4147 = vmatprep.subr.bf16.mxu0 %v3364
    %4148 = vmatpush1.bf16.msra.mxu0 %v3363
    %4149 = vmatprep.subr.bf16.mxu0 %v3396
    %4150 = vmatpush1.bf16.msra.mxu0 %v3395
    %4151 = vmatprep.subr.bf16.mxu0 %v3428
    %4152 = vmatpush1.bf16.msra.mxu0 %v3427
    %4153 = vmatprep.subr.bf16.mxu0 %v3460
    %4154 = vmatpush1.bf16.msra.mxu0 %v3459
    %4155 = vmatprep.subr.bf16.mxu0 %v3492
    %4156 = vmatpush1.bf16.msra.mxu0 %v3491
    %4157 = vmatprep.subr.bf16.mxu0 %v3524
    %4158 = vmatpush1.bf16.msra.mxu0 %v3523
    %4159 = vmatprep.subr.bf16.mxu0 %v3556
    %4160 = vmatpush1.bf16.msra.mxu0 %v3555
    %4161 = vmatprep.subr.bf16.mxu0 %v3588
    %4162 = vmatpush1.bf16.msra.mxu0 %v3587
    %4163 = vmatprep.mubr.bf16.mxu0 %v890
    %4164 = vmatmul.mubr.bf16.gmra.mrb[0].mxu0 %v889
    %v4165 = vpop.f32.mrb[0].mxu0
    %v4166 = vadd.f32 %v1414, %v4165
    %v4167 = vpop.f32.mrb[0].mxu0
    %v4168 = vadd.f32 %v1418, %v4167
    %v4169 = vpop.f32.mrb[0].mxu0
    %v4170 = vpop.f32.mrb[0].mxu0
    %4171 = vdwg.mxu0
    %4172 = vmatprep.subr.bf16.mxu0 %v3110
    %4173 = vmatpush1.bf16.msra.mxu0 %v3109
    %4174 = vmatprep.subr.bf16.mxu0 %v3142
    %4175 = vmatpush1.bf16.msra.mxu0 %v3141
    %4176 = vmatprep.subr.bf16.mxu0 %v3174
    %4177 = vmatpush1.bf16.msra.mxu0 %v3173
    %4178 = vmatprep.subr.bf16.mxu0 %v3206
    %4179 = vmatpush1.bf16.msra.mxu0 %v3205
    %4180 = vmatprep.subr.bf16.mxu0 %v3238
    %4181 = vmatpush1.bf16.msra.mxu0 %v3237
    %4182 = vmatprep.subr.bf16.mxu0 %v3270
    %4183 = vmatpush1.bf16.msra.mxu0 %v3269
    %4184 = vmatprep.subr.bf16.mxu0 %v3302
    %4185 = vmatpush1.bf16.msra.mxu0 %v3301
    %4186 = vmatprep.subr.bf16.mxu0 %v3334
    %4187 = vmatpush1.bf16.msra.mxu0 %v3333
    %4188 = vmatprep.subr.bf16.mxu0 %v3366
    %4189 = vmatpush1.bf16.msra.mxu0 %v3365
    %4190 = vmatprep.subr.bf16.mxu0 %v3398
    %4191 = vmatpush1.bf16.msra.mxu0 %v3397
    %4192 = vmatprep.subr.bf16.mxu0 %v3430
    %4193 = vmatpush1.bf16.msra.mxu0 %v3429
    %4194 = vmatprep.subr.bf16.mxu0 %v3462
    %4195 = vmatpush1.bf16.msra.mxu0 %v3461
    %4196 = vmatprep.subr.bf16.mxu0 %v3494
    %4197 = vmatpush1.bf16.msra.mxu0 %v3493
    %4198 = vmatprep.subr.bf16.mxu0 %v3526
    %4199 = vmatpush1.bf16.msra.mxu0 %v3525
    %4200 = vmatprep.subr.bf16.mxu0 %v3558
    %4201 = vmatpush1.bf16.msra.mxu0 %v3557
    %4202 = vmatprep.subr.bf16.mxu0 %v3590
    %4203 = vmatpush1.bf16.msra.mxu0 %v3589
    %4204 = vmatprep.mubr.bf16.mxu0 %v890
    %4205 = vmatmul.mubr.bf16.gmra.mrb[0].mxu0 %v889
    %v4206 = vpop.f32.mrb[0].mxu0
    %v4207 = vadd.f32 %v1422, %v4206
    %v4208 = vpop.f32.mrb[0].mxu0
    %v4209 = vadd.f32 %v1426, %v4208
    %v4210 = vpop.f32.mrb[0].mxu0
    %v4211 = vpop.f32.mrb[0].mxu0
    %4212 = vdwg.mxu0
    %4213 = vmatprep.subr.bf16.mxu0 %v3112
    %4214 = vmatpush1.bf16.msra.mxu0 %v3111
    %4215 = vmatprep.subr.bf16.mxu0 %v3144
    %4216 = vmatpush1.bf16.msra.mxu0 %v3143
    %4217 = vmatprep.subr.bf16.mxu0 %v3176
    %4218 = vmatpush1.bf16.msra.mxu0 %v3175
    %4219 = vmatprep.subr.bf16.mxu0 %v3208
    %4220 = vmatpush1.bf16.msra.mxu0 %v3207
    %4221 = vmatprep.subr.bf16.mxu0 %v3240
    %4222 = vmatpush1.bf16.msra.mxu0 %v3239
    %4223 = vmatprep.subr.bf16.mxu0 %v3272
    %4224 = vmatpush1.bf16.msra.mxu0 %v3271
    %4225 = vmatprep.subr.bf16.mxu0 %v3304
    %4226 = vmatpush1.bf16.msra.mxu0 %v3303
    %4227 = vmatprep.subr.bf16.mxu0 %v3336
    %4228 = vmatpush1.bf16.msra.mxu0 %v3335
    %4229 = vmatprep.subr.bf16.mxu0 %v3368
    %4230 = vmatpush1.bf16.msra.mxu0 %v3367
    %4231 = vmatprep.subr.bf16.mxu0 %v3400
    %4232 = vmatpush1.bf16.msra.mxu0 %v3399
    %4233 = vmatprep.subr.bf16.mxu0 %v3432
    %4234 = vmatpush1.bf16.msra.mxu0 %v3431
    %4235 = vmatprep.subr.bf16.mxu0 %v3464
    %4236 = vmatpush1.bf16.msra.mxu0 %v3463
    %4237 = vmatprep.subr.bf16.mxu0 %v3496
    %4238 = vmatpush1.bf16.msra.mxu0 %v3495
    %4239 = vmatprep.subr.bf16.mxu0 %v3528
    %4240 = vmatpush1.bf16.msra.mxu0 %v3527
    %4241 = vmatprep.subr.bf16.mxu0 %v3560
    %4242 = vmatpush1.bf16.msra.mxu0 %v3559
    %4243 = vmatprep.subr.bf16.mxu0 %v3592
    %4244 = vmatpush1.bf16.msra.mxu0 %v3591
    %4245 = vmatprep.mubr.bf16.mxu0 %v890
    %4246 = vmatmul.mubr.bf16.gmra.mrb[0].mxu0 %v889
    %v4247 = vpop.f32.mrb[0].mxu0
    %v4248 = vadd.f32 %v1430, %v4247
    %v4249 = vpop.f32.mrb[0].mxu0
    %v4250 = vadd.f32 %v1434, %v4249
    %v4251 = vpop.f32.mrb[0].mxu0
    %v4252 = vpop.f32.mrb[0].mxu0
    %4253 = vdwg.mxu0
    %4254 = vmatprep.subr.bf16.mxu0 %v3114
    %4255 = vmatpush1.bf16.msra.mxu0 %v3113
    %4256 = vmatprep.subr.bf16.mxu0 %v3146
    %4257 = vmatpush1.bf16.msra.mxu0 %v3145
    %4258 = vmatprep.subr.bf16.mxu0 %v3178
    %4259 = vmatpush1.bf16.msra.mxu0 %v3177
    %4260 = vmatprep.subr.bf16.mxu0 %v3210
    %4261 = vmatpush1.bf16.msra.mxu0 %v3209
    %4262 = vmatprep.subr.bf16.mxu0 %v3242
    %4263 = vmatpush1.bf16.msra.mxu0 %v3241
    %4264 = vmatprep.subr.bf16.mxu0 %v3274
    %4265 = vmatpush1.bf16.msra.mxu0 %v3273
    %4266 = vmatprep.subr.bf16.mxu0 %v3306
    %4267 = vmatpush1.bf16.msra.mxu0 %v3305
    %4268 = vmatprep.subr.bf16.mxu0 %v3338
    %4269 = vmatpush1.bf16.msra.mxu0 %v3337
    %4270 = vmatprep.subr.bf16.mxu0 %v3370
    %4271 = vmatpush1.bf16.msra.mxu0 %v3369
    %4272 = vmatprep.subr.bf16.mxu0 %v3402
    %4273 = vmatpush1.bf16.msra.mxu0 %v3401
    %4274 = vmatprep.subr.bf16.mxu0 %v3434
    %4275 = vmatpush1.bf16.msra.mxu0 %v3433
    %4276 = vmatprep.subr.bf16.mxu0 %v3466
    %4277 = vmatpush1.bf16.msra.mxu0 %v3465
    %4278 = vmatprep.subr.bf16.mxu0 %v3498
    %4279 = vmatpush1.bf16.msra.mxu0 %v3497
    %4280 = vmatprep.subr.bf16.mxu0 %v3530
    %4281 = vmatpush1.bf16.msra.mxu0 %v3529
    %4282 = vmatprep.subr.bf16.mxu0 %v3562
    %4283 = vmatpush1.bf16.msra.mxu0 %v3561
    %4284 = vmatprep.subr.bf16.mxu0 %v3594
    %4285 = vmatpush1.bf16.msra.mxu0 %v3593
    %4286 = vmatprep.mubr.bf16.mxu0 %v890
    %4287 = vmatmul.mubr.bf16.gmra.mrb[0].mxu0 %v889
    %v4288 = vpop.f32.mrb[0].mxu0
    %v4289 = vadd.f32 %v1438, %v4288
    %v4290 = vpop.f32.mrb[0].mxu0
    %v4291 = vadd.f32 %v1442, %v4290
    %v4292 = vpop.f32.mrb[0].mxu0
    %v4293 = vpop.f32.mrb[0].mxu0
    %4294 = vdwg.mxu0
    %4295 = vmatprep.subr.bf16.mxu0 %v3116
    %4296 = vmatpush1.bf16.msra.mxu0 %v3115
    %4297 = vmatprep.subr.bf16.mxu0 %v3148
    %4298 = vmatpush1.bf16.msra.mxu0 %v3147
    %4299 = vmatprep.subr.bf16.mxu0 %v3180
    %4300 = vmatpush1.bf16.msra.mxu0 %v3179
    %4301 = vmatprep.subr.bf16.mxu0 %v3212
    %4302 = vmatpush1.bf16.msra.mxu0 %v3211
    %4303 = vmatprep.subr.bf16.mxu0 %v3244
    %4304 = vmatpush1.bf16.msra.mxu0 %v3243
    %4305 = vmatprep.subr.bf16.mxu0 %v3276
    %4306 = vmatpush1.bf16.msra.mxu0 %v3275
    %4307 = vmatprep.subr.bf16.mxu0 %v3308
    %4308 = vmatpush1.bf16.msra.mxu0 %v3307
    %4309 = vmatprep.subr.bf16.mxu0 %v3340
    %4310 = vmatpush1.bf16.msra.mxu0 %v3339
    %4311 = vmatprep.subr.bf16.mxu0 %v3372
    %4312 = vmatpush1.bf16.msra.mxu0 %v3371
    %4313 = vmatprep.subr.bf16.mxu0 %v3404
    %4314 = vmatpush1.bf16.msra.mxu0 %v3403
    %4315 = vmatprep.subr.bf16.mxu0 %v3436
    %4316 = vmatpush1.bf16.msra.mxu0 %v3435
    %4317 = vmatprep.subr.bf16.mxu0 %v3468
    %4318 = vmatpush1.bf16.msra.mxu0 %v3467
    %4319 = vmatprep.subr.bf16.mxu0 %v3500
    %4320 = vmatpush1.bf16.msra.mxu0 %v3499
    %4321 = vmatprep.subr.bf16.mxu0 %v3532
    %4322 = vmatpush1.bf16.msra.mxu0 %v3531
    %4323 = vmatprep.subr.bf16.mxu0 %v3564
    %4324 = vmatpush1.bf16.msra.mxu0 %v3563
    %4325 = vmatprep.subr.bf16.mxu0 %v3596
    %4326 = vmatpush1.bf16.msra.mxu0 %v3595
    %4327 = vmatprep.mubr.bf16.mxu0 %v890
    %4328 = vmatmul.mubr.bf16.gmra.mrb[0].mxu0 %v889
    %v4329 = vpop.f32.mrb[0].mxu0
    %v4330 = vadd.f32 %v1446, %v4329
    %v4331 = vpop.f32.mrb[0].mxu0
    %v4332 = vadd.f32 %v1450, %v4331
    %v4333 = vpop.f32.mrb[0].mxu0
    %v4334 = vpop.f32.mrb[0].mxu0
    %4335 = vdwg.mxu0
    %4336 = vmatprep.subr.bf16.mxu0 %v3118
    %4337 = vmatpush1.bf16.msra.mxu0 %v3117
    %4338 = vmatprep.subr.bf16.mxu0 %v3150
    %4339 = vmatpush1.bf16.msra.mxu0 %v3149
    %4340 = vmatprep.subr.bf16.mxu0 %v3182
    %4341 = vmatpush1.bf16.msra.mxu0 %v3181
    %4342 = vmatprep.subr.bf16.mxu0 %v3214
    %4343 = vmatpush1.bf16.msra.mxu0 %v3213
    %4344 = vmatprep.subr.bf16.mxu0 %v3246
    %4345 = vmatpush1.bf16.msra.mxu0 %v3245
    %4346 = vmatprep.subr.bf16.mxu0 %v3278
    %4347 = vmatpush1.bf16.msra.mxu0 %v3277
    %4348 = vmatprep.subr.bf16.mxu0 %v3310
    %4349 = vmatpush1.bf16.msra.mxu0 %v3309
    %4350 = vmatprep.subr.bf16.mxu0 %v3342
    %4351 = vmatpush1.bf16.msra.mxu0 %v3341
    %4352 = vmatprep.subr.bf16.mxu0 %v3374
    %4353 = vmatpush1.bf16.msra.mxu0 %v3373
    %4354 = vmatprep.subr.bf16.mxu0 %v3406
    %4355 = vmatpush1.bf16.msra.mxu0 %v3405
    %4356 = vmatprep.subr.bf16.mxu0 %v3438
    %4357 = vmatpush1.bf16.msra.mxu0 %v3437
    %4358 = vmatprep.subr.bf16.mxu0 %v3470
    %4359 = vmatpush1.bf16.msra.mxu0 %v3469
    %4360 = vmatprep.subr.bf16.mxu0 %v3502
    %4361 = vmatpush1.bf16.msra.mxu0 %v3501
    %4362 = vmatprep.subr.bf16.mxu0 %v3534
    %4363 = vmatpush1.bf16.msra.mxu0 %v3533
    %4364 = vmatprep.subr.bf16.mxu0 %v3566
    %4365 = vmatpush1.bf16.msra.mxu0 %v3565
    %4366 = vmatprep.subr.bf16.mxu0 %v3598
    %4367 = vmatpush1.bf16.msra.mxu0 %v3597
    %4368 = vmatprep.mubr.bf16.mxu0 %v890
    %4369 = vmatmul.mubr.bf16.gmra.mrb[0].mxu0 %v889
    %v4370 = vpop.f32.mrb[0].mxu0
    %v4371 = vadd.f32 %v1454, %v4370
    %v4372 = vpop.f32.mrb[0].mxu0
    %v4373 = vadd.f32 %v1458, %v4372
    %v4374 = vpop.f32.mrb[0].mxu0
    %v4375 = vpop.f32.mrb[0].mxu0
    %4376 = vdwg.mxu0
    %4377 = vmatprep.subr.bf16.mxu0 %v3120
    %4378 = vmatpush1.bf16.msra.mxu0 %v3119
    %4379 = vmatprep.subr.bf16.mxu0 %v3152
    %4380 = vmatpush1.bf16.msra.mxu0 %v3151
    %4381 = vmatprep.subr.bf16.mxu0 %v3184
    %4382 = vmatpush1.bf16.msra.mxu0 %v3183
    %4383 = vmatprep.subr.bf16.mxu0 %v3216
    %4384 = vmatpush1.bf16.msra.mxu0 %v3215
    %4385 = vmatprep.subr.bf16.mxu0 %v3248
    %4386 = vmatpush1.bf16.msra.mxu0 %v3247
    %4387 = vmatprep.subr.bf16.mxu0 %v3280
    %4388 = vmatpush1.bf16.msra.mxu0 %v3279
    %4389 = vmatprep.subr.bf16.mxu0 %v3312
    %4390 = vmatpush1.bf16.msra.mxu0 %v3311
    %4391 = vmatprep.subr.bf16.mxu0 %v3344
    %4392 = vmatpush1.bf16.msra.mxu0 %v3343
    %4393 = vmatprep.subr.bf16.mxu0 %v3376
    %4394 = vmatpush1.bf16.msra.mxu0 %v3375
    %4395 = vmatprep.subr.bf16.mxu0 %v3408
    %4396 = vmatpush1.bf16.msra.mxu0 %v3407
    %4397 = vmatprep.subr.bf16.mxu0 %v3440
    %4398 = vmatpush1.bf16.msra.mxu0 %v3439
    %4399 = vmatprep.subr.bf16.mxu0 %v3472
    %4400 = vmatpush1.bf16.msra.mxu0 %v3471
    %4401 = vmatprep.subr.bf16.mxu0 %v3504
    %4402 = vmatpush1.bf16.msra.mxu0 %v3503
    %4403 = vmatprep.subr.bf16.mxu0 %v3536
    %4404 = vmatpush1.bf16.msra.mxu0 %v3535
    %4405 = vmatprep.subr.bf16.mxu0 %v3568
    %4406 = vmatpush1.bf16.msra.mxu0 %v3567
    %4407 = vmatprep.subr.bf16.mxu0 %v3600
    %4408 = vmatpush1.bf16.msra.mxu0 %v3599
    %4409 = vmatprep.mubr.bf16.mxu0 %v890
    %4410 = vmatmul.mubr.bf16.gmra.mrb[0].mxu0 %v889
    %v4411 = vpop.f32.mrb[0].mxu0
    %v4412 = vadd.f32 %v1462, %v4411
    %v4413 = vpop.f32.mrb[0].mxu0
    %v4414 = vadd.f32 %v1466, %v4413
    %v4415 = vpop.f32.mrb[0].mxu0
    %v4416 = vpop.f32.mrb[0].mxu0
    %4417 = vdwg.mxu0
    %4418 = vmatprep.subr.bf16.mxu0 %v3122
    %4419 = vmatpush1.bf16.msra.mxu0 %v3121
    %4420 = vmatprep.subr.bf16.mxu0 %v3154
    %4421 = vmatpush1.bf16.msra.mxu0 %v3153
    %4422 = vmatprep.subr.bf16.mxu0 %v3186
    %4423 = vmatpush1.bf16.msra.mxu0 %v3185
    %4424 = vmatprep.subr.bf16.mxu0 %v3218
    %4425 = vmatpush1.bf16.msra.mxu0 %v3217
    %4426 = vmatprep.subr.bf16.mxu0 %v3250
    %4427 = vmatpush1.bf16.msra.mxu0 %v3249
    %4428 = vmatprep.subr.bf16.mxu0 %v3282
    %4429 = vmatpush1.bf16.msra.mxu0 %v3281
    %4430 = vmatprep.subr.bf16.mxu0 %v3314
    %4431 = vmatpush1.bf16.msra.mxu0 %v3313
    %4432 = vmatprep.subr.bf16.mxu0 %v3346
    %4433 = vmatpush1.bf16.msra.mxu0 %v3345
    %4434 = vmatprep.subr.bf16.mxu0 %v3378
    %4435 = vmatpush1.bf16.msra.mxu0 %v3377
    %4436 = vmatprep.subr.bf16.mxu0 %v3410
    %4437 = vmatpush1.bf16.msra.mxu0 %v3409
    %4438 = vmatprep.subr.bf16.mxu0 %v3442
    %4439 = vmatpush1.bf16.msra.mxu0 %v3441
    %4440 = vmatprep.subr.bf16.mxu0 %v3474
    %4441 = vmatpush1.bf16.msra.mxu0 %v3473
    %4442 = vmatprep.subr.bf16.mxu0 %v3506
    %4443 = vmatpush1.bf16.msra.mxu0 %v3505
    %4444 = vmatprep.subr.bf16.mxu0 %v3538
    %4445 = vmatpush1.bf16.msra.mxu0 %v3537
    %4446 = vmatprep.subr.bf16.mxu0 %v3570
    %4447 = vmatpush1.bf16.msra.mxu0 %v3569
    %4448 = vmatprep.subr.bf16.mxu0 %v3602
    %4449 = vmatpush1.bf16.msra.mxu0 %v3601
    %4450 = vmatprep.mubr.bf16.mxu0 %v890
    %4451 = vmatmul.mubr.bf16.gmra.mrb[0].mxu0 %v889
    %v4452 = vpop.f32.mrb[0].mxu0
    %v4453 = vadd.f32 %v1470, %v4452
    %v4454 = vpop.f32.mrb[0].mxu0
    %v4455 = vadd.f32 %v1474, %v4454
    %v4456 = vpop.f32.mrb[0].mxu0
    %v4457 = vpop.f32.mrb[0].mxu0
    %4458 = vdwg.mxu0
    %4459 = vmatprep.subr.bf16.mxu0 %v3124
    %4460 = vmatpush1.bf16.msra.mxu0 %v3123
    %4461 = vmatprep.subr.bf16.mxu0 %v3156
    %4462 = vmatpush1.bf16.msra.mxu0 %v3155
    %4463 = vmatprep.subr.bf16.mxu0 %v3188
    %4464 = vmatpush1.bf16.msra.mxu0 %v3187
    %4465 = vmatprep.subr.bf16.mxu0 %v3220
    %4466 = vmatpush1.bf16.msra.mxu0 %v3219
    %4467 = vmatprep.subr.bf16.mxu0 %v3252
    %4468 = vmatpush1.bf16.msra.mxu0 %v3251
    %4469 = vmatprep.subr.bf16.mxu0 %v3284
    %4470 = vmatpush1.bf16.msra.mxu0 %v3283
    %4471 = vmatprep.subr.bf16.mxu0 %v3316
    %4472 = vmatpush1.bf16.msra.mxu0 %v3315
    %4473 = vmatprep.subr.bf16.mxu0 %v3348
    %4474 = vmatpush1.bf16.msra.mxu0 %v3347
    %4475 = vmatprep.subr.bf16.mxu0 %v3380
    %4476 = vmatpush1.bf16.msra.mxu0 %v3379
    %4477 = vmatprep.subr.bf16.mxu0 %v3412
    %4478 = vmatpush1.bf16.msra.mxu0 %v3411
    %4479 = vmatprep.subr.bf16.mxu0 %v3444
    %4480 = vmatpush1.bf16.msra.mxu0 %v3443
    %4481 = vmatprep.subr.bf16.mxu0 %v3476
    %4482 = vmatpush1.bf16.msra.mxu0 %v3475
    %4483 = vmatprep.subr.bf16.mxu0 %v3508
    %4484 = vmatpush1.bf16.msra.mxu0 %v3507
    %4485 = vmatprep.subr.bf16.mxu0 %v3540
    %4486 = vmatpush1.bf16.msra.mxu0 %v3539
    %4487 = vmatprep.subr.bf16.mxu0 %v3572
    %4488 = vmatpush1.bf16.msra.mxu0 %v3571
    %4489 = vmatprep.subr.bf16.mxu0 %v3604
    %4490 = vmatpush1.bf16.msra.mxu0 %v3603
    %4491 = vmatprep.mubr.bf16.mxu0 %v890
    %4492 = vmatmul.mubr.bf16.gmra.mrb[0].mxu0 %v889
    %v4493 = vpop.f32.mrb[0].mxu0
    %v4494 = vadd.f32 %v1478, %v4493
    %v4495 = vpop.f32.mrb[0].mxu0
    %v4496 = vadd.f32 %v1482, %v4495
    %v4497 = vpop.f32.mrb[0].mxu0
    %v4498 = vpop.f32.mrb[0].mxu0
    %4499 = vdwg.mxu0
    %4500 = vmatprep.subr.bf16.mxu0 %v3126
    %4501 = vmatpush1.bf16.msra.mxu0 %v3125
    %4502 = vmatprep.subr.bf16.mxu0 %v3158
    %4503 = vmatpush1.bf16.msra.mxu0 %v3157
    %4504 = vmatprep.subr.bf16.mxu0 %v3190
    %4505 = vmatpush1.bf16.msra.mxu0 %v3189
    %4506 = vmatprep.subr.bf16.mxu0 %v3222
    %4507 = vmatpush1.bf16.msra.mxu0 %v3221
    %4508 = vmatprep.subr.bf16.mxu0 %v3254
    %4509 = vmatpush1.bf16.msra.mxu0 %v3253
    %4510 = vmatprep.subr.bf16.mxu0 %v3286
    %4511 = vmatpush1.bf16.msra.mxu0 %v3285
    %4512 = vmatprep.subr.bf16.mxu0 %v3318
    %4513 = vmatpush1.bf16.msra.mxu0 %v3317
    %4514 = vmatprep.subr.bf16.mxu0 %v3350
    %4515 = vmatpush1.bf16.msra.mxu0 %v3349
    %4516 = vmatprep.subr.bf16.mxu0 %v3382
    %4517 = vmatpush1.bf16.msra.mxu0 %v3381
    %4518 = vmatprep.subr.bf16.mxu0 %v3414
    %4519 = vmatpush1.bf16.msra.mxu0 %v3413
    %4520 = vmatprep.subr.bf16.mxu0 %v3446
    %4521 = vmatpush1.bf16.msra.mxu0 %v3445
    %4522 = vmatprep.subr.bf16.mxu0 %v3478
    %4523 = vmatpush1.bf16.msra.mxu0 %v3477
    %4524 = vmatprep.subr.bf16.mxu0 %v3510
    %4525 = vmatpush1.bf16.msra.mxu0 %v3509
    %4526 = vmatprep.subr.bf16.mxu0 %v3542
    %4527 = vmatpush1.bf16.msra.mxu0 %v3541
    %4528 = vmatprep.subr.bf16.mxu0 %v3574
    %4529 = vmatpush1.bf16.msra.mxu0 %v3573
    %4530 = vmatprep.subr.bf16.mxu0 %v3606
    %4531 = vmatpush1.bf16.msra.mxu0 %v3605
    %4532 = vmatprep.mubr.bf16.mxu0 %v890
    %4533 = vmatmul.mubr.bf16.gmra.mrb[0].mxu0 %v889
    %v4534 = vpop.f32.mrb[0].mxu0
    %v4535 = vadd.f32 %v1486, %v4534
    %v4536 = vpop.f32.mrb[0].mxu0
    %v4537 = vadd.f32 %v1490, %v4536
    %v4538 = vpop.f32.mrb[0].mxu0
    %v4539 = vpop.f32.mrb[0].mxu0
    %4540 = vdwg.mxu0
    %4541 = vmatprep.subr.bf16.mxu0 %v3128
    %4542 = vmatpush1.bf16.msra.mxu0 %v3127
    %4543 = vmatprep.subr.bf16.mxu0 %v3160
    %4544 = vmatpush1.bf16.msra.mxu0 %v3159
    %4545 = vmatprep.subr.bf16.mxu0 %v3192
    %4546 = vmatpush1.bf16.msra.mxu0 %v3191
    %4547 = vmatprep.subr.bf16.mxu0 %v3224
    %4548 = vmatpush1.bf16.msra.mxu0 %v3223
    %4549 = vmatprep.subr.bf16.mxu0 %v3256
    %4550 = vmatpush1.bf16.msra.mxu0 %v3255
    %4551 = vmatprep.subr.bf16.mxu0 %v3288
    %4552 = vmatpush1.bf16.msra.mxu0 %v3287
    %4553 = vmatprep.subr.bf16.mxu0 %v3320
    %4554 = vmatpush1.bf16.msra.mxu0 %v3319
    %4555 = vmatprep.subr.bf16.mxu0 %v3352
    %4556 = vmatpush1.bf16.msra.mxu0 %v3351
    %4557 = vmatprep.subr.bf16.mxu0 %v3384
    %4558 = vmatpush1.bf16.msra.mxu0 %v3383
    %4559 = vmatprep.subr.bf16.mxu0 %v3416
    %4560 = vmatpush1.bf16.msra.mxu0 %v3415
    %4561 = vmatprep.subr.bf16.mxu0 %v3448
    %4562 = vmatpush1.bf16.msra.mxu0 %v3447
    %4563 = vmatprep.subr.bf16.mxu0 %v3480
    %4564 = vmatpush1.bf16.msra.mxu0 %v3479
    %4565 = vmatprep.subr.bf16.mxu0 %v3512
    %4566 = vmatpush1.bf16.msra.mxu0 %v3511
    %4567 = vmatprep.subr.bf16.mxu0 %v3544
    %4568 = vmatpush1.bf16.msra.mxu0 %v3543
    %4569 = vmatprep.subr.bf16.mxu0 %v3576
    %4570 = vmatpush1.bf16.msra.mxu0 %v3575
    %4571 = vmatprep.subr.bf16.mxu0 %v3608
    %4572 = vmatpush1.bf16.msra.mxu0 %v3607
    %4573 = vmatprep.mubr.bf16.mxu0 %v890
    %4574 = vmatmul.mubr.bf16.gmra.mrb[0].mxu0 %v889
    %v4575 = vpop.f32.mrb[0].mxu0
    %v4576 = vadd.f32 %v1494, %v4575
    %v4577 = vpop.f32.mrb[0].mxu0
    %v4578 = vadd.f32 %v1498, %v4577
    %v4579 = vpop.f32.mrb[0].mxu0
    %v4580 = vpop.f32.mrb[0].mxu0
    %4581 = vdwg.mxu0
    %4582 = vmatprep.subr.bf16.mxu0 %v3130
    %4583 = vmatpush1.bf16.msra.mxu0 %v3129
    %4584 = vmatprep.subr.bf16.mxu0 %v3162
    %4585 = vmatpush1.bf16.msra.mxu0 %v3161
    %4586 = vmatprep.subr.bf16.mxu0 %v3194
    %4587 = vmatpush1.bf16.msra.mxu0 %v3193
    %4588 = vmatprep.subr.bf16.mxu0 %v3226
    %4589 = vmatpush1.bf16.msra.mxu0 %v3225
    %4590 = vmatprep.subr.bf16.mxu0 %v3258
    %4591 = vmatpush1.bf16.msra.mxu0 %v3257
    %4592 = vmatprep.subr.bf16.mxu0 %v3290
    %4593 = vmatpush1.bf16.msra.mxu0 %v3289
    %4594 = vmatprep.subr.bf16.mxu0 %v3322
    %4595 = vmatpush1.bf16.msra.mxu0 %v3321
    %4596 = vmatprep.subr.bf16.mxu0 %v3354
    %4597 = vmatpush1.bf16.msra.mxu0 %v3353
    %4598 = vmatprep.subr.bf16.mxu0 %v3386
    %4599 = vmatpush1.bf16.msra.mxu0 %v3385
    %4600 = vmatprep.subr.bf16.mxu0 %v3418
    %4601 = vmatpush1.bf16.msra.mxu0 %v3417
    %4602 = vmatprep.subr.bf16.mxu0 %v3450
    %4603 = vmatpush1.bf16.msra.mxu0 %v3449
    %4604 = vmatprep.subr.bf16.mxu0 %v3482
    %4605 = vmatpush1.bf16.msra.mxu0 %v3481
    %4606 = vmatprep.subr.bf16.mxu0 %v3514
    %4607 = vmatpush1.bf16.msra.mxu0 %v3513
    %4608 = vmatprep.subr.bf16.mxu0 %v3546
    %4609 = vmatpush1.bf16.msra.mxu0 %v3545
    %4610 = vmatprep.subr.bf16.mxu0 %v3578
    %4611 = vmatpush1.bf16.msra.mxu0 %v3577
    %4612 = vmatprep.subr.bf16.mxu0 %v3610
    %4613 = vmatpush1.bf16.msra.mxu0 %v3609
    %4614 = vmatprep.mubr.bf16.mxu0 %v890
    %4615 = vmatmul.mubr.bf16.gmra.mrb[0].mxu0 %v889
    %v4616 = vpop.f32.mrb[0].mxu0
    %v4617 = vadd.f32 %v1502, %v4616
    %v4618 = vpop.f32.mrb[0].mxu0
    %v4619 = vadd.f32 %v1506, %v4618
    %v4620 = vpop.f32.mrb[0].mxu0
    %v4621 = vpop.f32.mrb[0].mxu0
    %4622 = vdwg.mxu0
    %4623 = vmatprep.subr.bf16.mxu0 %v3132
    %4624 = vmatpush1.bf16.msra.mxu0 %v3131
    %4625 = vmatprep.subr.bf16.mxu0 %v3164
    %4626 = vmatpush1.bf16.msra.mxu0 %v3163
    %4627 = vmatprep.subr.bf16.mxu0 %v3196
    %4628 = vmatpush1.bf16.msra.mxu0 %v3195
    %4629 = vmatprep.subr.bf16.mxu0 %v3228
    %4630 = vmatpush1.bf16.msra.mxu0 %v3227
    %4631 = vmatprep.subr.bf16.mxu0 %v3260
    %4632 = vmatpush1.bf16.msra.mxu0 %v3259
    %4633 = vmatprep.subr.bf16.mxu0 %v3292
    %4634 = vmatpush1.bf16.msra.mxu0 %v3291
    %4635 = vmatprep.subr.bf16.mxu0 %v3324
    %4636 = vmatpush1.bf16.msra.mxu0 %v3323
    %4637 = vmatprep.subr.bf16.mxu0 %v3356
    %4638 = vmatpush1.bf16.msra.mxu0 %v3355
    %4639 = vmatprep.subr.bf16.mxu0 %v3388
    %4640 = vmatpush1.bf16.msra.mxu0 %v3387
    %4641 = vmatprep.subr.bf16.mxu0 %v3420
    %4642 = vmatpush1.bf16.msra.mxu0 %v3419
    %4643 = vmatprep.subr.bf16.mxu0 %v3452
    %4644 = vmatpush1.bf16.msra.mxu0 %v3451
    %4645 = vmatprep.subr.bf16.mxu0 %v3484
    %4646 = vmatpush1.bf16.msra.mxu0 %v3483
    %4647 = vmatprep.subr.bf16.mxu0 %v3516
    %4648 = vmatpush1.bf16.msra.mxu0 %v3515
    %4649 = vmatprep.subr.bf16.mxu0 %v3548
    %4650 = vmatpush1.bf16.msra.mxu0 %v3547
    %4651 = vmatprep.subr.bf16.mxu0 %v3580
    %4652 = vmatpush1.bf16.msra.mxu0 %v3579
    %4653 = vmatprep.subr.bf16.mxu0 %v3612
    %4654 = vmatpush1.bf16.msra.mxu0 %v3611
    %4655 = vmatprep.mubr.bf16.mxu0 %v890
    %4656 = vmatmul.mubr.bf16.gmra.mrb[0].mxu0 %v889
    %v4657 = vpop.f32.mrb[0].mxu0
    %v4658 = vadd.f32 %v1510, %v4657
    %v4659 = vpop.f32.mrb[0].mxu0
    %v4660 = vadd.f32 %v1514, %v4659
    %v4661 = vpop.f32.mrb[0].mxu0
    %v4662 = vpop.f32.mrb[0].mxu0
    %4663 = vdwg.mxu0
    %4664 = vmatprep.subr.bf16.mxu0 %v3134
    %4665 = vmatpush1.bf16.msra.mxu0 %v3133
    %4666 = vmatprep.subr.bf16.mxu0 %v3166
    %4667 = vmatpush1.bf16.msra.mxu0 %v3165
    %4668 = vmatprep.subr.bf16.mxu0 %v3198
    %4669 = vmatpush1.bf16.msra.mxu0 %v3197
    %4670 = vmatprep.subr.bf16.mxu0 %v3230
    %4671 = vmatpush1.bf16.msra.mxu0 %v3229
    %4672 = vmatprep.subr.bf16.mxu0 %v3262
    %4673 = vmatpush1.bf16.msra.mxu0 %v3261
    %4674 = vmatprep.subr.bf16.mxu0 %v3294
    %4675 = vmatpush1.bf16.msra.mxu0 %v3293
    %4676 = vmatprep.subr.bf16.mxu0 %v3326
    %4677 = vmatpush1.bf16.msra.mxu0 %v3325
    %4678 = vmatprep.subr.bf16.mxu0 %v3358
    %4679 = vmatpush1.bf16.msra.mxu0 %v3357
    %4680 = vmatprep.subr.bf16.mxu0 %v3390
    %4681 = vmatpush1.bf16.msra.mxu0 %v3389
    %4682 = vmatprep.subr.bf16.mxu0 %v3422
    %4683 = vmatpush1.bf16.msra.mxu0 %v3421
    %4684 = vmatprep.subr.bf16.mxu0 %v3454
    %4685 = vmatpush1.bf16.msra.mxu0 %v3453
    %4686 = vmatprep.subr.bf16.mxu0 %v3486
    %4687 = vmatpush1.bf16.msra.mxu0 %v3485
    %4688 = vmatprep.subr.bf16.mxu0 %v3518
    %4689 = vmatpush1.bf16.msra.mxu0 %v3517
    %4690 = vmatprep.subr.bf16.mxu0 %v3550
    %4691 = vmatpush1.bf16.msra.mxu0 %v3549
    %4692 = vmatprep.subr.bf16.mxu0 %v3582
    %4693 = vmatpush1.bf16.msra.mxu0 %v3581
    %4694 = vmatprep.subr.bf16.mxu0 %v3614
    %4695 = vmatpush1.bf16.msra.mxu0 %v3613
    %4696 = vmatprep.mubr.bf16.mxu0 %v890
    %4697 = vmatmul.mubr.bf16.gmra.mrb[0].mxu0 %v889
    %v4698 = vpop.f32.mrb[0].mxu0
    %v4699 = vadd.f32 %v1518, %v4698
    %v4700 = vpop.f32.mrb[0].mxu0
    %v4701 = vadd.f32 %v1522, %v4700
    %v4702 = vpop.f32.mrb[0].mxu0
    %v4703 = vpop.f32.mrb[0].mxu0
    %4704 = vdwg.mxu0
    %4705 = vmatprep.subr.bf16.mxu0 %v3136
    %4706 = vmatpush1.bf16.msra.mxu0 %v3135
    %4707 = vmatprep.subr.bf16.mxu0 %v3168
    %4708 = vmatpush1.bf16.msra.mxu0 %v3167
    %4709 = vmatprep.subr.bf16.mxu0 %v3200
    %4710 = vmatpush1.bf16.msra.mxu0 %v3199
    %4711 = vmatprep.subr.bf16.mxu0 %v3232
    %4712 = vmatpush1.bf16.msra.mxu0 %v3231
    %4713 = vmatprep.subr.bf16.mxu0 %v3264
    %4714 = vmatpush1.bf16.msra.mxu0 %v3263
    %4715 = vmatprep.subr.bf16.mxu0 %v3296
    %4716 = vmatpush1.bf16.msra.mxu0 %v3295
    %4717 = vmatprep.subr.bf16.mxu0 %v3328
    %4718 = vmatpush1.bf16.msra.mxu0 %v3327
    %4719 = vmatprep.subr.bf16.mxu0 %v3360
    %4720 = vmatpush1.bf16.msra.mxu0 %v3359
    %4721 = vmatprep.subr.bf16.mxu0 %v3392
    %4722 = vmatpush1.bf16.msra.mxu0 %v3391
    %4723 = vmatprep.subr.bf16.mxu0 %v3424
    %4724 = vmatpush1.bf16.msra.mxu0 %v3423
    %4725 = vmatprep.subr.bf16.mxu0 %v3456
    %4726 = vmatpush1.bf16.msra.mxu0 %v3455
    %4727 = vmatprep.subr.bf16.mxu0 %v3488
    %4728 = vmatpush1.bf16.msra.mxu0 %v3487
    %4729 = vmatprep.subr.bf16.mxu0 %v3520
    %4730 = vmatpush1.bf16.msra.mxu0 %v3519
    %4731 = vmatprep.subr.bf16.mxu0 %v3552
    %4732 = vmatpush1.bf16.msra.mxu0 %v3551
    %4733 = vmatprep.subr.bf16.mxu0 %v3584
    %4734 = vmatpush1.bf16.msra.mxu0 %v3583
    %4735 = vmatprep.subr.bf16.mxu0 %v3616
    %4736 = vmatpush1.bf16.msra.mxu0 %v3615
    %4737 = vmatprep.mubr.bf16.mxu0 %v890
    %4738 = vmatmul.mubr.bf16.gmra.mrb[0].mxu0 %v889
    %v4739 = vpop.f32.mrb[0].mxu0
    %v4740 = vadd.f32 %v1526, %v4739
    %v4741 = vpop.f32.mrb[0].mxu0
    %v4742 = vadd.f32 %v1530, %v4741
    %v4743 = vpop.f32.mrb[0].mxu0
    %v4744 = vpop.f32.mrb[0].mxu0
    %4745 = vdwg.mxu0
    %4746 = vmatprep.subr.bf16.mxu0 %v3138
    %4747 = vmatpush1.bf16.msra.mxu0 %v3137
    %4748 = vmatprep.subr.bf16.mxu0 %v3170
    %4749 = vmatpush1.bf16.msra.mxu0 %v3169
    %4750 = vmatprep.subr.bf16.mxu0 %v3202
    %4751 = vmatpush1.bf16.msra.mxu0 %v3201
    %4752 = vmatprep.subr.bf16.mxu0 %v3234
    %4753 = vmatpush1.bf16.msra.mxu0 %v3233
    %4754 = vmatprep.subr.bf16.mxu0 %v3266
    %4755 = vmatpush1.bf16.msra.mxu0 %v3265
    %4756 = vmatprep.subr.bf16.mxu0 %v3298
    %4757 = vmatpush1.bf16.msra.mxu0 %v3297
    %4758 = vmatprep.subr.bf16.mxu0 %v3330
    %4759 = vmatpush1.bf16.msra.mxu0 %v3329
    %4760 = vmatprep.subr.bf16.mxu0 %v3362
    %4761 = vmatpush1.bf16.msra.mxu0 %v3361
    %4762 = vmatprep.subr.bf16.mxu0 %v3394
    %4763 = vmatpush1.bf16.msra.mxu0 %v3393
    %4764 = vmatprep.subr.bf16.mxu0 %v3426
    %4765 = vmatpush1.bf16.msra.mxu0 %v3425
    %4766 = vmatprep.subr.bf16.mxu0 %v3458
    %4767 = vmatpush1.bf16.msra.mxu0 %v3457
    %4768 = vmatprep.subr.bf16.mxu0 %v3490
    %4769 = vmatpush1.bf16.msra.mxu0 %v3489
    %4770 = vmatprep.subr.bf16.mxu0 %v3522
    %4771 = vmatpush1.bf16.msra.mxu0 %v3521
    %4772 = vmatprep.subr.bf16.mxu0 %v3554
    %4773 = vmatpush1.bf16.msra.mxu0 %v3553
    %4774 = vmatprep.subr.bf16.mxu0 %v3586
    %4775 = vmatpush1.bf16.msra.mxu0 %v3585
    %4776 = vmatprep.subr.bf16.mxu0 %v3618
    %4777 = vmatpush1.bf16.msra.mxu0 %v3617
    %4778 = vmatprep.mubr.bf16.mxu0 %v890
    %4779 = vmatmul.mubr.bf16.gmra.mrb[0].mxu0 %v889
    %v4780 = vpop.f32.mrb[0].mxu0
    %v4781 = vadd.f32 %v1534, %v4780
    %v4782 = vpop.f32.mrb[0].mxu0
    %v4783 = vadd.f32 %v1538, %v4782
    %v4784 = vpop.f32.mrb[0].mxu0
    %v4785 = vpop.f32.mrb[0].mxu0
    %4786 = vdwg.mxu0
    %v4819 = vcombine.low %v4166, %v4168
    %v4820 = vcombine.low %v4207, %v4209
    %v4822 = vunpack.c.l.s4 1983009808
    %v4823 = vunpack.c.0.s8 %v4822
    %v4824 = vlaneseq
    %v4825 = vshrl.u32 %v4824, 7
    %v4826 = vsub.s32 %v4823, %v4825
    %v4827 = vrot.slane %v4819, %v4826
    %v4829 = vunpack.c.l.s4 1983009808
    %v4830 = vunpack.c.0.s8 %v4829
    %v4831 = vlaneseq
    %v4832 = vshrl.u32 %v4831, 7
    %v4833 = vsub.s32 %v4830, %v4832
    %v4834 = vrot.slane %v4820, %v4833
    %v4835 = vcombine.low %v4827, %v4834
    %v4836 = vcombine.low %v4248, %v4250
    %v4837 = vcombine.low %v4289, %v4291
    %v4839 = vunpack.c.l.s4 1983009808
    %v4840 = vunpack.c.0.s8 %v4839
    %v4841 = vlaneseq
    %v4842 = vshrl.u32 %v4841, 7
    %v4843 = vsub.s32 %v4840, %v4842
    %v4844 = vrot.slane %v4836, %v4843
    %v4846 = vunpack.c.l.s4 1983009808
    %v4847 = vunpack.c.0.s8 %v4846
    %v4848 = vlaneseq
    %v4849 = vshrl.u32 %v4848, 7
    %v4850 = vsub.s32 %v4847, %v4849
    %v4851 = vrot.slane %v4837, %v4850
    %v4852 = vcombine.low %v4844, %v4851
    %v4853 = vcombine.low %v4330, %v4332
    %v4854 = vcombine.low %v4371, %v4373
    %v4856 = vunpack.c.l.s4 1983009808
    %v4857 = vunpack.c.0.s8 %v4856
    %v4858 = vlaneseq
    %v4859 = vshrl.u32 %v4858, 7
    %v4860 = vsub.s32 %v4857, %v4859
    %v4861 = vrot.slane %v4853, %v4860
    %v4863 = vunpack.c.l.s4 1983009808
    %v4864 = vunpack.c.0.s8 %v4863
    %v4865 = vlaneseq
    %v4866 = vshrl.u32 %v4865, 7
    %v4867 = vsub.s32 %v4864, %v4866
    %v4868 = vrot.slane %v4854, %v4867
    %v4869 = vcombine.low %v4861, %v4868
    %v4870 = vcombine.low %v4412, %v4414
    %v4871 = vcombine.low %v4453, %v4455
    %v4873 = vunpack.c.l.s4 1983009808
    %v4874 = vunpack.c.0.s8 %v4873
    %v4875 = vlaneseq
    %v4876 = vshrl.u32 %v4875, 7
    %v4877 = vsub.s32 %v4874, %v4876
    %v4878 = vrot.slane %v4870, %v4877
    %v4880 = vunpack.c.l.s4 1983009808
    %v4881 = vunpack.c.0.s8 %v4880
    %v4882 = vlaneseq
    %v4883 = vshrl.u32 %v4882, 7
    %v4884 = vsub.s32 %v4881, %v4883
    %v4885 = vrot.slane %v4871, %v4884
    %v4886 = vcombine.low %v4878, %v4885
    %v4887 = vcombine.low %v4494, %v4496
    %v4888 = vcombine.low %v4535, %v4537
    %v4890 = vunpack.c.l.s4 1983009808
    %v4891 = vunpack.c.0.s8 %v4890
    %v4892 = vlaneseq
    %v4893 = vshrl.u32 %v4892, 7
    %v4894 = vsub.s32 %v4891, %v4893
    %v4895 = vrot.slane %v4887, %v4894
    %v4897 = vunpack.c.l.s4 1983009808
    %v4898 = vunpack.c.0.s8 %v4897
    %v4899 = vlaneseq
    %v4900 = vshrl.u32 %v4899, 7
    %v4901 = vsub.s32 %v4898, %v4900
    %v4902 = vrot.slane %v4888, %v4901
    %v4903 = vcombine.low %v4895, %v4902
    %v4904 = vcombine.low %v4576, %v4578
    %v4905 = vcombine.low %v4617, %v4619
    %v4907 = vunpack.c.l.s4 1983009808
    %v4908 = vunpack.c.0.s8 %v4907
    %v4909 = vlaneseq
    %v4910 = vshrl.u32 %v4909, 7
    %v4911 = vsub.s32 %v4908, %v4910
    %v4912 = vrot.slane %v4904, %v4911
    %v4914 = vunpack.c.l.s4 1983009808
    %v4915 = vunpack.c.0.s8 %v4914
    %v4916 = vlaneseq
    %v4917 = vshrl.u32 %v4916, 7
    %v4918 = vsub.s32 %v4915, %v4917
    %v4919 = vrot.slane %v4905, %v4918
    %v4920 = vcombine.low %v4912, %v4919
    %v4921 = vcombine.low %v4658, %v4660
    %v4922 = vcombine.low %v4699, %v4701
    %v4924 = vunpack.c.l.s4 1983009808
    %v4925 = vunpack.c.0.s8 %v4924
    %v4926 = vlaneseq
    %v4927 = vshrl.u32 %v4926, 7
    %v4928 = vsub.s32 %v4925, %v4927
    %v4929 = vrot.slane %v4921, %v4928
    %v4931 = vunpack.c.l.s4 1983009808
    %v4932 = vunpack.c.0.s8 %v4931
    %v4933 = vlaneseq
    %v4934 = vshrl.u32 %v4933, 7
    %v4935 = vsub.s32 %v4932, %v4934
    %v4936 = vrot.slane %v4922, %v4935
    %v4937 = vcombine.low %v4929, %v4936
    %v4938 = vcombine.low %v4740, %v4742
    %v4939 = vcombine.low %v4781, %v4783
    %v4941 = vunpack.c.l.s4 1983009808
    %v4942 = vunpack.c.0.s8 %v4941
    %v4943 = vlaneseq
    %v4944 = vshrl.u32 %v4943, 7
    %v4945 = vsub.s32 %v4942, %v4944
    %v4946 = vrot.slane %v4938, %v4945
    %v4948 = vunpack.c.l.s4 1983009808
    %v4949 = vunpack.c.0.s8 %v4948
    %v4950 = vlaneseq
    %v4951 = vshrl.u32 %v4950, 7
    %v4952 = vsub.s32 %v4949, %v4951
    %v4953 = vrot.slane %v4939, %v4952
    %v4954 = vcombine.low %v4946, %v4953
    %4963 = vst [vmem:[%s7] sm:$0xff] %v4835
    %4964 = vst [vmem:[%s7 + $0x8] sm:$0xff] %v4852
    %4965 = vst [vmem:[%s7 + $0x10] sm:$0xff] %v4869
    %4966 = vst [vmem:[%s7 + $0x18] sm:$0xff] %v4886
    %4967 = vst [vmem:[%s7 + $0x20] sm:$0xff] %v4903
    %4968 = vst [vmem:[%s7 + $0x28] sm:$0xff] %v4920
    %4969 = vst [vmem:[%s7 + $0x30] sm:$0xff] %v4937
    %4970 = vst [vmem:[%s7 + $0x38] sm:$0xff] %v4954
    // Predicated region
    $region54: #{stnkd_forward.3} parent=1 // pred_check
      _
    $region55: #{stnkd_forward.3} parent=1 // pred_check_branch
      %4972 = sbr.rel (0) target = $region57
    $region56: #{stnkd_forward.3} parent=1 // pred_region
      _
    $region57: #{stnkd_forward.3} parent=1 // pred_fallthru
      _
    // Predicated region
    $region58: #{stnkd_forward.3} parent=1 // pred_check
      _
    $region59: #{stnkd_forward.3} parent=1 // pred_check_branch
      %4974 = sbr.rel (0) target = $region61
    $region60: #{stnkd_forward.3} parent=1 // pred_region
      _
    $region61: #{stnkd_forward.3} parent=1 // pred_fallthru
      _
    %4975 = vsyncpa [#allocation3], 1
    %4976 = vsyncpa [#allocation5], 1
    %4977 = vsyncpa [#allocation8], 1
    %4978 = vsyncpa [#allocation11], 1

</llo_original>
